<compile_context>
chip_gen: v6e
topology: v6e:2x2x1
jax: 0.10.0
libtpu: 0.0.40
codegen_flags: <defaults>
</compile_context>

<pallas_src>
import functools

import jax
import jax.numpy as jnp
from jax.experimental import pallas as pl
from jax.experimental.pallas import tpu as pltpu


def _round_up(x, m):
    return ((x + m - 1) // m) * m


def _vmem_cap_bytes():
    """Per-generation scoped-VMEM cap with headroom for compiler scratch."""
    cap = 128 << 20
    try:
        info = pltpu.get_tpu_info()
        cap = int(getattr(info, "vmem_capacity_bytes", cap))
    except Exception:
        pass
    if cap <= (64 << 20):          # v7x: 64 MiB physical per TC
        return 52 << 20
    return min(100 << 20, cap)     # v5e / v6e: 128 MiB physical


def _couple_stack(h1, h2, win_ref, bin_ref, wh_ref, bh_ref, wout_ref, bout_ref,
                  *, couple_layers, cell_layers, matmul_dtype):
    """Apply all couple layers to the two f32 halves; returns new (h1, h2)."""
    for i in range(couple_layers):
        inp = h1 if (i % 2 == 0) else h2

        # in_layer + ReLU (bias added in f32 on the VPU).
        b_in = bin_ref[i:i + 1, :].astype(jnp.float32)
        a = jnp.dot(inp.astype(matmul_dtype), win_ref[i],
                    preferred_element_type=jnp.float32)
        a = jnp.maximum(a + b_in, 0.0)

        # Hidden cells + ReLU.
        # TODO(synk): switch to lax.fori_loop(..., unroll=True) with dynamic
        # wh_ref[k] indexing if couple_layers*cell_layers grows large (static
        # unrolling inflates code size / vreg pressure at depth).
        for j in range(cell_layers):
            k = i * cell_layers + j
            b_h = bh_ref[k:k + 1, :].astype(jnp.float32)
            a = jnp.dot(a.astype(matmul_dtype), wh_ref[k],
                        preferred_element_type=jnp.float32)
            a = jnp.maximum(a + b_h, 0.0)

        # out_layer (no activation) + residual update of the other half.
        b_out = bout_ref[i:i + 1, :].astype(jnp.float32)
        out = jnp.dot(a.astype(matmul_dtype), wout_ref[i],
                      preferred_element_type=jnp.float32) + b_out
        if i % 2 == 0:
            h2 = h2 + out
        else:
            h1 = h1 + out
    return h1, h2


def nice_kernel_fused(h_ref, win_ref, bin_ref, wh_ref, bh_ref, wout_ref,
                      bout_ref, o_ref, *, couple_layers, cell_layers, d2,
                      matmul_dtype):
    """Single-slab kernel: valid when d2 % 128 == 0 (tile-aligned splits)."""
    h1 = h_ref[:, :d2].astype(jnp.float32)
    h2 = h_ref[:, d2:].astype(jnp.float32)
    h1, h2 = _couple_stack(h1, h2, win_ref, bin_ref, wh_ref, bh_ref, wout_ref,
                           bout_ref, couple_layers=couple_layers,
                           cell_layers=cell_layers, matmul_dtype=matmul_dtype)
    o_ref[:, :d2] = h1.astype(o_ref.dtype)
    o_ref[:, d2:] = h2.astype(o_ref.dtype)


def nice_kernel_split(h1_ref, h2_ref, win_ref, bin_ref, wh_ref, bh_ref,
                      wout_ref, bout_ref, o1_ref, o2_ref, *, couple_layers,
                      cell_layers, matmul_dtype):
    """Two-half kernel: used when d2 is not a multiple of 128."""
    h1 = h1_ref[...].astype(jnp.float32)
    h2 = h2_ref[...].astype(jnp.float32)
    h1, h2 = _couple_stack(h1, h2, win_ref, bin_ref, wh_ref, bh_ref, wout_ref,
                           bout_ref, couple_layers=couple_layers,
                           cell_layers=cell_layers, matmul_dtype=matmul_dtype)
    o1_ref[...] = h1.astype(o1_ref.dtype)
    o2_ref[...] = h2.astype(o2_ref.dtype)


def nice_trans_pallas(x, params, *, couple_layers, cell_layers, row_tile=512,
                      use_bf16_matmul=True, io_bf16=False):
    """x: (seq, batch, features) -> (h, jacobian_loss). Matches NICETrans.forward."""
    S, B, F = x.shape
    assert F % 2 == 0, F
    d2 = F // 2
    N = S * B

    win, bin_, wh, bh, wout, bout = params
    C, L = couple_layers, cell_layers
    H = win.shape[-1]

    # Weights must already be in (in_features, out_features) layout.
    assert win.shape == (C, d2, H), win.shape
    assert bin_.shape == (C, H), bin_.shape
    assert wh.shape == (C * L, H, H), wh.shape
    assert bh.shape == (C * L, H), bh.shape
    assert wout.shape == (C, H, d2), wout.shape
    assert bout.shape == (C, d2), bout.shape

    matmul_dtype = jnp.bfloat16 if use_bf16_matmul else jnp.float32
    if use_bf16_matmul:
        # Cast weights once outside the kernel; biases stay f32 (VPU adds).
        win = win.astype(jnp.bfloat16)
        wh = wh.astype(jnp.bfloat16)
        wout = wout.astype(jnp.bfloat16)

    io_dtype = jnp.bfloat16 if io_bf16 else jnp.float32
    io_itemsize = jnp.dtype(io_dtype).itemsize
    row_align = 16 if io_bf16 else 8

    fused = (d2 % 128 == 0)

    bytes_of = lambda a: a.size * a.dtype.itemsize
    weight_bytes = sum(bytes_of(w) for w in (win, bin_, wh, bh, wout, bout))
    cap = _vmem_cap_bytes()
    slack = 4 << 20

    # Large row tile (amortizes per-step overhead, fills the MXU M dim).
    tile = _round_up(min(row_tile, max(N, 1)), row_align)
    # Shrink the tile if resident weights + double-buffered IO won't fit.
    io_bytes_for = lambda t: 4 * t * F * io_itemsize    # in+out, double-buffered
    while tile > row_align and weight_bytes + io_bytes_for(tile) + slack > cap:
        tile = max(row_align, _round_up(tile // 2, row_align))
    # Guarantee >= 2 grid steps so both v7x TensorCores get work.
    if -(-N // tile) < 2 and tile >= 2 * row_align:
        tile = _round_up(tile // 2, row_align)

    Np = _round_up(N, tile)
    grid = (Np // tile,)
    io_bytes = io_bytes_for(tile)

    x2d = x.reshape(N, F).astype(io_dtype)
    if fused:
        xp = x2d if Np == N else jnp.pad(x2d, ((0, Np - N), (0, 0)))
        kernel = functools.partial(nice_kernel_fused, couple_layers=C,
                                   cell_layers=L, d2=d2,
                                   matmul_dtype=matmul_dtype)
    else:
        x1 = x2d[:, :d2]
        x2 = x2d[:, d2:]
        if Np != N:
            x1 = jnp.pad(x1, ((0, Np - N), (0, 0)))
            x2 = jnp.pad(x2, ((0, Np - N), (0, 0)))
        kernel = functools.partial(nice_kernel_split, couple_layers=C,
                                   cell_layers=L, matmul_dtype=matmul_dtype)

    def build_and_run(single_buffer_weights):
        spec_kw = {}
        if single_buffer_weights:
            # Constant-index blocks: single buffer (double-buffering is wasted).
            spec_kw = dict(pipeline_mode=pl.Buffered(1))

        def full(shape):
            return pl.BlockSpec(shape, lambda i: (0,) * len(shape), **spec_kw)

        weight_specs = [full((C, d2, H)), full((C, H)), full((C * L, H, H)),
                        full((C * L, H)), full((C, H, d2)), full((C, d2))]
        wfac = 1 if single_buffer_weights else 2
        vmem_limit = int(min(cap, max(16 << 20,
                                      wfac * weight_bytes + io_bytes + slack)))
        cparams = pltpu.CompilerParams(
            dimension_semantics=("parallel",),
            vmem_limit_bytes=vmem_limit)

        if fused:
            row_spec = pl.BlockSpec((tile, F), lambda i: (i, 0))
            out = pl.pallas_call(
                kernel,
                out_shape=jax.ShapeDtypeStruct((Np, F), io_dtype),
                grid_spec=pltpu.PrefetchScalarGridSpec(
                    num_scalar_prefetch=0, grid=grid,
                    in_specs=[row_spec] + weight_specs,
                    out_specs=row_spec),
                compiler_params=cparams,
            )(xp, win, bin_, wh, bh, wout, bout)
            return jax.block_until_ready(out)
        else:
            half_spec = pl.BlockSpec((tile, d2), lambda i: (i, 0))
            o1, o2 = pl.pallas_call(
                kernel,
                out_shape=(jax.ShapeDtypeStruct((Np, d2), io_dtype),
                           jax.ShapeDtypeStruct((Np, d2), io_dtype)),
                grid_spec=pltpu.PrefetchScalarGridSpec(
                    num_scalar_prefetch=0, grid=grid,
                    in_specs=[half_spec, half_spec] + weight_specs,
                    out_specs=[half_spec, half_spec]),
                compiler_params=cparams,
            )(x1, x2, win, bin_, wh, bh, wout, bout)
            return jax.block_until_ready((o1, o2))

    try:
        res = build_and_run(single_buffer_weights=True)
    except Exception:
        # pipeline_mode / Buffered(1) not supported -> default double buffering.
        res = build_and_run(single_buffer_weights=False)

    if fused:
        h2d = res[:N]
    else:
        o1, o2 = res
        h2d = jnp.concatenate([o1[:N], o2[:N]], axis=-1)

    h = h2d.reshape(S, B, F).astype(x.dtype)
    # Additive coupling => log-det Jacobian is exactly 0 (module returns zeros(1)).
    jacobian_loss = jnp.zeros((1,), dtype=jnp.float32)
    return h, jacobian_loss


def nice_trans_ref(x, params, *, couple_layers, cell_layers):
    """Pure-jnp reference matching the PyTorch forward (HIGHEST f32 matmuls)."""
    win, bin_, wh, bh, wout, bout = params
    F = x.shape[-1]
    d2 = F // 2
    hi = jax.lax.Precision.HIGHEST
    h = x
    for i in range(couple_layers):
        h1, h2 = h[..., :d2], h[..., d2:]
        inp = h1 if i % 2 == 0 else h2
        a = jnp.maximum(jnp.dot(inp, win[i], precision=hi) + bin_[i], 0.0)
        for j in range(cell_layers):
            k = i * cell_layers + j
            a = jnp.maximum(jnp.dot(a, wh[k], precision=hi) + bh[k], 0.0)
        out = jnp.dot(a, wout[i], precision=hi) + bout[i]
        if i % 2 == 0:
            h = jnp.concatenate([h1, h2 + out], axis=-1)
        else:
            h = jnp.concatenate([h1 + out, h2], axis=-1)
    return h, jnp.zeros((1,), dtype=jnp.float32)


def init_params(key, *, couple_layers, cell_layers, hidden_units, features):
    """Deterministic synthetic parameters, weights in (in, out) layout."""
    d2 = features // 2
    C, L, H = couple_layers, cell_layers, hidden_units
    ks = jax.random.split(key, 6)
    win = jax.random.normal(ks[0], (C, d2, H), jnp.float32) / (d2 ** 0.5)
    bin_ = 0.1 * jax.random.normal(ks[1], (C, H), jnp.float32)
    wh = jax.random.normal(ks[2], (C * L, H, H), jnp.float32) / (H ** 0.5)
    bh = 0.1 * jax.random.normal(ks[3], (C * L, H), jnp.float32)
    wout = jax.random.normal(ks[4], (C, H, d2), jnp.float32) / (H ** 0.5)
    bout = 0.1 * jax.random.normal(ks[5], (C, d2), jnp.float32)
    return win, bin_, wh, bh, wout, bout


if __name__ == "__main__":
    key = jax.random.PRNGKey(0)
    kx, kp, kx2, kp2 = jax.random.split(key, 4)

    # --- Test 1: module's toy shapes (features=8 -> d2=4 < 128 -> split path) ---
    couple_layers, cell_layers, hidden_units, features = 4, 2, 32, 8
    seq, batch = 8, 2
    x = jax.random.normal(kx, (seq, batch, features), jnp.float32)
    params = init_params(kp, couple_layers=couple_layers,
                         cell_layers=cell_layers,
                         hidden_units=hidden_units, features=features)
    h_ref, jac_ref = nice_trans_ref(x, params, couple_layers=couple_layers,
                                    cell_layers=cell_layers)

    # Exact f32 path.
    h32, jac = nice_trans_pallas(x, params, couple_layers=couple_layers,
                                 cell_layers=cell_layers,
                                 use_bf16_matmul=False)
    h32 = jax.block_until_ready(h32)
    assert h32.shape == (seq, batch, features)
    assert jac.shape == (1,) and float(jac[0]) == 0.0
    assert jnp.allclose(h32, h_ref, atol=1e-4, rtol=1e-4)

    # Default bf16-MXU path (looser tolerance).
    hbf, _ = nice_trans_pallas(x, params, couple_layers=couple_layers,
                               cell_layers=cell_layers)
    hbf = jax.block_until_ready(hbf)
    assert jnp.allclose(hbf, h_ref, atol=1e-1, rtol=1e-1)

    # --- Test 2: lane-dense shapes (features=256 -> d2=128 -> fused slab path) ---
    couple_layers2, cell_layers2, hidden2, features2 = 4, 2, 128, 256
    seq2, batch2 = 16, 8
    x2 = jax.random.normal(kx2, (seq2, batch2, features2), jnp.float32)
    params2 = init_params(kp2, couple_layers=couple_layers2,
                          cell_layers=cell_layers2,
                          hidden_units=hidden2, features=features2)
    h2_ref, _ = nice_trans_ref(x2, params2, couple_layers=couple_layers2,
                               cell_layers=cell_layers2)

    h2_32, _ = nice_trans_pallas(x2, params2, couple_layers=couple_layers2,
                                 cell_layers=cell_layers2,
                                 use_bf16_matmul=False)
    h2_32 = jax.block_until_ready(h2_32)
    assert h2_32.shape == (seq2, batch2, features2)
    assert jnp.allclose(h2_32, h2_ref, atol=2e-3, rtol=2e-3)

    # bf16 matmuls + bf16 boundary IO (mem-bound configuration).
    h2_bf, _ = nice_trans_pallas(x2, params2, couple_layers=couple_layers2,
                                 cell_layers=cell_layers2,
                                 use_bf16_matmul=True, io_bf16=True)
    h2_bf = jax.block_until_ready(h2_bf)
    assert jnp.allclose(h2_bf, h2_ref, atol=1e-1, rtol=1e-1)

    print("KERNEL_OK")
</pallas_src>

<mosaic_0001>
module attributes {stable_mosaic.version = 11 : i64} {
  func.func @nice_kernel_split(%arg0: i32, %arg1: memref<8x4xf32, #tpu.memory_space<vmem>>, %arg2: memref<8x4xf32, #tpu.memory_space<vmem>>, %arg3: memref<4x4x32xf32, #tpu.memory_space<vmem>>, %arg4: memref<4x32xf32, #tpu.memory_space<vmem>>, %arg5: memref<8x32x32xf32, #tpu.memory_space<vmem>>, %arg6: memref<8x32xf32, #tpu.memory_space<vmem>>, %arg7: memref<4x32x4xf32, #tpu.memory_space<vmem>>, %arg8: memref<4x4xf32, #tpu.memory_space<vmem>>, %arg9: memref<8x4xf32, #tpu.memory_space<vmem>>, %arg10: memref<8x4xf32, #tpu.memory_space<vmem>>) attributes {dimension_semantics = [#tpu.dimension_semantics<parallel>], iteration_bounds = array<i64: 2>, scalar_prefetch = 0 : i64, scratch_operands = 0 : i64, tpu.core_type = #tpu.core_type<tc>, window_params = [{transform_indices = @transform_0, window_bounds = array<i64: 8, 4>}, {transform_indices = @transform_1, window_bounds = array<i64: 8, 4>}, {pipeline_mode = #tpu.pipeline_mode<synchronous>, transform_indices = @transform_2, window_bounds = array<i64: 4, 4, 32>}, {pipeline_mode = #tpu.pipeline_mode<synchronous>, transform_indices = @transform_3, window_bounds = array<i64: 4, 32>}, {pipeline_mode = #tpu.pipeline_mode<synchronous>, transform_indices = @transform_4, window_bounds = array<i64: 8, 32, 32>}, {pipeline_mode = #tpu.pipeline_mode<synchronous>, transform_indices = @transform_5, window_bounds = array<i64: 8, 32>}, {pipeline_mode = #tpu.pipeline_mode<synchronous>, transform_indices = @transform_6, window_bounds = array<i64: 4, 32, 4>}, {pipeline_mode = #tpu.pipeline_mode<synchronous>, transform_indices = @transform_7, window_bounds = array<i64: 4, 4>}, {transform_indices = @transform_8, window_bounds = array<i64: 8, 4>}, {transform_indices = @transform_9, window_bounds = array<i64: 8, 4>}]} {
    %c0 = arith.constant 0 : index
    %c0_0 = arith.constant 0 : index
    %0 = vector.load %arg1[%c0, %c0_0] : memref<8x4xf32, #tpu.memory_space<vmem>>, vector<8x4xf32>
    %c0_1 = arith.constant 0 : index
    %c0_2 = arith.constant 0 : index
    %1 = vector.load %arg2[%c0_1, %c0_2] : memref<8x4xf32, #tpu.memory_space<vmem>>, vector<8x4xf32>
    %c0_3 = arith.constant 0 : index
    %c0_4 = arith.constant 0 : index
    %2 = vector.load %arg4[%c0_3, %c0_4] : memref<4x32xf32, #tpu.memory_space<vmem>>, vector<1x32xf32>
    %c0_5 = arith.constant 0 : index
    %c0_6 = arith.constant 0 : index
    %c0_7 = arith.constant 0 : index
    %3 = vector.load %arg3[%c0_5, %c0_6, %c0_7] : memref<4x4x32xf32, #tpu.memory_space<vmem>>, vector<1x4x32xf32>
    %4 = vector.shape_cast %3 : vector<1x4x32xf32> to vector<4x32xf32>
    %cst = arith.constant dense<0.000000e+00> : vector<8x32xf32>
    %5 = tpu.matmul %0, %4, %cst {dimension_numbers = #tpu.dot_dimension_numbers<[1], [0], [0], [1], [0, 0, 1, 1], [], []>} : vector<8x4xf32>, vector<4x32xf32>, vector<8x32xf32> -> vector<8x32xf32>
    %6 = vector.broadcast %2 : vector<1x32xf32> to vector<8x32xf32>
    %7 = arith.addf %5, %6 : vector<8x32xf32>
    %cst_8 = arith.constant 0.000000e+00 : f32
    %8 = vector.broadcast %cst_8 : f32 to vector<8x32xf32>
    %9 = arith.maximumf %7, %8 : vector<8x32xf32>
    %c0_9 = arith.constant 0 : index
    %c0_10 = arith.constant 0 : index
    %10 = vector.load %arg6[%c0_9, %c0_10] : memref<8x32xf32, #tpu.memory_space<vmem>>, vector<1x32xf32>
    %c0_11 = arith.constant 0 : index
    %c0_12 = arith.constant 0 : index
    %c0_13 = arith.constant 0 : index
    %11 = vector.load %arg5[%c0_11, %c0_12, %c0_13] : memref<8x32x32xf32, #tpu.memory_space<vmem>>, vector<1x32x32xf32>
    %12 = vector.shape_cast %11 : vector<1x32x32xf32> to vector<32x32xf32>
    %cst_14 = arith.constant dense<0.000000e+00> : vector<8x32xf32>
    %13 = tpu.matmul %9, %12, %cst_14 {dimension_numbers = #tpu.dot_dimension_numbers<[1], [0], [0], [1], [0, 0, 1, 1], [], []>} : vector<8x32xf32>, vector<32x32xf32>, vector<8x32xf32> -> vector<8x32xf32>
    %14 = vector.broadcast %10 : vector<1x32xf32> to vector<8x32xf32>
    %15 = arith.addf %13, %14 : vector<8x32xf32>
    %cst_15 = arith.constant 0.000000e+00 : f32
    %16 = vector.broadcast %cst_15 : f32 to vector<8x32xf32>
    %17 = arith.maximumf %15, %16 : vector<8x32xf32>
    %c1 = arith.constant 1 : index
    %c0_16 = arith.constant 0 : index
    %18 = vector.load %arg6[%c1, %c0_16] : memref<8x32xf32, #tpu.memory_space<vmem>>, vector<1x32xf32>
    %c1_17 = arith.constant 1 : index
    %c0_18 = arith.constant 0 : index
    %c0_19 = arith.constant 0 : index
    %19 = vector.load %arg5[%c1_17, %c0_18, %c0_19] : memref<8x32x32xf32, #tpu.memory_space<vmem>>, vector<1x32x32xf32>
    %20 = vector.shape_cast %19 : vector<1x32x32xf32> to vector<32x32xf32>
    %cst_20 = arith.constant dense<0.000000e+00> : vector<8x32xf32>
    %21 = tpu.matmul %17, %20, %cst_20 {dimension_numbers = #tpu.dot_dimension_numbers<[1], [0], [0], [1], [0, 0, 1, 1], [], []>} : vector<8x32xf32>, vector<32x32xf32>, vector<8x32xf32> -> vector<8x32xf32>
    %22 = vector.broadcast %18 : vector<1x32xf32> to vector<8x32xf32>
    %23 = arith.addf %21, %22 : vector<8x32xf32>
    %cst_21 = arith.constant 0.000000e+00 : f32
    %24 = vector.broadcast %cst_21 : f32 to vector<8x32xf32>
    %25 = arith.maximumf %23, %24 : vector<8x32xf32>
    %c0_22 = arith.constant 0 : index
    %c0_23 = arith.constant 0 : index
    %26 = vector.load %arg8[%c0_22, %c0_23] : memref<4x4xf32, #tpu.memory_space<vmem>>, vector<1x4xf32>
    %c0_24 = arith.constant 0 : index
    %c0_25 = arith.constant 0 : index
    %c0_26 = arith.constant 0 : index
    %27 = vector.load %arg7[%c0_24, %c0_25, %c0_26] : memref<4x32x4xf32, #tpu.memory_space<vmem>>, vector<1x32x4xf32>
    %28 = vector.shape_cast %27 : vector<1x32x4xf32> to vector<32x4xf32>
    %cst_27 = arith.constant dense<0.000000e+00> : vector<8x4xf32>
    %29 = tpu.matmul %25, %28, %cst_27 {dimension_numbers = #tpu.dot_dimension_numbers<[1], [0], [0], [1], [0, 0, 1, 1], [], []>} : vector<8x32xf32>, vector<32x4xf32>, vector<8x4xf32> -> vector<8x4xf32>
    %30 = vector.broadcast %26 : vector<1x4xf32> to vector<8x4xf32>
    %31 = arith.addf %29, %30 : vector<8x4xf32>
    %32 = arith.addf %1, %31 : vector<8x4xf32>
    %c1_28 = arith.constant 1 : index
    %c0_29 = arith.constant 0 : index
    %33 = vector.load %arg4[%c1_28, %c0_29] : memref<4x32xf32, #tpu.memory_space<vmem>>, vector<1x32xf32>
    %c1_30 = arith.constant 1 : index
    %c0_31 = arith.constant 0 : index
    %c0_32 = arith.constant 0 : index
    %34 = vector.load %arg3[%c1_30, %c0_31, %c0_32] : memref<4x4x32xf32, #tpu.memory_space<vmem>>, vector<1x4x32xf32>
    %35 = vector.shape_cast %34 : vector<1x4x32xf32> to vector<4x32xf32>
    %cst_33 = arith.constant dense<0.000000e+00> : vector<8x32xf32>
    %36 = tpu.matmul %32, %35, %cst_33 {dimension_numbers = #tpu.dot_dimension_numbers<[1], [0], [0], [1], [0, 0, 1, 1], [], []>} : vector<8x4xf32>, vector<4x32xf32>, vector<8x32xf32> -> vector<8x32xf32>
    %37 = vector.broadcast %33 : vector<1x32xf32> to vector<8x32xf32>
    %38 = arith.addf %36, %37 : vector<8x32xf32>
    %cst_34 = arith.constant 0.000000e+00 : f32
    %39 = vector.broadcast %cst_34 : f32 to vector<8x32xf32>
    %40 = arith.maximumf %38, %39 : vector<8x32xf32>
    %c2 = arith.constant 2 : index
    %c0_35 = arith.constant 0 : index
    %41 = vector.load %arg6[%c2, %c0_35] : memref<8x32xf32, #tpu.memory_space<vmem>>, vector<1x32xf32>
    %c2_36 = arith.constant 2 : index
    %c0_37 = arith.constant 0 : index
    %c0_38 = arith.constant 0 : index
    %42 = vector.load %arg5[%c2_36, %c0_37, %c0_38] : memref<8x32x32xf32, #tpu.memory_space<vmem>>, vector<1x32x32xf32>
    %43 = vector.shape_cast %42 : vector<1x32x32xf32> to vector<32x32xf32>
    %cst_39 = arith.constant dense<0.000000e+00> : vector<8x32xf32>
    %44 = tpu.matmul %40, %43, %cst_39 {dimension_numbers = #tpu.dot_dimension_numbers<[1], [0], [0], [1], [0, 0, 1, 1], [], []>} : vector<8x32xf32>, vector<32x32xf32>, vector<8x32xf32> -> vector<8x32xf32>
    %45 = vector.broadcast %41 : vector<1x32xf32> to vector<8x32xf32>
    %46 = arith.addf %44, %45 : vector<8x32xf32>
    %cst_40 = arith.constant 0.000000e+00 : f32
    %47 = vector.broadcast %cst_40 : f32 to vector<8x32xf32>
    %48 = arith.maximumf %46, %47 : vector<8x32xf32>
    %c3 = arith.constant 3 : index
    %c0_41 = arith.constant 0 : index
    %49 = vector.load %arg6[%c3, %c0_41] : memref<8x32xf32, #tpu.memory_space<vmem>>, vector<1x32xf32>
    %c3_42 = arith.constant 3 : index
    %c0_43 = arith.constant 0 : index
    %c0_44 = arith.constant 0 : index
    %50 = vector.load %arg5[%c3_42, %c0_43, %c0_44] : memref<8x32x32xf32, #tpu.memory_space<vmem>>, vector<1x32x32xf32>
    %51 = vector.shape_cast %50 : vector<1x32x32xf32> to vector<32x32xf32>
    %cst_45 = arith.constant dense<0.000000e+00> : vector<8x32xf32>
    %52 = tpu.matmul %48, %51, %cst_45 {dimension_numbers = #tpu.dot_dimension_numbers<[1], [0], [0], [1], [0, 0, 1, 1], [], []>} : vector<8x32xf32>, vector<32x32xf32>, vector<8x32xf32> -> vector<8x32xf32>
    %53 = vector.broadcast %49 : vector<1x32xf32> to vector<8x32xf32>
    %54 = arith.addf %52, %53 : vector<8x32xf32>
    %cst_46 = arith.constant 0.000000e+00 : f32
    %55 = vector.broadcast %cst_46 : f32 to vector<8x32xf32>
    %56 = arith.maximumf %54, %55 : vector<8x32xf32>
    %c1_47 = arith.constant 1 : index
    %c0_48 = arith.constant 0 : index
    %57 = vector.load %arg8[%c1_47, %c0_48] : memref<4x4xf32, #tpu.memory_space<vmem>>, vector<1x4xf32>
    %c1_49 = arith.constant 1 : index
    %c0_50 = arith.constant 0 : index
    %c0_51 = arith.constant 0 : index
    %58 = vector.load %arg7[%c1_49, %c0_50, %c0_51] : memref<4x32x4xf32, #tpu.memory_space<vmem>>, vector<1x32x4xf32>
    %59 = vector.shape_cast %58 : vector<1x32x4xf32> to vector<32x4xf32>
    %cst_52 = arith.constant dense<0.000000e+00> : vector<8x4xf32>
    %60 = tpu.matmul %56, %59, %cst_52 {dimension_numbers = #tpu.dot_dimension_numbers<[1], [0], [0], [1], [0, 0, 1, 1], [], []>} : vector<8x32xf32>, vector<32x4xf32>, vector<8x4xf32> -> vector<8x4xf32>
    %61 = vector.broadcast %57 : vector<1x4xf32> to vector<8x4xf32>
    %62 = arith.addf %60, %61 : vector<8x4xf32>
    %63 = arith.addf %0, %62 : vector<8x4xf32>
    %c2_53 = arith.constant 2 : index
    %c0_54 = arith.constant 0 : index
    %64 = vector.load %arg4[%c2_53, %c0_54] : memref<4x32xf32, #tpu.memory_space<vmem>>, vector<1x32xf32>
    %c2_55 = arith.constant 2 : index
    %c0_56 = arith.constant 0 : index
    %c0_57 = arith.constant 0 : index
    %65 = vector.load %arg3[%c2_55, %c0_56, %c0_57] : memref<4x4x32xf32, #tpu.memory_space<vmem>>, vector<1x4x32xf32>
    %66 = vector.shape_cast %65 : vector<1x4x32xf32> to vector<4x32xf32>
    %cst_58 = arith.constant dense<0.000000e+00> : vector<8x32xf32>
    %67 = tpu.matmul %63, %66, %cst_58 {dimension_numbers = #tpu.dot_dimension_numbers<[1], [0], [0], [1], [0, 0, 1, 1], [], []>} : vector<8x4xf32>, vector<4x32xf32>, vector<8x32xf32> -> vector<8x32xf32>
    %68 = vector.broadcast %64 : vector<1x32xf32> to vector<8x32xf32>
    %69 = arith.addf %67, %68 : vector<8x32xf32>
    %cst_59 = arith.constant 0.000000e+00 : f32
    %70 = vector.broadcast %cst_59 : f32 to vector<8x32xf32>
    %71 = arith.maximumf %69, %70 : vector<8x32xf32>
    %c4 = arith.constant 4 : index
    %c0_60 = arith.constant 0 : index
    %72 = vector.load %arg6[%c4, %c0_60] : memref<8x32xf32, #tpu.memory_space<vmem>>, vector<1x32xf32>
    %c4_61 = arith.constant 4 : index
    %c0_62 = arith.constant 0 : index
    %c0_63 = arith.constant 0 : index
    %73 = vector.load %arg5[%c4_61, %c0_62, %c0_63] : memref<8x32x32xf32, #tpu.memory_space<vmem>>, vector<1x32x32xf32>
    %74 = vector.shape_cast %73 : vector<1x32x32xf32> to vector<32x32xf32>
    %cst_64 = arith.constant dense<0.000000e+00> : vector<8x32xf32>
    %75 = tpu.matmul %71, %74, %cst_64 {dimension_numbers = #tpu.dot_dimension_numbers<[1], [0], [0], [1], [0, 0, 1, 1], [], []>} : vector<8x32xf32>, vector<32x32xf32>, vector<8x32xf32> -> vector<8x32xf32>
    %76 = vector.broadcast %72 : vector<1x32xf32> to vector<8x32xf32>
    %77 = arith.addf %75, %76 : vector<8x32xf32>
    %cst_65 = arith.constant 0.000000e+00 : f32
    %78 = vector.broadcast %cst_65 : f32 to vector<8x32xf32>
    %79 = arith.maximumf %77, %78 : vector<8x32xf32>
    %c5 = arith.constant 5 : index
    %c0_66 = arith.constant 0 : index
    %80 = vector.load %arg6[%c5, %c0_66] : memref<8x32xf32, #tpu.memory_space<vmem>>, vector<1x32xf32>
    %c5_67 = arith.constant 5 : index
    %c0_68 = arith.constant 0 : index
    %c0_69 = arith.constant 0 : index
    %81 = vector.load %arg5[%c5_67, %c0_68, %c0_69] : memref<8x32x32xf32, #tpu.memory_space<vmem>>, vector<1x32x32xf32>
    %82 = vector.shape_cast %81 : vector<1x32x32xf32> to vector<32x32xf32>
    %cst_70 = arith.constant dense<0.000000e+00> : vector<8x32xf32>
    %83 = tpu.matmul %79, %82, %cst_70 {dimension_numbers = #tpu.dot_dimension_numbers<[1], [0], [0], [1], [0, 0, 1, 1], [], []>} : vector<8x32xf32>, vector<32x32xf32>, vector<8x32xf32> -> vector<8x32xf32>
    %84 = vector.broadcast %80 : vector<1x32xf32> to vector<8x32xf32>
    %85 = arith.addf %83, %84 : vector<8x32xf32>
    %cst_71 = arith.constant 0.000000e+00 : f32
    %86 = vector.broadcast %cst_71 : f32 to vector<8x32xf32>
    %87 = arith.maximumf %85, %86 : vector<8x32xf32>
    %c2_72 = arith.constant 2 : index
    %c0_73 = arith.constant 0 : index
    %88 = vector.load %arg8[%c2_72, %c0_73] : memref<4x4xf32, #tpu.memory_space<vmem>>, vector<1x4xf32>
    %c2_74 = arith.constant 2 : index
    %c0_75 = arith.constant 0 : index
    %c0_76 = arith.constant 0 : index
    %89 = vector.load %arg7[%c2_74, %c0_75, %c0_76] : memref<4x32x4xf32, #tpu.memory_space<vmem>>, vector<1x32x4xf32>
    %90 = vector.shape_cast %89 : vector<1x32x4xf32> to vector<32x4xf32>
    %cst_77 = arith.constant dense<0.000000e+00> : vector<8x4xf32>
    %91 = tpu.matmul %87, %90, %cst_77 {dimension_numbers = #tpu.dot_dimension_numbers<[1], [0], [0], [1], [0, 0, 1, 1], [], []>} : vector<8x32xf32>, vector<32x4xf32>, vector<8x4xf32> -> vector<8x4xf32>
    %92 = vector.broadcast %88 : vector<1x4xf32> to vector<8x4xf32>
    %93 = arith.addf %91, %92 : vector<8x4xf32>
    %94 = arith.addf %32, %93 : vector<8x4xf32>
    %c3_78 = arith.constant 3 : index
    %c0_79 = arith.constant 0 : index
    %95 = vector.load %arg4[%c3_78, %c0_79] : memref<4x32xf32, #tpu.memory_space<vmem>>, vector<1x32xf32>
    %c3_80 = arith.constant 3 : index
    %c0_81 = arith.constant 0 : index
    %c0_82 = arith.constant 0 : index
    %96 = vector.load %arg3[%c3_80, %c0_81, %c0_82] : memref<4x4x32xf32, #tpu.memory_space<vmem>>, vector<1x4x32xf32>
    %97 = vector.shape_cast %96 : vector<1x4x32xf32> to vector<4x32xf32>
    %cst_83 = arith.constant dense<0.000000e+00> : vector<8x32xf32>
    %98 = tpu.matmul %94, %97, %cst_83 {dimension_numbers = #tpu.dot_dimension_numbers<[1], [0], [0], [1], [0, 0, 1, 1], [], []>} : vector<8x4xf32>, vector<4x32xf32>, vector<8x32xf32> -> vector<8x32xf32>
    %99 = vector.broadcast %95 : vector<1x32xf32> to vector<8x32xf32>
    %100 = arith.addf %98, %99 : vector<8x32xf32>
    %cst_84 = arith.constant 0.000000e+00 : f32
    %101 = vector.broadcast %cst_84 : f32 to vector<8x32xf32>
    %102 = arith.maximumf %100, %101 : vector<8x32xf32>
    %c6 = arith.constant 6 : index
    %c0_85 = arith.constant 0 : index
    %103 = vector.load %arg6[%c6, %c0_85] : memref<8x32xf32, #tpu.memory_space<vmem>>, vector<1x32xf32>
    %c6_86 = arith.constant 6 : index
    %c0_87 = arith.constant 0 : index
    %c0_88 = arith.constant 0 : index
    %104 = vector.load %arg5[%c6_86, %c0_87, %c0_88] : memref<8x32x32xf32, #tpu.memory_space<vmem>>, vector<1x32x32xf32>
    %105 = vector.shape_cast %104 : vector<1x32x32xf32> to vector<32x32xf32>
    %cst_89 = arith.constant dense<0.000000e+00> : vector<8x32xf32>
    %106 = tpu.matmul %102, %105, %cst_89 {dimension_numbers = #tpu.dot_dimension_numbers<[1], [0], [0], [1], [0, 0, 1, 1], [], []>} : vector<8x32xf32>, vector<32x32xf32>, vector<8x32xf32> -> vector<8x32xf32>
    %107 = vector.broadcast %103 : vector<1x32xf32> to vector<8x32xf32>
    %108 = arith.addf %106, %107 : vector<8x32xf32>
    %cst_90 = arith.constant 0.000000e+00 : f32
    %109 = vector.broadcast %cst_90 : f32 to vector<8x32xf32>
    %110 = arith.maximumf %108, %109 : vector<8x32xf32>
    %c7 = arith.constant 7 : index
    %c0_91 = arith.constant 0 : index
    %111 = vector.load %arg6[%c7, %c0_91] : memref<8x32xf32, #tpu.memory_space<vmem>>, vector<1x32xf32>
    %c7_92 = arith.constant 7 : index
    %c0_93 = arith.constant 0 : index
    %c0_94 = arith.constant 0 : index
    %112 = vector.load %arg5[%c7_92, %c0_93, %c0_94] : memref<8x32x32xf32, #tpu.memory_space<vmem>>, vector<1x32x32xf32>
    %113 = vector.shape_cast %112 : vector<1x32x32xf32> to vector<32x32xf32>
    %cst_95 = arith.constant dense<0.000000e+00> : vector<8x32xf32>
    %114 = tpu.matmul %110, %113, %cst_95 {dimension_numbers = #tpu.dot_dimension_numbers<[1], [0], [0], [1], [0, 0, 1, 1], [], []>} : vector<8x32xf32>, vector<32x32xf32>, vector<8x32xf32> -> vector<8x32xf32>
    %115 = vector.broadcast %111 : vector<1x32xf32> to vector<8x32xf32>
    %116 = arith.addf %114, %115 : vector<8x32xf32>
    %cst_96 = arith.constant 0.000000e+00 : f32
    %117 = vector.broadcast %cst_96 : f32 to vector<8x32xf32>
    %118 = arith.maximumf %116, %117 : vector<8x32xf32>
    %c3_97 = arith.constant 3 : index
    %c0_98 = arith.constant 0 : index
    %119 = vector.load %arg8[%c3_97, %c0_98] : memref<4x4xf32, #tpu.memory_space<vmem>>, vector<1x4xf32>
    %c3_99 = arith.constant 3 : index
    %c0_100 = arith.constant 0 : index
    %c0_101 = arith.constant 0 : index
    %120 = vector.load %arg7[%c3_99, %c0_100, %c0_101] : memref<4x32x4xf32, #tpu.memory_space<vmem>>, vector<1x32x4xf32>
    %121 = vector.shape_cast %120 : vector<1x32x4xf32> to vector<32x4xf32>
    %cst_102 = arith.constant dense<0.000000e+00> : vector<8x4xf32>
    %122 = tpu.matmul %118, %121, %cst_102 {dimension_numbers = #tpu.dot_dimension_numbers<[1], [0], [0], [1], [0, 0, 1, 1], [], []>} : vector<8x32xf32>, vector<32x4xf32>, vector<8x4xf32> -> vector<8x4xf32>
    %123 = vector.broadcast %119 : vector<1x4xf32> to vector<8x4xf32>
    %124 = arith.addf %122, %123 : vector<8x4xf32>
    %125 = arith.addf %63, %124 : vector<8x4xf32>
    %c0_103 = arith.constant 0 : index
    %c0_104 = arith.constant 0 : index
    %126 = vector.load %arg9[%c0_103, %c0_104] : memref<8x4xf32, #tpu.memory_space<vmem>>, vector<8x4xf32>
    tpu.vector_store %arg9[%c0_103, %c0_104], %125 {strides = array<i32>} : memref<8x4xf32, #tpu.memory_space<vmem>>, vector<8x4xf32>,
    %c0_105 = arith.constant 0 : index
    %c0_106 = arith.constant 0 : index
    %127 = vector.load %arg10[%c0_105, %c0_106] : memref<8x4xf32, #tpu.memory_space<vmem>>, vector<8x4xf32>
    tpu.vector_store %arg10[%c0_105, %c0_106], %94 {strides = array<i32>} : memref<8x4xf32, #tpu.memory_space<vmem>>, vector<8x4xf32>,
    return
  }
  func.func @transform_0(%arg0: i32) -> (i32, i32) {
    %c0_i32 = arith.constant 0 : i32
    %c0_i32_0 = arith.constant 0 : i32
    return %arg0, %c0_i32 : i32, i32
  }
  func.func @transform_1(%arg0: i32) -> (i32, i32) {
    %c0_i32 = arith.constant 0 : i32
    %c0_i32_0 = arith.constant 0 : i32
    return %arg0, %c0_i32 : i32, i32
  }
  func.func @transform_2(%arg0: i32) -> (i32, i32, i32) {
    %c0_i32 = arith.constant 0 : i32
    %c0_i32_0 = arith.constant 0 : i32
    %c0_i32_1 = arith.constant 0 : i32
    %c0_i32_2 = arith.constant 0 : i32
    return %c0_i32, %c0_i32_0, %c0_i32_1 : i32, i32, i32
  }
  func.func @transform_3(%arg0: i32) -> (i32, i32) {
    %c0_i32 = arith.constant 0 : i32
    %c0_i32_0 = arith.constant 0 : i32
    %c0_i32_1 = arith.constant 0 : i32
    return %c0_i32, %c0_i32_0 : i32, i32
  }
  func.func @transform_4(%arg0: i32) -> (i32, i32, i32) {
    %c0_i32 = arith.constant 0 : i32
    %c0_i32_0 = arith.constant 0 : i32
    %c0_i32_1 = arith.constant 0 : i32
    %c0_i32_2 = arith.constant 0 : i32
    return %c0_i32, %c0_i32_0, %c0_i32_1 : i32, i32, i32
  }
  func.func @transform_5(%arg0: i32) -> (i32, i32) {
    %c0_i32 = arith.constant 0 : i32
    %c0_i32_0 = arith.constant 0 : i32
    %c0_i32_1 = arith.constant 0 : i32
    return %c0_i32, %c0_i32_0 : i32, i32
  }
  func.func @transform_6(%arg0: i32) -> (i32, i32, i32) {
    %c0_i32 = arith.constant 0 : i32
    %c0_i32_0 = arith.constant 0 : i32
    %c0_i32_1 = arith.constant 0 : i32
    %c0_i32_2 = arith.constant 0 : i32
    return %c0_i32, %c0_i32_0, %c0_i32_1 : i32, i32, i32
  }
  func.func @transform_7(%arg0: i32) -> (i32, i32) {
    %c0_i32 = arith.constant 0 : i32
    %c0_i32_0 = arith.constant 0 : i32
    %c0_i32_1 = arith.constant 0 : i32
    return %c0_i32, %c0_i32_0 : i32, i32
  }
  func.func @transform_8(%arg0: i32) -> (i32, i32) {
    %c0_i32 = arith.constant 0 : i32
    %c0_i32_0 = arith.constant 0 : i32
    return %arg0, %c0_i32 : i32, i32
  }
  func.func @transform_9(%arg0: i32) -> (i32, i32) {
    %c0_i32 = arith.constant 0 : i32
    %c0_i32_0 = arith.constant 0 : i32
    return %arg0, %c0_i32 : i32, i32
  }
}

module attributes {stable_mosaic.version = 11 : i64} {
  func.func @nice_kernel_split(%arg0: i32, %arg1: memref<8x4xf32, #tpu.memory_space<vmem>>, %arg2: memref<8x4xf32, #tpu.memory_space<vmem>>, %arg3: memref<4x4x32xf32, #tpu.memory_space<vmem>>, %arg4: memref<4x32xf32, #tpu.memory_space<vmem>>, %arg5: memref<8x32x32xf32, #tpu.memory_space<vmem>>, %arg6: memref<8x32xf32, #tpu.memory_space<vmem>>, %arg7: memref<4x32x4xf32, #tpu.memory_space<vmem>>, %arg8: memref<4x4xf32, #tpu.memory_space<vmem>>, %arg9: memref<8x4xf32, #tpu.memory_space<vmem>>, %arg10: memref<8x4xf32, #tpu.memory_space<vmem>>) attributes {dimension_semantics = [#tpu.dimension_semantics<parallel>], iteration_bounds = array<i64: 2>, scalar_prefetch = 0 : i64, scratch_operands = 0 : i64, tpu.core_type = #tpu.core_type<tc>, window_params = [{transform_indices = @transform_0, window_bounds = array<i64: 8, 4>}, {transform_indices = @transform_1, window_bounds = array<i64: 8, 4>}, {pipeline_mode = #tpu.pipeline_mode<synchronous>, transform_indices = @transform_2, window_bounds = array<i64: 4, 4, 32>}, {pipeline_mode = #tpu.pipeline_mode<synchronous>, transform_indices = @transform_3, window_bounds = array<i64: 4, 32>}, {pipeline_mode = #tpu.pipeline_mode<synchronous>, transform_indices = @transform_4, window_bounds = array<i64: 8, 32, 32>}, {pipeline_mode = #tpu.pipeline_mode<synchronous>, transform_indices = @transform_5, window_bounds = array<i64: 8, 32>}, {pipeline_mode = #tpu.pipeline_mode<synchronous>, transform_indices = @transform_6, window_bounds = array<i64: 4, 32, 4>}, {pipeline_mode = #tpu.pipeline_mode<synchronous>, transform_indices = @transform_7, window_bounds = array<i64: 4, 4>}, {transform_indices = @transform_8, window_bounds = array<i64: 8, 4>}, {transform_indices = @transform_9, window_bounds = array<i64: 8, 4>}]} {
    %c0 = arith.constant 0 : index
    %c0_0 = arith.constant 0 : index
    %0 = vector.load %arg1[%c0, %c0_0] : memref<8x4xf32, #tpu.memory_space<vmem>>, vector<8x4xf32>
    %c0_1 = arith.constant 0 : index
    %c0_2 = arith.constant 0 : index
    %1 = vector.load %arg2[%c0_1, %c0_2] : memref<8x4xf32, #tpu.memory_space<vmem>>, vector<8x4xf32>
    %c0_3 = arith.constant 0 : index
    %c0_4 = arith.constant 0 : index
    %2 = vector.load %arg4[%c0_3, %c0_4] : memref<4x32xf32, #tpu.memory_space<vmem>>, vector<1x32xf32>
    %c0_5 = arith.constant 0 : index
    %c0_6 = arith.constant 0 : index
    %c0_7 = arith.constant 0 : index
    %3 = vector.load %arg3[%c0_5, %c0_6, %c0_7] : memref<4x4x32xf32, #tpu.memory_space<vmem>>, vector<1x4x32xf32>
    %4 = vector.shape_cast %3 : vector<1x4x32xf32> to vector<4x32xf32>
    %cst = arith.constant dense<0.000000e+00> : vector<8x32xf32>
    %5 = tpu.matmul %0, %4, %cst {dimension_numbers = #tpu.dot_dimension_numbers<[1], [0], [0], [1], [0, 0, 1, 1], [], []>} : vector<8x4xf32>, vector<4x32xf32>, vector<8x32xf32> -> vector<8x32xf32>
    %6 = vector.broadcast %2 : vector<1x32xf32> to vector<8x32xf32>
    %7 = arith.addf %5, %6 : vector<8x32xf32>
    %cst_8 = arith.constant 0.000000e+00 : f32
    %8 = vector.broadcast %cst_8 : f32 to vector<8x32xf32>
    %9 = arith.maximumf %7, %8 : vector<8x32xf32>
    %c0_9 = arith.constant 0 : index
    %c0_10 = arith.constant 0 : index
    %10 = vector.load %arg6[%c0_9, %c0_10] : memref<8x32xf32, #tpu.memory_space<vmem>>, vector<1x32xf32>
    %c0_11 = arith.constant 0 : index
    %c0_12 = arith.constant 0 : index
    %c0_13 = arith.constant 0 : index
    %11 = vector.load %arg5[%c0_11, %c0_12, %c0_13] : memref<8x32x32xf32, #tpu.memory_space<vmem>>, vector<1x32x32xf32>
    %12 = vector.shape_cast %11 : vector<1x32x32xf32> to vector<32x32xf32>
    %cst_14 = arith.constant dense<0.000000e+00> : vector<8x32xf32>
    %13 = tpu.matmul %9, %12, %cst_14 {dimension_numbers = #tpu.dot_dimension_numbers<[1], [0], [0], [1], [0, 0, 1, 1], [], []>} : vector<8x32xf32>, vector<32x32xf32>, vector<8x32xf32> -> vector<8x32xf32>
    %14 = vector.broadcast %10 : vector<1x32xf32> to vector<8x32xf32>
    %15 = arith.addf %13, %14 : vector<8x32xf32>
    %cst_15 = arith.constant 0.000000e+00 : f32
    %16 = vector.broadcast %cst_15 : f32 to vector<8x32xf32>
    %17 = arith.maximumf %15, %16 : vector<8x32xf32>
    %c1 = arith.constant 1 : index
    %c0_16 = arith.constant 0 : index
    %18 = vector.load %arg6[%c1, %c0_16] : memref<8x32xf32, #tpu.memory_space<vmem>>, vector<1x32xf32>
    %c1_17 = arith.constant 1 : index
    %c0_18 = arith.constant 0 : index
    %c0_19 = arith.constant 0 : index
    %19 = vector.load %arg5[%c1_17, %c0_18, %c0_19] : memref<8x32x32xf32, #tpu.memory_space<vmem>>, vector<1x32x32xf32>
    %20 = vector.shape_cast %19 : vector<1x32x32xf32> to vector<32x32xf32>
    %cst_20 = arith.constant dense<0.000000e+00> : vector<8x32xf32>
    %21 = tpu.matmul %17, %20, %cst_20 {dimension_numbers = #tpu.dot_dimension_numbers<[1], [0], [0], [1], [0, 0, 1, 1], [], []>} : vector<8x32xf32>, vector<32x32xf32>, vector<8x32xf32> -> vector<8x32xf32>
    %22 = vector.broadcast %18 : vector<1x32xf32> to vector<8x32xf32>
    %23 = arith.addf %21, %22 : vector<8x32xf32>
    %cst_21 = arith.constant 0.000000e+00 : f32
    %24 = vector.broadcast %cst_21 : f32 to vector<8x32xf32>
    %25 = arith.maximumf %23, %24 : vector<8x32xf32>
    %c0_22 = arith.constant 0 : index
    %c0_23 = arith.constant 0 : index
    %26 = vector.load %arg8[%c0_22, %c0_23] : memref<4x4xf32, #tpu.memory_space<vmem>>, vector<1x4xf32>
    %c0_24 = arith.constant 0 : index
    %c0_25 = arith.constant 0 : index
    %c0_26 = arith.constant 0 : index
    %27 = vector.load %arg7[%c0_24, %c0_25, %c0_26] : memref<4x32x4xf32, #tpu.memory_space<vmem>>, vector<1x32x4xf32>
    %28 = vector.shape_cast %27 : vector<1x32x4xf32> to vector<32x4xf32>
    %cst_27 = arith.constant dense<0.000000e+00> : vector<8x4xf32>
    %29 = tpu.matmul %25, %28, %cst_27 {dimension_numbers = #tpu.dot_dimension_numbers<[1], [0], [0], [1], [0, 0, 1, 1], [], []>} : vector<8x32xf32>, vector<32x4xf32>, vector<8x4xf32> -> vector<8x4xf32>
    %30 = vector.broadcast %26 : vector<1x4xf32> to vector<8x4xf32>
    %31 = arith.addf %29, %30 : vector<8x4xf32>
    %32 = arith.addf %1, %31 : vector<8x4xf32>
    %c1_28 = arith.constant 1 : index
    %c0_29 = arith.constant 0 : index
    %33 = vector.load %arg4[%c1_28, %c0_29] : memref<4x32xf32, #tpu.memory_space<vmem>>, vector<1x32xf32>
    %c1_30 = arith.constant 1 : index
    %c0_31 = arith.constant 0 : index
    %c0_32 = arith.constant 0 : index
    %34 = vector.load %arg3[%c1_30, %c0_31, %c0_32] : memref<4x4x32xf32, #tpu.memory_space<vmem>>, vector<1x4x32xf32>
    %35 = vector.shape_cast %34 : vector<1x4x32xf32> to vector<4x32xf32>
    %cst_33 = arith.constant dense<0.000000e+00> : vector<8x32xf32>
    %36 = tpu.matmul %32, %35, %cst_33 {dimension_numbers = #tpu.dot_dimension_numbers<[1], [0], [0], [1], [0, 0, 1, 1], [], []>} : vector<8x4xf32>, vector<4x32xf32>, vector<8x32xf32> -> vector<8x32xf32>
    %37 = vector.broadcast %33 : vector<1x32xf32> to vector<8x32xf32>
    %38 = arith.addf %36, %37 : vector<8x32xf32>
    %cst_34 = arith.constant 0.000000e+00 : f32
    %39 = vector.broadcast %cst_34 : f32 to vector<8x32xf32>
    %40 = arith.maximumf %38, %39 : vector<8x32xf32>
    %c2 = arith.constant 2 : index
    %c0_35 = arith.constant 0 : index
    %41 = vector.load %arg6[%c2, %c0_35] : memref<8x32xf32, #tpu.memory_space<vmem>>, vector<1x32xf32>
    %c2_36 = arith.constant 2 : index
    %c0_37 = arith.constant 0 : index
    %c0_38 = arith.constant 0 : index
    %42 = vector.load %arg5[%c2_36, %c0_37, %c0_38] : memref<8x32x32xf32, #tpu.memory_space<vmem>>, vector<1x32x32xf32>
    %43 = vector.shape_cast %42 : vector<1x32x32xf32> to vector<32x32xf32>
    %cst_39 = arith.constant dense<0.000000e+00> : vector<8x32xf32>
    %44 = tpu.matmul %40, %43, %cst_39 {dimension_numbers = #tpu.dot_dimension_numbers<[1], [0], [0], [1], [0, 0, 1, 1], [], []>} : vector<8x32xf32>, vector<32x32xf32>, vector<8x32xf32> -> vector<8x32xf32>
    %45 = vector.broadcast %41 : vector<1x32xf32> to vector<8x32xf32>
    %46 = arith.addf %44, %45 : vector<8x32xf32>
    %cst_40 = arith.constant 0.000000e+00 : f32
    %47 = vector.broadcast %cst_40 : f32 to vector<8x32xf32>
    %48 = arith.maximumf %46, %47 : vector<8x32xf32>
    %c3 = arith.constant 3 : index
    %c0_41 = arith.constant 0 : index
    %49 = vector.load %arg6[%c3, %c0_41] : memref<8x32xf32, #tpu.memory_space<vmem>>, vector<1x32xf32>
    %c3_42 = arith.constant 3 : index
    %c0_43 = arith.constant 0 : index
    %c0_44 = arith.constant 0 : index
    %50 = vector.load %arg5[%c3_42, %c0_43, %c0_44] : memref<8x32x32xf32, #tpu.memory_space<vmem>>, vector<1x32x32xf32>
    %51 = vector.shape_cast %50 : vector<1x32x32xf32> to vector<32x32xf32>
    %cst_45 = arith.constant dense<0.000000e+00> : vector<8x32xf32>
    %52 = tpu.matmul %48, %51, %cst_45 {dimension_numbers = #tpu.dot_dimension_numbers<[1], [0], [0], [1], [0, 0, 1, 1], [], []>} : vector<8x32xf32>, vector<32x32xf32>, vector<8x32xf32> -> vector<8x32xf32>
    %53 = vector.broadcast %49 : vector<1x32xf32> to vector<8x32xf32>
    %54 = arith.addf %52, %53 : vector<8x32xf32>
    %cst_46 = arith.constant 0.000000e+00 : f32
    %55 = vector.broadcast %cst_46 : f32 to vector<8x32xf32>
    %56 = arith.maximumf %54, %55 : vector<8x32xf32>
    %c1_47 = arith.constant 1 : index
    %c0_48 = arith.constant 0 : index
    %57 = vector.load %arg8[%c1_47, %c0_48] : memref<4x4xf32, #tpu.memory_space<vmem>>, vector<1x4xf32>
    %c1_49 = arith.constant 1 : index
    %c0_50 = arith.constant 0 : index
    %c0_51 = arith.constant 0 : index
    %58 = vector.load %arg7[%c1_49, %c0_50, %c0_51] : memref<4x32x4xf32, #tpu.memory_space<vmem>>, vector<1x32x4xf32>
    %59 = vector.shape_cast %58 : vector<1x32x4xf32> to vector<32x4xf32>
    %cst_52 = arith.constant dense<0.000000e+00> : vector<8x4xf32>
    %60 = tpu.matmul %56, %59, %cst_52 {dimension_numbers = #tpu.dot_dimension_numbers<[1], [0], [0], [1], [0, 0, 1, 1], [], []>} : vector<8x32xf32>, vector<32x4xf32>, vector<8x4xf32> -> vector<8x4xf32>
    %61 = vector.broadcast %57 : vector<1x4xf32> to vector<8x4xf32>
    %62 = arith.addf %60, %61 : vector<8x4xf32>
    %63 = arith.addf %0, %62 : vector<8x4xf32>
    %c2_53 = arith.constant 2 : index
    %c0_54 = arith.constant 0 : index
    %64 = vector.load %arg4[%c2_53, %c0_54] : memref<4x32xf32, #tpu.memory_space<vmem>>, vector<1x32xf32>
    %c2_55 = arith.constant 2 : index
    %c0_56 = arith.constant 0 : index
    %c0_57 = arith.constant 0 : index
    %65 = vector.load %arg3[%c2_55, %c0_56, %c0_57] : memref<4x4x32xf32, #tpu.memory_space<vmem>>, vector<1x4x32xf32>
    %66 = vector.shape_cast %65 : vector<1x4x32xf32> to vector<4x32xf32>
    %cst_58 = arith.constant dense<0.000000e+00> : vector<8x32xf32>
    %67 = tpu.matmul %63, %66, %cst_58 {dimension_numbers = #tpu.dot_dimension_numbers<[1], [0], [0], [1], [0, 0, 1, 1], [], []>} : vector<8x4xf32>, vector<4x32xf32>, vector<8x32xf32> -> vector<8x32xf32>
    %68 = vector.broadcast %64 : vector<1x32xf32> to vector<8x32xf32>
    %69 = arith.addf %67, %68 : vector<8x32xf32>
    %cst_59 = arith.constant 0.000000e+00 : f32
    %70 = vector.broadcast %cst_59 : f32 to vector<8x32xf32>
    %71 = arith.maximumf %69, %70 : vector<8x32xf32>
    %c4 = arith.constant 4 : index
    %c0_60 = arith.constant 0 : index
    %72 = vector.load %arg6[%c4, %c0_60] : memref<8x32xf32, #tpu.memory_space<vmem>>, vector<1x32xf32>
    %c4_61 = arith.constant 4 : index
    %c0_62 = arith.constant 0 : index
    %c0_63 = arith.constant 0 : index
    %73 = vector.load %arg5[%c4_61, %c0_62, %c0_63] : memref<8x32x32xf32, #tpu.memory_space<vmem>>, vector<1x32x32xf32>
    %74 = vector.shape_cast %73 : vector<1x32x32xf32> to vector<32x32xf32>
    %cst_64 = arith.constant dense<0.000000e+00> : vector<8x32xf32>
    %75 = tpu.matmul %71, %74, %cst_64 {dimension_numbers = #tpu.dot_dimension_numbers<[1], [0], [0], [1], [0, 0, 1, 1], [], []>} : vector<8x32xf32>, vector<32x32xf32>, vector<8x32xf32> -> vector<8x32xf32>
    %76 = vector.broadcast %72 : vector<1x32xf32> to vector<8x32xf32>
    %77 = arith.addf %75, %76 : vector<8x32xf32>
    %cst_65 = arith.constant 0.000000e+00 : f32
    %78 = vector.broadcast %cst_65 : f32 to vector<8x32xf32>
    %79 = arith.maximumf %77, %78 : vector<8x32xf32>
    %c5 = arith.constant 5 : index
    %c0_66 = arith.constant 0 : index
    %80 = vector.load %arg6[%c5, %c0_66] : memref<8x32xf32, #tpu.memory_space<vmem>>, vector<1x32xf32>
    %c5_67 = arith.constant 5 : index
    %c0_68 = arith.constant 0 : index
    %c0_69 = arith.constant 0 : index
    %81 = vector.load %arg5[%c5_67, %c0_68, %c0_69] : memref<8x32x32xf32, #tpu.memory_space<vmem>>, vector<1x32x32xf32>
    %82 = vector.shape_cast %81 : vector<1x32x32xf32> to vector<32x32xf32>
    %cst_70 = arith.constant dense<0.000000e+00> : vector<8x32xf32>
    %83 = tpu.matmul %79, %82, %cst_70 {dimension_numbers = #tpu.dot_dimension_numbers<[1], [0], [0], [1], [0, 0, 1, 1], [], []>} : vector<8x32xf32>, vector<32x32xf32>, vector<8x32xf32> -> vector<8x32xf32>
    %84 = vector.broadcast %80 : vector<1x32xf32> to vector<8x32xf32>
    %85 = arith.addf %83, %84 : vector<8x32xf32>
    %cst_71 = arith.constant 0.000000e+00 : f32
    %86 = vector.broadcast %cst_71 : f32 to vector<8x32xf32>
    %87 = arith.maximumf %85, %86 : vector<8x32xf32>
    %c2_72 = arith.constant 2 : index
    %c0_73 = arith.constant 0 : index
    %88 = vector.load %arg8[%c2_72, %c0_73] : memref<4x4xf32, #tpu.memory_space<vmem>>, vector<1x4xf32>
    %c2_74 = arith.constant 2 : index
    %c0_75 = arith.constant 0 : index
    %c0_76 = arith.constant 0 : index
    %89 = vector.load %arg7[%c2_74, %c0_75, %c0_76] : memref<4x32x4xf32, #tpu.memory_space<vmem>>, vector<1x32x4xf32>
    %90 = vector.shape_cast %89 : vector<1x32x4xf32> to vector<32x4xf32>
    %cst_77 = arith.constant dense<0.000000e+00> : vector<8x4xf32>
    %91 = tpu.matmul %87, %90, %cst_77 {dimension_numbers = #tpu.dot_dimension_numbers<[1], [0], [0], [1], [0, 0, 1, 1], [], []>} : vector<8x32xf32>, vector<32x4xf32>, vector<8x4xf32> -> vector<8x4xf32>
    %92 = vector.broadcast %88 : vector<1x4xf32> to vector<8x4xf32>
    %93 = arith.addf %91, %92 : vector<8x4xf32>
    %94 = arith.addf %32, %93 : vector<8x4xf32>
    %c3_78 = arith.constant 3 : index
    %c0_79 = arith.constant 0 : index
    %95 = vector.load %arg4[%c3_78, %c0_79] : memref<4x32xf32, #tpu.memory_space<vmem>>, vector<1x32xf32>
    %c3_80 = arith.constant 3 : index
    %c0_81 = arith.constant 0 : index
    %c0_82 = arith.constant 0 : index
    %96 = vector.load %arg3[%c3_80, %c0_81, %c0_82] : memref<4x4x32xf32, #tpu.memory_space<vmem>>, vector<1x4x32xf32>
    %97 = vector.shape_cast %96 : vector<1x4x32xf32> to vector<4x32xf32>
    %cst_83 = arith.constant dense<0.000000e+00> : vector<8x32xf32>
    %98 = tpu.matmul %94, %97, %cst_83 {dimension_numbers = #tpu.dot_dimension_numbers<[1], [0], [0], [1], [0, 0, 1, 1], [], []>} : vector<8x4xf32>, vector<4x32xf32>, vector<8x32xf32> -> vector<8x32xf32>
    %99 = vector.broadcast %95 : vector<1x32xf32> to vector<8x32xf32>
    %100 = arith.addf %98, %99 : vector<8x32xf32>
    %cst_84 = arith.constant 0.000000e+00 : f32
    %101 = vector.broadcast %cst_84 : f32 to vector<8x32xf32>
    %102 = arith.maximumf %100, %101 : vector<8x32xf32>
    %c6 = arith.constant 6 : index
    %c0_85 = arith.constant 0 : index
    %103 = vector.load %arg6[%c6, %c0_85] : memref<8x32xf32, #tpu.memory_space<vmem>>, vector<1x32xf32>
    %c6_86 = arith.constant 6 : index
    %c0_87 = arith.constant 0 : index
    %c0_88 = arith.constant 0 : index
    %104 = vector.load %arg5[%c6_86, %c0_87, %c0_88] : memref<8x32x32xf32, #tpu.memory_space<vmem>>, vector<1x32x32xf32>
    %105 = vector.shape_cast %104 : vector<1x32x32xf32> to vector<32x32xf32>
    %cst_89 = arith.constant dense<0.000000e+00> : vector<8x32xf32>
    %106 = tpu.matmul %102, %105, %cst_89 {dimension_numbers = #tpu.dot_dimension_numbers<[1], [0], [0], [1], [0, 0, 1, 1], [], []>} : vector<8x32xf32>, vector<32x32xf32>, vector<8x32xf32> -> vector<8x32xf32>
    %107 = vector.broadcast %103 : vector<1x32xf32> to vector<8x32xf32>
    %108 = arith.addf %106, %107 : vector<8x32xf32>
    %cst_90 = arith.constant 0.000000e+00 : f32
    %109 = vector.broadcast %cst_90 : f32 to vector<8x32xf32>
    %110 = arith.maximumf %108, %109 : vector<8x32xf32>
    %c7 = arith.constant 7 : index
    %c0_91 = arith.constant 0 : index
    %111 = vector.load %arg6[%c7, %c0_91] : memref<8x32xf32, #tpu.memory_space<vmem>>, vector<1x32xf32>
    %c7_92 = arith.constant 7 : index
    %c0_93 = arith.constant 0 : index
    %c0_94 = arith.constant 0 : index
    %112 = vector.load %arg5[%c7_92, %c0_93, %c0_94] : memref<8x32x32xf32, #tpu.memory_space<vmem>>, vector<1x32x32xf32>
    %113 = vector.shape_cast %112 : vector<1x32x32xf32> to vector<32x32xf32>
    %cst_95 = arith.constant dense<0.000000e+00> : vector<8x32xf32>
    %114 = tpu.matmul %110, %113, %cst_95 {dimension_numbers = #tpu.dot_dimension_numbers<[1], [0], [0], [1], [0, 0, 1, 1], [], []>} : vector<8x32xf32>, vector<32x32xf32>, vector<8x32xf32> -> vector<8x32xf32>
    %115 = vector.broadcast %111 : vector<1x32xf32> to vector<8x32xf32>
    %116 = arith.addf %114, %115 : vector<8x32xf32>
    %cst_96 = arith.constant 0.000000e+00 : f32
    %117 = vector.broadcast %cst_96 : f32 to vector<8x32xf32>
    %118 = arith.maximumf %116, %117 : vector<8x32xf32>
    %c3_97 = arith.constant 3 : index
    %c0_98 = arith.constant 0 : index
    %119 = vector.load %arg8[%c3_97, %c0_98] : memref<4x4xf32, #tpu.memory_space<vmem>>, vector<1x4xf32>
    %c3_99 = arith.constant 3 : index
    %c0_100 = arith.constant 0 : index
    %c0_101 = arith.constant 0 : index
    %120 = vector.load %arg7[%c3_99, %c0_100, %c0_101] : memref<4x32x4xf32, #tpu.memory_space<vmem>>, vector<1x32x4xf32>
    %121 = vector.shape_cast %120 : vector<1x32x4xf32> to vector<32x4xf32>
    %cst_102 = arith.constant dense<0.000000e+00> : vector<8x4xf32>
    %122 = tpu.matmul %118, %121, %cst_102 {dimension_numbers = #tpu.dot_dimension_numbers<[1], [0], [0], [1], [0, 0, 1, 1], [], []>} : vector<8x32xf32>, vector<32x4xf32>, vector<8x4xf32> -> vector<8x4xf32>
    %123 = vector.broadcast %119 : vector<1x4xf32> to vector<8x4xf32>
    %124 = arith.addf %122, %123 : vector<8x4xf32>
    %125 = arith.addf %63, %124 : vector<8x4xf32>
    %c0_103 = arith.constant 0 : index
    %c0_104 = arith.constant 0 : index
    %126 = vector.load %arg9[%c0_103, %c0_104] : memref<8x4xf32, #tpu.memory_space<vmem>>, vector<8x4xf32>
    tpu.vector_store %arg9[%c0_103, %c0_104], %125 {strides = array<i32>} : memref<8x4xf32, #tpu.memory_space<vmem>>, vector<8x4xf32>,
    %c0_105 = arith.constant 0 : index
    %c0_106 = arith.constant 0 : index
    %127 = vector.load %arg10[%c0_105, %c0_106] : memref<8x4xf32, #tpu.memory_space<vmem>>, vector<8x4xf32>
    tpu.vector_store %arg10[%c0_105, %c0_106], %94 {strides = array<i32>} : memref<8x4xf32, #tpu.memory_space<vmem>>, vector<8x4xf32>,
    return
  }
  func.func @transform_0(%arg0: i32) -> (i32, i32) {
    %c0_i32 = arith.constant 0 : i32
    %c0_i32_0 = arith.constant 0 : i32
    return %arg0, %c0_i32 : i32, i32
  }
  func.func @transform_1(%arg0: i32) -> (i32, i32) {
    %c0_i32 = arith.constant 0 : i32
    %c0_i32_0 = arith.constant 0 : i32
    return %arg0, %c0_i32 : i32, i32
  }
  func.func @transform_2(%arg0: i32) -> (i32, i32, i32) {
    %c0_i32 = arith.constant 0 : i32
    %c0_i32_0 = arith.constant 0 : i32
    %c0_i32_1 = arith.constant 0 : i32
    %c0_i32_2 = arith.constant 0 : i32
    return %c0_i32, %c0_i32_0, %c0_i32_1 : i32, i32, i32
  }
  func.func @transform_3(%arg0: i32) -> (i32, i32) {
    %c0_i32 = arith.constant 0 : i32
    %c0_i32_0 = arith.constant 0 : i32
    %c0_i32_1 = arith.constant 0 : i32
    return %c0_i32, %c0_i32_0 : i32, i32
  }
  func.func @transform_4(%arg0: i32) -> (i32, i32, i32) {
    %c0_i32 = arith.constant 0 : i32
    %c0_i32_0 = arith.constant 0 : i32
    %c0_i32_1 = arith.constant 0 : i32
    %c0_i32_2 = arith.constant 0 : i32
    return %c0_i32, %c0_i32_0, %c0_i32_1 : i32, i32, i32
  }
  func.func @transform_5(%arg0: i32) -> (i32, i32) {
    %c0_i32 = arith.constant 0 : i32
    %c0_i32_0 = arith.constant 0 : i32
    %c0_i32_1 = arith.constant 0 : i32
    return %c0_i32, %c0_i32_0 : i32, i32
  }
  func.func @transform_6(%arg0: i32) -> (i32, i32, i32) {
    %c0_i32 = arith.constant 0 : i32
    %c0_i32_0 = arith.constant 0 : i32
    %c0_i32_1 = arith.constant 0 : i32
    %c0_i32_2 = arith.constant 0 : i32
    return %c0_i32, %c0_i32_0, %c0_i32_1 : i32, i32, i32
  }
  func.func @transform_7(%arg0: i32) -> (i32, i32) {
    %c0_i32 = arith.constant 0 : i32
    %c0_i32_0 = arith.constant 0 : i32
    %c0_i32_1 = arith.constant 0 : i32
    return %c0_i32, %c0_i32_0 : i32, i32
  }
  func.func @transform_8(%arg0: i32) -> (i32, i32) {
    %c0_i32 = arith.constant 0 : i32
    %c0_i32_0 = arith.constant 0 : i32
    return %arg0, %c0_i32 : i32, i32
  }
  func.func @transform_9(%arg0: i32) -> (i32, i32) {
    %c0_i32 = arith.constant 0 : i32
    %c0_i32_0 = arith.constant 0 : i32
    return %arg0, %c0_i32 : i32, i32
  }
}

</mosaic_0001>

<llo_original>
// kernel: tpu_custom_call.1
$region0: #{tpu_custom_call.1}
  #allocation0 [shape = 'u32[]', space=smem, size = 0x4, offset = 0x4, fixed_abs, tag = 'smem constant byte address 0x4 - core index']
  #allocation1 [shape = 'u32[144,128]{1,0:T(1,128)}', space=vmem, size = 0x12000, scoped, tag = 'internal scratch']
  %s0 = inlined_call_operand.vmem [shape: f32[16,4], index: 0, kind: input, shape index: {}]
  %s1 = inlined_call_operand.vmem [shape: f32[16,4], index: 1, kind: input, shape index: {}]
  %s2 = inlined_call_operand.vmem [shape: f32[4,4,32], index: 2, kind: input, shape index: {}]
  %s3 = inlined_call_operand.vmem [shape: f32[4,32], index: 3, kind: input, shape index: {}]
  %s4 = inlined_call_operand.hbm [shape: f32[8,32,32], index: 4, kind: input, shape index: {}]
  %s5 = inlined_call_operand.vmem [shape: f32[8,32], index: 5, kind: input, shape index: {}]
  %s6 = inlined_call_operand.vmem [shape: f32[4,32,4], index: 6, kind: input, shape index: {}]
  %s7 = inlined_call_operand.vmem [shape: f32[4,4], index: 7, kind: input, shape index: {}]
  %s8 = inlined_call_operand.vmem [shape: f32[16,4], index: 8, kind: output, shape index: {0}]
  %s9 = inlined_call_operand.vmem [shape: f32[16,4], index: 9, kind: output, shape index: {1}]
  %10 = xla_tuple %s8, %s9
  %s11 = sld [smem:[#allocation0]]
  $region77: #{tpu_custom_call.1} parent=0
    _
  %s13 = ssub.s32 1, %s11
  %s14 = scalar_select 0, %s13, %s11
  $region1: #{tpu_custom_call.1} parent=0
    #allocation2 [shape = 'u8[131072]{0}', space=vmem, size = 0x20000, scoped, tag = 'input window, operand 4, single buffered']
    #allocation3 [shape = 's32[2]{0}', space=sflag, size = 0x8, scoped, tag = 'scoped memory for tpu_custom_call.1']
    %15 = vsyncpa [#allocation3], 0
    loop: start=0, step=1, limit=4
    $region2: #{tpu_custom_call.1} parent=1 // loop_pre_header
      _
    $region3: #{tpu_custom_call.1} parent=1 // loop_header
      %s17 = sphi 0, %s21
      %p18 = scmp.ge.s32.totalorder %s17, 4
      %s27 = sphi 0, %s29
      %s30 = sphi 0, %s27
      %s31 = sphi 0, %s30
      %s47 = sphi 0, %s31
      %s53 = sphi 0, %s55
      %s56 = sphi 0, %s53
      %s57 = sphi 0, %s56
      %s73 = sphi 0, %s57
      %s77 = sphi 0, %s77
      %s79 = sphi 0, %s77
      %s80 = sphi 0, %s79
      %s94 = sphi 0, %s80
      %s98 = sphi 0, %s98
      %s100 = sphi 0, %s98
      %s101 = sphi 0, %s100
      %s115 = sphi 0, %s101
      %s119 = sphi 0, %s119
      %s121 = sphi 0, %s119
      %s122 = sphi 0, %s121
      %s136 = sphi 0, %s122
      %s140 = sphi 0, %s140
      %s142 = sphi 0, %s140
      %s143 = sphi 0, %s142
      %s157 = sphi 0, %s143
      %s161 = sphi 0, %s161
      %s163 = sphi 0, %s161
      %s164 = sphi 0, %s163
      %s178 = sphi 0, %s164
      %s182 = sphi 0, %s182
      %s184 = sphi 0, %s182
      %s185 = sphi 0, %s184
      %s199 = sphi 0, %s185
      %s205 = sphi 0, %s207
      %s208 = sphi 0, %s205
      %s209 = sphi 0, %s208
      %s225 = sphi 0, %s209
      %s231 = sphi 0, %s233
      %s234 = sphi 0, %s231
      %s235 = sphi 0, %s234
      %s251 = sphi 0, %s235
    $region4: #{tpu_custom_call.1} parent=1 // loop_header_branch
      %20 = sbr.rel (%p18) target = $region8
    $region5: #{tpu_custom_call.1} parent=1 // loop_body
      %s22 = ssub.s32 %s17, 1
      %s23 = ssub.s32 %s17, 2
      %s24 = sadd.s32 %s17, 1
      %s25 = ssub.s32 %s17, %s24
      %p26 = scmp.eq.s32.totalorder %s25, 0
      %s28 = sadd.s32 %s27, 1
      %s29 = scalar_select %p26, %s27, %s28
      %p32 = pneg %p26
      %p33 = scmp.eq.s32.totalorder %s17, 1
      %p34 = por %p32, %p33
      %p35 = scmp.ne.s32.totalorder %s27, %s30
      %p36 = scmp.eq.s32.totalorder %s17, 0
      %p37 = por %p35, %p36
      %p38 = scmp.ne.s32.totalorder %s27, %s30
      %p39 = scmp.eq.s32.totalorder %s22, 1
      %p40 = por %p38, %p39
      %p41 = scmp.ne.s32.totalorder %s30, %s31
      %p42 = scmp.eq.s32.totalorder %s22, 0
      %p43 = por %p41, %p42
      %p44 = scmp.ne.s32.totalorder %s30, %s31
      %p45 = scmp.eq.s32.totalorder %s23, 1
      %p46 = por %p44, %p45
      %p48 = scmp.ne.s32.totalorder %s31, %s47
      %p49 = scmp.eq.s32.totalorder %s23, 0
      %p50 = por %p48, %p49
      %s51 = ssub.s32 %s17, %s24
      %p52 = scmp.eq.s32.totalorder %s51, 0
      %s54 = sadd.s32 %s53, 1
      %s55 = scalar_select %p52, %s53, %s54
      %p58 = pneg %p52
      %p59 = scmp.eq.s32.totalorder %s17, 1
      %p60 = por %p58, %p59
      %p61 = scmp.ne.s32.totalorder %s53, %s56
      %p62 = scmp.eq.s32.totalorder %s17, 0
      %p63 = por %p61, %p62
      %p64 = scmp.ne.s32.totalorder %s53, %s56
      %p65 = scmp.eq.s32.totalorder %s22, 1
      %p66 = por %p64, %p65
      %p67 = scmp.ne.s32.totalorder %s56, %s57
      %p68 = scmp.eq.s32.totalorder %s22, 0
      %p69 = por %p67, %p68
      %p70 = scmp.ne.s32.totalorder %s56, %s57
      %p71 = scmp.eq.s32.totalorder %s23, 1
      %p72 = por %p70, %p71
      %p74 = scmp.ne.s32.totalorder %s57, %s73
      %p75 = scmp.eq.s32.totalorder %s23, 0
      %p76 = por %p74, %p75
      %s78 = sadd.s32 %s77, 1
      %p81 = scmp.eq.s32.totalorder %s17, 1
      %p82 = scmp.ne.s32.totalorder %s77, %s79
      %p83 = scmp.eq.s32.totalorder %s17, 0
      %p84 = por %p82, %p83
      %p85 = scmp.ne.s32.totalorder %s77, %s79
      %p86 = scmp.eq.s32.totalorder %s22, 1
      %p87 = por %p85, %p86
      %p88 = scmp.ne.s32.totalorder %s79, %s80
      %p89 = scmp.eq.s32.totalorder %s22, 0
      %p90 = por %p88, %p89
      %p91 = scmp.ne.s32.totalorder %s79, %s80
      %p92 = scmp.eq.s32.totalorder %s23, 1
      %p93 = por %p91, %p92
      %p95 = scmp.ne.s32.totalorder %s80, %s94
      %p96 = scmp.eq.s32.totalorder %s23, 0
      %p97 = por %p95, %p96
      %s99 = sadd.s32 %s98, 1
      %p102 = scmp.eq.s32.totalorder %s17, 1
      %p103 = scmp.ne.s32.totalorder %s98, %s100
      %p104 = scmp.eq.s32.totalorder %s17, 0
      %p105 = por %p103, %p104
      %p106 = scmp.ne.s32.totalorder %s98, %s100
      %p107 = scmp.eq.s32.totalorder %s22, 1
      %p108 = por %p106, %p107
      %p109 = scmp.ne.s32.totalorder %s100, %s101
      %p110 = scmp.eq.s32.totalorder %s22, 0
      %p111 = por %p109, %p110
      %p112 = scmp.ne.s32.totalorder %s100, %s101
      %p113 = scmp.eq.s32.totalorder %s23, 1
      %p114 = por %p112, %p113
      %p116 = scmp.ne.s32.totalorder %s101, %s115
      %p117 = scmp.eq.s32.totalorder %s23, 0
      %p118 = por %p116, %p117
      %s120 = sadd.s32 %s119, 1
      %p123 = scmp.eq.s32.totalorder %s17, 1
      %p124 = scmp.ne.s32.totalorder %s119, %s121
      %p125 = scmp.eq.s32.totalorder %s17, 0
      %p126 = por %p124, %p125
      %p127 = scmp.ne.s32.totalorder %s119, %s121
      %p128 = scmp.eq.s32.totalorder %s22, 1
      %p129 = por %p127, %p128
      %p130 = scmp.ne.s32.totalorder %s121, %s122
      %p131 = scmp.eq.s32.totalorder %s22, 0
      %p132 = por %p130, %p131
      %p133 = scmp.ne.s32.totalorder %s121, %s122
      %p134 = scmp.eq.s32.totalorder %s23, 1
      %p135 = por %p133, %p134
      %p137 = scmp.ne.s32.totalorder %s122, %s136
      %p138 = scmp.eq.s32.totalorder %s23, 0
      %p139 = por %p137, %p138
      %s141 = sadd.s32 %s140, 1
      %p144 = scmp.eq.s32.totalorder %s17, 1
      %p145 = scmp.ne.s32.totalorder %s140, %s142
      %p146 = scmp.eq.s32.totalorder %s17, 0
      %p147 = por %p145, %p146
      %p148 = scmp.ne.s32.totalorder %s140, %s142
      %p149 = scmp.eq.s32.totalorder %s22, 1
      %p150 = por %p148, %p149
      %p151 = scmp.ne.s32.totalorder %s142, %s143
      %p152 = scmp.eq.s32.totalorder %s22, 0
      %p153 = por %p151, %p152
      %p154 = scmp.ne.s32.totalorder %s142, %s143
      %p155 = scmp.eq.s32.totalorder %s23, 1
      %p156 = por %p154, %p155
      %p158 = scmp.ne.s32.totalorder %s143, %s157
      %p159 = scmp.eq.s32.totalorder %s23, 0
      %p160 = por %p158, %p159
      %s162 = sadd.s32 %s161, 1
      %p165 = scmp.eq.s32.totalorder %s17, 1
      %p166 = scmp.ne.s32.totalorder %s161, %s163
      %p167 = scmp.eq.s32.totalorder %s17, 0
      %p168 = por %p166, %p167
      %p169 = scmp.ne.s32.totalorder %s161, %s163
      %p170 = scmp.eq.s32.totalorder %s22, 1
      %p171 = por %p169, %p170
      %p172 = scmp.ne.s32.totalorder %s163, %s164
      %p173 = scmp.eq.s32.totalorder %s22, 0
      %p174 = por %p172, %p173
      %p175 = scmp.ne.s32.totalorder %s163, %s164
      %p176 = scmp.eq.s32.totalorder %s23, 1
      %p177 = por %p175, %p176
      %p179 = scmp.ne.s32.totalorder %s164, %s178
      %p180 = scmp.eq.s32.totalorder %s23, 0
      %p181 = por %p179, %p180
      %s183 = sadd.s32 %s182, 1
      %p186 = scmp.eq.s32.totalorder %s17, 1
      %p187 = scmp.ne.s32.totalorder %s182, %s184
      %p188 = scmp.eq.s32.totalorder %s17, 0
      %p189 = por %p187, %p188
      %p190 = scmp.ne.s32.totalorder %s182, %s184
      %p191 = scmp.eq.s32.totalorder %s22, 1
      %p192 = por %p190, %p191
      %p193 = scmp.ne.s32.totalorder %s184, %s185
      %p194 = scmp.eq.s32.totalorder %s22, 0
      %p195 = por %p193, %p194
      %p196 = scmp.ne.s32.totalorder %s184, %s185
      %p197 = scmp.eq.s32.totalorder %s23, 1
      %p198 = por %p196, %p197
      %p200 = scmp.ne.s32.totalorder %s185, %s199
      %p201 = scmp.eq.s32.totalorder %s23, 0
      %p202 = por %p200, %p201
      %s203 = ssub.s32 %s17, %s24
      %p204 = scmp.eq.s32.totalorder %s203, 0
      %s206 = sadd.s32 %s205, 1
      %s207 = scalar_select %p204, %s205, %s206
      %p210 = pneg %p204
      %p211 = scmp.eq.s32.totalorder %s17, 1
      %p212 = por %p210, %p211
      %p213 = scmp.ne.s32.totalorder %s205, %s208
      %p214 = scmp.eq.s32.totalorder %s17, 0
      %p215 = por %p213, %p214
      %p216 = scmp.ne.s32.totalorder %s205, %s208
      %p217 = scmp.eq.s32.totalorder %s22, 1
      %p218 = por %p216, %p217
      %p219 = scmp.ne.s32.totalorder %s208, %s209
      %p220 = scmp.eq.s32.totalorder %s22, 0
      %p221 = por %p219, %p220
      %p222 = scmp.ne.s32.totalorder %s208, %s209
      %p223 = scmp.eq.s32.totalorder %s23, 1
      %p224 = por %p222, %p223
      %p226 = scmp.ne.s32.totalorder %s209, %s225
      %p227 = scmp.eq.s32.totalorder %s23, 0
      %p228 = por %p226, %p227
      %s229 = ssub.s32 %s17, %s24
      %p230 = scmp.eq.s32.totalorder %s229, 0
      %s232 = sadd.s32 %s231, 1
      %s233 = scalar_select %p230, %s231, %s232
      %p236 = pneg %p230
      %p237 = scmp.eq.s32.totalorder %s17, 1
      %p238 = por %p236, %p237
      %p239 = scmp.ne.s32.totalorder %s231, %s234
      %p240 = scmp.eq.s32.totalorder %s17, 0
      %p241 = por %p239, %p240
      %p242 = scmp.ne.s32.totalorder %s231, %s234
      %p243 = scmp.eq.s32.totalorder %s22, 1
      %p244 = por %p242, %p243
      %p245 = scmp.ne.s32.totalorder %s234, %s235
      %p246 = scmp.eq.s32.totalorder %s22, 0
      %p247 = por %p245, %p246
      %p248 = scmp.ne.s32.totalorder %s234, %s235
      %p249 = scmp.eq.s32.totalorder %s23, 1
      %p250 = por %p248, %p249
      %p252 = scmp.ne.s32.totalorder %s235, %s251
      %p253 = scmp.eq.s32.totalorder %s23, 0
      %p254 = por %p252, %p253
      %p255 = scmp.le.s32.totalorder 1, %s17
      %p256 = scmp.lt.s32.totalorder %s17, 3
      %p257 = pnand %p255, %p256
      %p258 = pneg %p257
      // Predicated region
      $region9: #{tpu_custom_call.1} parent=5 // pred_check
        _
      $region10: #{tpu_custom_call.1} parent=5 // pred_check_branch
        %260 = sbr.rel (%p257) target = $region12
      $region11: #{tpu_custom_call.1} parent=5 // pred_region
        %s261 = ssub.s32 %s17, 1
        // Predicated region
        $region13: #{tpu_custom_call.1} parent=11 // pred_check
          %p262 = pneg %p90
        $region14: #{tpu_custom_call.1} parent=11 // pred_check_branch
          %264 = sbr.rel (%p262) target = $region16
        $region15: #{tpu_custom_call.1} parent=11 // pred_region
          _
        $region16: #{tpu_custom_call.1} parent=11 // pred_fallthru
          _
        // Predicated region
        $region17: #{tpu_custom_call.1} parent=11 // pred_check
          %p265 = pneg %p111
        $region18: #{tpu_custom_call.1} parent=11 // pred_check_branch
          %267 = sbr.rel (%p265) target = $region20
        $region19: #{tpu_custom_call.1} parent=11 // pred_region
          _
        $region20: #{tpu_custom_call.1} parent=11 // pred_fallthru
          _
        // Predicated region
        $region21: #{tpu_custom_call.1} parent=11 // pred_check
          %p268 = pneg %p132
        $region22: #{tpu_custom_call.1} parent=11 // pred_check_branch
          %270 = sbr.rel (%p268) target = $region24
        $region23: #{tpu_custom_call.1} parent=11 // pred_region
          %s272 = ssub.s32 4096, 4096
          %273 = vsyncadd [#allocation3], %s272
          %s274 = sshll.u32 [#allocation2], 4
          %s275 = int_to_ptr.vmem [resolvable:$true] %s274
          %280 = dma.hbm_to_vmem [thread:$0]  %s4, 4096, %s275, [#allocation3], 128, 128, 8
        $region24: #{tpu_custom_call.1} parent=11 // pred_fallthru
          _
        // Predicated region
        $region25: #{tpu_custom_call.1} parent=11 // pred_check
          %p281 = pneg %p153
        $region26: #{tpu_custom_call.1} parent=11 // pred_check_branch
          %283 = sbr.rel (%p281) target = $region28
        $region27: #{tpu_custom_call.1} parent=11 // pred_region
          _
        $region28: #{tpu_custom_call.1} parent=11 // pred_fallthru
          _
        // Predicated region
        $region29: #{tpu_custom_call.1} parent=11 // pred_check
          %p284 = pneg %p174
        $region30: #{tpu_custom_call.1} parent=11 // pred_check_branch
          %286 = sbr.rel (%p284) target = $region32
        $region31: #{tpu_custom_call.1} parent=11 // pred_region
          _
        $region32: #{tpu_custom_call.1} parent=11 // pred_fallthru
          _
        // Predicated region
        $region33: #{tpu_custom_call.1} parent=11 // pred_check
          %p287 = pneg %p195
        $region34: #{tpu_custom_call.1} parent=11 // pred_check_branch
          %289 = sbr.rel (%p287) target = $region36
        $region35: #{tpu_custom_call.1} parent=11 // pred_region
          _
        $region36: #{tpu_custom_call.1} parent=11 // pred_fallthru
          _
      $region12: #{tpu_custom_call.1} parent=5 // pred_fallthru
        _
      %p290 = scmp.lt.s32.totalorder %s17, 2
      // Predicated region
      $region37: #{tpu_custom_call.1} parent=5 // pred_check
        %p291 = pneg %p290
      $region38: #{tpu_custom_call.1} parent=5 // pred_check_branch
        %293 = sbr.rel (%p291) target = $region40
      $region39: #{tpu_custom_call.1} parent=5 // pred_region
        // Predicated region
        $region41: #{tpu_custom_call.1} parent=39 // pred_check
          %p294 = pneg %p37
        $region42: #{tpu_custom_call.1} parent=39 // pred_check_branch
          %296 = sbr.rel (%p294) target = $region44
        $region43: #{tpu_custom_call.1} parent=39 // pred_region
          %p297 = scmp.lt.s32.totalorder %s17, 1
          %s298 = scalar_select %p297, %s17, 1
          %s299 = smul.addr %s298, 8
          %s300 = scalar_lea.vmem %s0, %s299
        $region44: #{tpu_custom_call.1} parent=39 // pred_fallthru
          _
        // Predicated region
        $region45: #{tpu_custom_call.1} parent=39 // pred_check
          %p301 = pneg %p63
        $region46: #{tpu_custom_call.1} parent=39 // pred_check_branch
          %303 = sbr.rel (%p301) target = $region48
        $region47: #{tpu_custom_call.1} parent=39 // pred_region
          %p304 = scmp.lt.s32.totalorder %s17, 1
          %s305 = scalar_select %p304, %s17, 1
          %s306 = smul.addr %s305, 8
          %s307 = scalar_lea.vmem %s1, %s306
        $region48: #{tpu_custom_call.1} parent=39 // pred_fallthru
          _
      $region40: #{tpu_custom_call.1} parent=5 // pred_fallthru
        _
      %p308 = scmp.le.s32.totalorder 1, %s17
      %p309 = scmp.lt.s32.totalorder %s17, 3
      %p310 = pnand %p308, %p309
      %p311 = pneg %p310
      // Predicated region
      $region49: #{tpu_custom_call.1} parent=5 // pred_check
        _
      $region50: #{tpu_custom_call.1} parent=5 // pred_check_branch
        %313 = sbr.rel (%p310) target = $region52
      $region51: #{tpu_custom_call.1} parent=5 // pred_region
        %s314 = ssub.s32 %s17, 1
        // Predicated region
        $region53: #{tpu_custom_call.1} parent=51 // pred_check
          %p315 = pneg %p132
        $region54: #{tpu_custom_call.1} parent=51 // pred_check_branch
          %317 = sbr.rel (%p315) target = $region56
        $region55: #{tpu_custom_call.1} parent=51 // pred_region
          %318 = dma.done [#allocation3], 4096
        $region56: #{tpu_custom_call.1} parent=51 // pred_fallthru
          _
        %p319 = scmp.lt.s32.totalorder %s22, 1
        %s320 = scalar_select %p319, %s22, 1
        %s321 = smul.addr %s320, 8
        %s322 = scalar_lea.vmem %s0, %s321
        %p323 = pneg %p43
        %p324 = pneg %p40
        %p325 = scmp.lt.s32.totalorder %s22, 1
        %s326 = scalar_select %p325, %s22, 1
        %s327 = smul.addr %s326, 8
        %s328 = scalar_lea.vmem %s1, %s327
        %p329 = pneg %p69
        %p330 = pneg %p66
        %p331 = pneg %p90
        %p332 = pneg %p87
        %p333 = pneg %p111
        %p334 = pneg %p108
        %p335 = pneg %p132
        %p336 = pneg %p129
        %p337 = pneg %p153
        %p338 = pneg %p150
        %p339 = pneg %p174
        %p340 = pneg %p171
        %p341 = pneg %p195
        %p342 = pneg %p192
        %p343 = pneg %p221
        %p344 = pneg %p218
        %p345 = scmp.lt.s32.totalorder %s22, 1
        %s346 = scalar_select %p345, %s22, 1
        %s347 = smul.addr %s346, 8
        %s348 = scalar_lea.vmem %s8, %s347
        %p349 = pneg %p247
        %p350 = pneg %p244
        %p351 = scmp.lt.s32.totalorder %s22, 1
        %s352 = scalar_select %p351, %s22, 1
        %s353 = smul.addr %s352, 8
        %s354 = scalar_lea.vmem %s9, %s353
        %p355 = scmp.lt.s32.totalorder %s22, 1
        %s356 = scalar_select %p355, %s22, 1
        %s357 = smul.addr %s356, 8
        %s358 = scalar_lea.vmem %s0, %s357
        %p359 = scmp.lt.s32.totalorder %s22, 1
        %s360 = scalar_select %p359, %s22, 1
        %s361 = smul.addr %s360, 8
        %s362 = scalar_lea.vmem %s1, %s361
        %p363 = scmp.lt.s32.totalorder %s22, 1
        %s364 = scalar_select %p363, %s22, 1
        %s365 = smul.addr %s364, 8
        %s366 = scalar_lea.vmem %s8, %s365
        %p367 = scmp.lt.s32.totalorder %s22, 1
        %s368 = scalar_select %p367, %s22, 1
        %s369 = smul.addr %s368, 8
        %s370 = scalar_lea.vmem %s9, %s369
        %v371 = vld [vmem:[%s358] sm:$0xff]
        %v372 = vld [vmem:[%s362] sm:$0xff]
        %v373 = vld [vmem:[%s3] sm:$0x1]
        %v374 = vld [vmem:[%s2] sm:$0xf]
        %v375 = vlaneseq
        %v376 = vshrl.u32 %v375, 7
        %v377 = vsub.s32 0, %v376
        %v378 = vrot.slane %v373, %v377
        %vm379 = vcmask 31744
        %v381 = vsel %vm379, %v371, 0
        %vm383 = vcmask 1043456
        %v385 = vsel %vm383, %v374, 0
        %387 = vmatprep.subr.mxu0 0.0
        %388 = vmatpush1.msra.mxu0 0.0
        %389 = vmatprep.subr.mxu0 0.0
        %390 = vmatpush1.msra.mxu0 0.0
        %391 = vmatprep.subr.mxu0 0.0
        %392 = vmatpush1.msra.mxu0 0.0
        %393 = vmatprep.subr.mxu0 0.0
        %394 = vmatpush1.msra.mxu0 0.0
        %395 = vmatprep.subr.mxu0 0.0
        %396 = vmatpush1.msra.mxu0 0.0
        %397 = vmatprep.subr.mxu0 0.0
        %398 = vmatpush1.msra.mxu0 0.0
        %399 = vmatprep.subr.mxu0 0.0
        %400 = vmatpush1.msra.mxu0 0.0
        %401 = vmatprep.subr.mxu0 0.0
        %402 = vmatpush1.msra.mxu0 0.0
        %403 = vmatprep.subr.mxu0 0.0
        %404 = vmatpush1.msra.mxu0 0.0
        %405 = vmatprep.subr.mxu0 0.0
        %406 = vmatpush1.msra.mxu0 0.0
        %407 = vmatprep.subr.mxu0 0.0
        %408 = vmatpush1.msra.mxu0 0.0
        %409 = vmatprep.subr.mxu0 0.0
        %410 = vmatpush1.msra.mxu0 0.0
        %411 = vmatprep.subr.mxu0 0.0
        %412 = vmatpush1.msra.mxu0 0.0
        %413 = vmatprep.subr.mxu0 0.0
        %414 = vmatpush1.msra.mxu0 0.0
        %415 = vmatprep.subr.mxu0 0.0
        %416 = vmatpush1.msra.mxu0 0.0
        %417 = vmatprep.subr.mxu0 0.0
        %418 = vmatpush1.msra.mxu0 %v385
        %419 = vmatprep.subr.mxu0 0.0
        %420 = vmatpush2.msra.mxu0 0.0
        %421 = vmatprep.subr.mxu0 0.0
        %422 = vmatpush2.msra.mxu0 0.0
        %423 = vmatprep.subr.mxu0 0.0
        %424 = vmatpush2.msra.mxu0 0.0
        %425 = vmatprep.subr.mxu0 0.0
        %426 = vmatpush2.msra.mxu0 0.0
        %427 = vmatprep.subr.mxu0 0.0
        %428 = vmatpush2.msra.mxu0 0.0
        %429 = vmatprep.subr.mxu0 0.0
        %430 = vmatpush2.msra.mxu0 0.0
        %431 = vmatprep.subr.mxu0 0.0
        %432 = vmatpush2.msra.mxu0 0.0
        %433 = vmatprep.subr.mxu0 0.0
        %434 = vmatpush2.msra.mxu0 0.0
        %435 = vmatprep.subr.mxu0 0.0
        %436 = vmatpush2.msra.mxu0 0.0
        %437 = vmatprep.subr.mxu0 0.0
        %438 = vmatpush2.msra.mxu0 0.0
        %439 = vmatprep.subr.mxu0 0.0
        %440 = vmatpush2.msra.mxu0 0.0
        %441 = vmatprep.subr.mxu0 0.0
        %442 = vmatpush2.msra.mxu0 0.0
        %443 = vmatprep.subr.mxu0 0.0
        %444 = vmatpush2.msra.mxu0 0.0
        %445 = vmatprep.subr.mxu0 0.0
        %446 = vmatpush2.msra.mxu0 0.0
        %447 = vmatprep.subr.mxu0 0.0
        %448 = vmatpush2.msra.mxu0 0.0
        %449 = vmatprep.subr.mxu0 0.0
        %450 = vmatpush2.msra.mxu0 0.0
        %451 = vmatprep.mubr.f32.mxu0 0.0
        %452 = vmatmul.mubr.f32.gmra.mxu0 %v381
        %v453 = vpop.f32.mrf.mxu0
        %v454 = vadd.f32 %v378, %v453
        %v455 = vpop.f32.mrf.mxu0
        %456 = vdwg.mxu0
        %v457 = vmax.f32 %v454, 0.0
        %v458 = vld [vmem:[%s5] sm:$0x1]
        %v459 = vld [vmem:[#allocation2] sm:$0xff]
        %v460 = vld [vmem:[#allocation2 + $0x8] sm:$0xff]
        %v461 = vld [vmem:[#allocation2 + $0x10] sm:$0xff]
        %v462 = vld [vmem:[#allocation2 + $0x18] sm:$0xff]
        %v463 = vlaneseq
        %v464 = vshrl.u32 %v463, 7
        %v465 = vsub.s32 0, %v464
        %v466 = vrot.slane %v458, %v465
        %vm467 = vcmask 261120
        %v469 = vsel %vm467, %v457, 0
        %471 = vmatprep.subr.mxu0 0.0
        %472 = vmatpush1.msra.mxu0 0.0
        %473 = vmatprep.subr.mxu0 0.0
        %474 = vmatpush1.msra.mxu0 0.0
        %475 = vmatprep.subr.mxu0 0.0
        %476 = vmatpush1.msra.mxu0 0.0
        %477 = vmatprep.subr.mxu0 0.0
        %478 = vmatpush1.msra.mxu0 0.0
        %479 = vmatprep.subr.mxu0 0.0
        %480 = vmatpush1.msra.mxu0 0.0
        %481 = vmatprep.subr.mxu0 0.0
        %482 = vmatpush1.msra.mxu0 0.0
        %483 = vmatprep.subr.mxu0 0.0
        %484 = vmatpush1.msra.mxu0 0.0
        %485 = vmatprep.subr.mxu0 0.0
        %486 = vmatpush1.msra.mxu0 0.0
        %487 = vmatprep.subr.mxu0 0.0
        %488 = vmatpush1.msra.mxu0 0.0
        %489 = vmatprep.subr.mxu0 0.0
        %490 = vmatpush1.msra.mxu0 0.0
        %491 = vmatprep.subr.mxu0 0.0
        %492 = vmatpush1.msra.mxu0 0.0
        %493 = vmatprep.subr.mxu0 0.0
        %494 = vmatpush1.msra.mxu0 0.0
        %495 = vmatprep.subr.mxu0 0.0
        %496 = vmatpush1.msra.mxu0 %v462
        %497 = vmatprep.subr.mxu0 0.0
        %498 = vmatpush1.msra.mxu0 %v461
        %499 = vmatprep.subr.mxu0 0.0
        %500 = vmatpush1.msra.mxu0 %v460
        %501 = vmatprep.subr.mxu0 0.0
        %502 = vmatpush1.msra.mxu0 %v459
        %503 = vmatprep.subr.mxu0 0.0
        %504 = vmatpush2.msra.mxu0 0.0
        %505 = vmatprep.subr.mxu0 0.0
        %506 = vmatpush2.msra.mxu0 0.0
        %507 = vmatprep.subr.mxu0 0.0
        %508 = vmatpush2.msra.mxu0 0.0
        %509 = vmatprep.subr.mxu0 0.0
        %510 = vmatpush2.msra.mxu0 0.0
        %511 = vmatprep.subr.mxu0 0.0
        %512 = vmatpush2.msra.mxu0 0.0
        %513 = vmatprep.subr.mxu0 0.0
        %514 = vmatpush2.msra.mxu0 0.0
        %515 = vmatprep.subr.mxu0 0.0
        %516 = vmatpush2.msra.mxu0 0.0
        %517 = vmatprep.subr.mxu0 0.0
        %518 = vmatpush2.msra.mxu0 0.0
        %519 = vmatprep.subr.mxu0 0.0
        %520 = vmatpush2.msra.mxu0 0.0
        %521 = vmatprep.subr.mxu0 0.0
        %522 = vmatpush2.msra.mxu0 0.0
        %523 = vmatprep.subr.mxu0 0.0
        %524 = vmatpush2.msra.mxu0 0.0
        %525 = vmatprep.subr.mxu0 0.0
        %526 = vmatpush2.msra.mxu0 0.0
        %527 = vmatprep.subr.mxu0 0.0
        %528 = vmatpush2.msra.mxu0 0.0
        %529 = vmatprep.subr.mxu0 0.0
        %530 = vmatpush2.msra.mxu0 0.0
        %531 = vmatprep.subr.mxu0 0.0
        %532 = vmatpush2.msra.mxu0 0.0
        %533 = vmatprep.subr.mxu0 0.0
        %534 = vmatpush2.msra.mxu0 0.0
        %535 = vmatprep.mubr.f32.mxu0 0.0
        %536 = vmatmul.mubr.f32.gmra.mxu0 %v469
        %v537 = vpop.f32.mrf.mxu0
        %v538 = vadd.f32 %v466, %v537
        %v539 = vpop.f32.mrf.mxu0
        %540 = vdwg.mxu0
        %v541 = vmax.f32 %v538, 0.0
        %v542 = vld [vmem:[%s5 + $0x1] sm:$0x1]
        %s543 = scalar_lea.vmem [#allocation2], 32
        %v544 = vld [vmem:[%s543] sm:$0xff]
        %v545 = vld [vmem:[%s543 + $0x8] sm:$0xff]
        %v546 = vld [vmem:[%s543 + $0x10] sm:$0xff]
        %v547 = vld [vmem:[%s543 + $0x18] sm:$0xff]
        %v548 = vlaneseq
        %v549 = vshrl.u32 %v548, 7
        %v550 = vsub.s32 0, %v549
        %v551 = vrot.slane %v542, %v550
        %v553 = vsel %vm467, %v541, 0
        %555 = vmatprep.subr.mxu0 0.0
        %556 = vmatpush1.msra.mxu0 0.0
        %557 = vmatprep.subr.mxu0 0.0
        %558 = vmatpush1.msra.mxu0 0.0
        %559 = vmatprep.subr.mxu0 0.0
        %560 = vmatpush1.msra.mxu0 0.0
        %561 = vmatprep.subr.mxu0 0.0
        %562 = vmatpush1.msra.mxu0 0.0
        %563 = vmatprep.subr.mxu0 0.0
        %564 = vmatpush1.msra.mxu0 0.0
        %565 = vmatprep.subr.mxu0 0.0
        %566 = vmatpush1.msra.mxu0 0.0
        %567 = vmatprep.subr.mxu0 0.0
        %568 = vmatpush1.msra.mxu0 0.0
        %569 = vmatprep.subr.mxu0 0.0
        %570 = vmatpush1.msra.mxu0 0.0
        %571 = vmatprep.subr.mxu0 0.0
        %572 = vmatpush1.msra.mxu0 0.0
        %573 = vmatprep.subr.mxu0 0.0
        %574 = vmatpush1.msra.mxu0 0.0
        %575 = vmatprep.subr.mxu0 0.0
        %576 = vmatpush1.msra.mxu0 0.0
        %577 = vmatprep.subr.mxu0 0.0
        %578 = vmatpush1.msra.mxu0 0.0
        %579 = vmatprep.subr.mxu0 0.0
        %580 = vmatpush1.msra.mxu0 %v547
        %581 = vmatprep.subr.mxu0 0.0
        %582 = vmatpush1.msra.mxu0 %v546
        %583 = vmatprep.subr.mxu0 0.0
        %584 = vmatpush1.msra.mxu0 %v545
        %585 = vmatprep.subr.mxu0 0.0
        %586 = vmatpush1.msra.mxu0 %v544
        %587 = vmatprep.subr.mxu0 0.0
        %588 = vmatpush2.msra.mxu0 0.0
        %589 = vmatprep.subr.mxu0 0.0
        %590 = vmatpush2.msra.mxu0 0.0
        %591 = vmatprep.subr.mxu0 0.0
        %592 = vmatpush2.msra.mxu0 0.0
        %593 = vmatprep.subr.mxu0 0.0
        %594 = vmatpush2.msra.mxu0 0.0
        %595 = vmatprep.subr.mxu0 0.0
        %596 = vmatpush2.msra.mxu0 0.0
        %597 = vmatprep.subr.mxu0 0.0
        %598 = vmatpush2.msra.mxu0 0.0
        %599 = vmatprep.subr.mxu0 0.0
        %600 = vmatpush2.msra.mxu0 0.0
        %601 = vmatprep.subr.mxu0 0.0
        %602 = vmatpush2.msra.mxu0 0.0
        %603 = vmatprep.subr.mxu0 0.0
        %604 = vmatpush2.msra.mxu0 0.0
        %605 = vmatprep.subr.mxu0 0.0
        %606 = vmatpush2.msra.mxu0 0.0
        %607 = vmatprep.subr.mxu0 0.0
        %608 = vmatpush2.msra.mxu0 0.0
        %609 = vmatprep.subr.mxu0 0.0
        %610 = vmatpush2.msra.mxu0 0.0
        %611 = vmatprep.subr.mxu0 0.0
        %612 = vmatpush2.msra.mxu0 0.0
        %613 = vmatprep.subr.mxu0 0.0
        %614 = vmatpush2.msra.mxu0 0.0
        %615 = vmatprep.subr.mxu0 0.0
        %616 = vmatpush2.msra.mxu0 0.0
        %617 = vmatprep.subr.mxu0 0.0
        %618 = vmatpush2.msra.mxu0 0.0
        %619 = vmatprep.mubr.f32.mxu0 0.0
        %620 = vmatmul.mubr.f32.gmra.mxu0 %v553
        %v621 = vpop.f32.mrf.mxu0
        %v622 = vadd.f32 %v551, %v621
        %v623 = vpop.f32.mrf.mxu0
        %624 = vdwg.mxu0
        %v625 = vmax.f32 %v622, 0.0
        %v626 = vld [vmem:[%s7] sm:$0x1]
        %v627 = vld [vmem:[%s6] sm:$0xff]
        %v628 = vld [vmem:[%s6 + $0x8] sm:$0xff]
        %v629 = vld [vmem:[%s6 + $0x10] sm:$0xff]
        %v630 = vld [vmem:[%s6 + $0x18] sm:$0xff]
        %v631 = vlaneseq
        %v632 = vshrl.u32 %v631, 7
        %v633 = vsub.s32 0, %v632
        %v634 = vrot.slane %v626, %v633
        %v636 = vsel %vm467, %v625, 0
        %638 = vmatprep.subr.mxu0 0.0
        %639 = vmatpush1.msra.mxu0 0.0
        %640 = vmatprep.subr.mxu0 0.0
        %641 = vmatpush1.msra.mxu0 0.0
        %642 = vmatprep.subr.mxu0 0.0
        %643 = vmatpush1.msra.mxu0 0.0
        %644 = vmatprep.subr.mxu0 0.0
        %645 = vmatpush1.msra.mxu0 0.0
        %646 = vmatprep.subr.mxu0 0.0
        %647 = vmatpush1.msra.mxu0 0.0
        %648 = vmatprep.subr.mxu0 0.0
        %649 = vmatpush1.msra.mxu0 0.0
        %650 = vmatprep.subr.mxu0 0.0
        %651 = vmatpush1.msra.mxu0 0.0
        %652 = vmatprep.subr.mxu0 0.0
        %653 = vmatpush1.msra.mxu0 0.0
        %654 = vmatprep.subr.mxu0 0.0
        %655 = vmatpush1.msra.mxu0 0.0
        %656 = vmatprep.subr.mxu0 0.0
        %657 = vmatpush1.msra.mxu0 0.0
        %658 = vmatprep.subr.mxu0 0.0
        %659 = vmatpush1.msra.mxu0 0.0
        %660 = vmatprep.subr.mxu0 0.0
        %661 = vmatpush1.msra.mxu0 0.0
        %662 = vmatprep.subr.mxu0 0.0
        %663 = vmatpush1.msra.mxu0 %v630
        %664 = vmatprep.subr.mxu0 0.0
        %665 = vmatpush1.msra.mxu0 %v629
        %666 = vmatprep.subr.mxu0 0.0
        %667 = vmatpush1.msra.mxu0 %v628
        %668 = vmatprep.subr.mxu0 0.0
        %669 = vmatpush1.msra.mxu0 %v627
        %670 = vmatprep.subr.mxu0 0.0
        %671 = vmatpush2.msra.mxu0 0.0
        %672 = vmatprep.subr.mxu0 0.0
        %673 = vmatpush2.msra.mxu0 0.0
        %674 = vmatprep.subr.mxu0 0.0
        %675 = vmatpush2.msra.mxu0 0.0
        %676 = vmatprep.subr.mxu0 0.0
        %677 = vmatpush2.msra.mxu0 0.0
        %678 = vmatprep.subr.mxu0 0.0
        %679 = vmatpush2.msra.mxu0 0.0
        %680 = vmatprep.subr.mxu0 0.0
        %681 = vmatpush2.msra.mxu0 0.0
        %682 = vmatprep.subr.mxu0 0.0
        %683 = vmatpush2.msra.mxu0 0.0
        %684 = vmatprep.subr.mxu0 0.0
        %685 = vmatpush2.msra.mxu0 0.0
        %686 = vmatprep.subr.mxu0 0.0
        %687 = vmatpush2.msra.mxu0 0.0
        %688 = vmatprep.subr.mxu0 0.0
        %689 = vmatpush2.msra.mxu0 0.0
        %690 = vmatprep.subr.mxu0 0.0
        %691 = vmatpush2.msra.mxu0 0.0
        %692 = vmatprep.subr.mxu0 0.0
        %693 = vmatpush2.msra.mxu0 0.0
        %694 = vmatprep.subr.mxu0 0.0
        %695 = vmatpush2.msra.mxu0 0.0
        %696 = vmatprep.subr.mxu0 0.0
        %697 = vmatpush2.msra.mxu0 0.0
        %698 = vmatprep.subr.mxu0 0.0
        %699 = vmatpush2.msra.mxu0 0.0
        %700 = vmatprep.subr.mxu0 0.0
        %701 = vmatpush2.msra.mxu0 0.0
        %702 = vmatprep.mubr.f32.mxu0 0.0
        %703 = vmatmul.mubr.f32.gmra.mxu0 %v636
        %v704 = vpop.f32.mrf.mxu0
        %v705 = vadd.f32 %v634, %v704
        %v706 = vpop.f32.mrf.mxu0
        %707 = vdwg.mxu0
        %v708 = vadd.f32 %v372, %v705
        %v709 = vld [vmem:[%s3 + $0x1] sm:$0x1]
        %s710 = scalar_lea.vmem %s2, 4
        %v711 = vld [vmem:[%s710] sm:$0xf]
        %v712 = vlaneseq
        %v713 = vshrl.u32 %v712, 7
        %v714 = vsub.s32 0, %v713
        %v715 = vrot.slane %v709, %v714
        %v717 = vsel %vm379, %v708, 0
        %v720 = vsel %vm383, %v711, 0
        %722 = vmatprep.subr.mxu0 0.0
        %723 = vmatpush1.msra.mxu0 0.0
        %724 = vmatprep.subr.mxu0 0.0
        %725 = vmatpush1.msra.mxu0 0.0
        %726 = vmatprep.subr.mxu0 0.0
        %727 = vmatpush1.msra.mxu0 0.0
        %728 = vmatprep.subr.mxu0 0.0
        %729 = vmatpush1.msra.mxu0 0.0
        %730 = vmatprep.subr.mxu0 0.0
        %731 = vmatpush1.msra.mxu0 0.0
        %732 = vmatprep.subr.mxu0 0.0
        %733 = vmatpush1.msra.mxu0 0.0
        %734 = vmatprep.subr.mxu0 0.0
        %735 = vmatpush1.msra.mxu0 0.0
        %736 = vmatprep.subr.mxu0 0.0
        %737 = vmatpush1.msra.mxu0 0.0
        %738 = vmatprep.subr.mxu0 0.0
        %739 = vmatpush1.msra.mxu0 0.0
        %740 = vmatprep.subr.mxu0 0.0
        %741 = vmatpush1.msra.mxu0 0.0
        %742 = vmatprep.subr.mxu0 0.0
        %743 = vmatpush1.msra.mxu0 0.0
        %744 = vmatprep.subr.mxu0 0.0
        %745 = vmatpush1.msra.mxu0 0.0
        %746 = vmatprep.subr.mxu0 0.0
        %747 = vmatpush1.msra.mxu0 0.0
        %748 = vmatprep.subr.mxu0 0.0
        %749 = vmatpush1.msra.mxu0 0.0
        %750 = vmatprep.subr.mxu0 0.0
        %751 = vmatpush1.msra.mxu0 0.0
        %752 = vmatprep.subr.mxu0 0.0
        %753 = vmatpush1.msra.mxu0 %v720
        %754 = vmatprep.subr.mxu0 0.0
        %755 = vmatpush2.msra.mxu0 0.0
        %756 = vmatprep.subr.mxu0 0.0
        %757 = vmatpush2.msra.mxu0 0.0
        %758 = vmatprep.subr.mxu0 0.0
        %759 = vmatpush2.msra.mxu0 0.0
        %760 = vmatprep.subr.mxu0 0.0
        %761 = vmatpush2.msra.mxu0 0.0
        %762 = vmatprep.subr.mxu0 0.0
        %763 = vmatpush2.msra.mxu0 0.0
        %764 = vmatprep.subr.mxu0 0.0
        %765 = vmatpush2.msra.mxu0 0.0
        %766 = vmatprep.subr.mxu0 0.0
        %767 = vmatpush2.msra.mxu0 0.0
        %768 = vmatprep.subr.mxu0 0.0
        %769 = vmatpush2.msra.mxu0 0.0
        %770 = vmatprep.subr.mxu0 0.0
        %771 = vmatpush2.msra.mxu0 0.0
        %772 = vmatprep.subr.mxu0 0.0
        %773 = vmatpush2.msra.mxu0 0.0
        %774 = vmatprep.subr.mxu0 0.0
        %775 = vmatpush2.msra.mxu0 0.0
        %776 = vmatprep.subr.mxu0 0.0
        %777 = vmatpush2.msra.mxu0 0.0
        %778 = vmatprep.subr.mxu0 0.0
        %779 = vmatpush2.msra.mxu0 0.0
        %780 = vmatprep.subr.mxu0 0.0
        %781 = vmatpush2.msra.mxu0 0.0
        %782 = vmatprep.subr.mxu0 0.0
        %783 = vmatpush2.msra.mxu0 0.0
        %784 = vmatprep.subr.mxu0 0.0
        %785 = vmatpush2.msra.mxu0 0.0
        %786 = vmatprep.mubr.f32.mxu0 0.0
        %787 = vmatmul.mubr.f32.gmra.mxu0 %v717
        %v788 = vpop.f32.mrf.mxu0
        %v789 = vadd.f32 %v715, %v788
        %v790 = vpop.f32.mrf.mxu0
        %791 = vdwg.mxu0
        %v792 = vmax.f32 %v789, 0.0
        %v793 = vld [vmem:[%s5 + $0x2] sm:$0x1]
        %s794 = scalar_lea.vmem [#allocation2], 64
        %v795 = vld [vmem:[%s794] sm:$0xff]
        %v796 = vld [vmem:[%s794 + $0x8] sm:$0xff]
        %v797 = vld [vmem:[%s794 + $0x10] sm:$0xff]
        %v798 = vld [vmem:[%s794 + $0x18] sm:$0xff]
        %v799 = vlaneseq
        %v800 = vshrl.u32 %v799, 7
        %v801 = vsub.s32 0, %v800
        %v802 = vrot.slane %v793, %v801
        %v804 = vsel %vm467, %v792, 0
        %806 = vmatprep.subr.mxu0 0.0
        %807 = vmatpush1.msra.mxu0 0.0
        %808 = vmatprep.subr.mxu0 0.0
        %809 = vmatpush1.msra.mxu0 0.0
        %810 = vmatprep.subr.mxu0 0.0
        %811 = vmatpush1.msra.mxu0 0.0
        %812 = vmatprep.subr.mxu0 0.0
        %813 = vmatpush1.msra.mxu0 0.0
        %814 = vmatprep.subr.mxu0 0.0
        %815 = vmatpush1.msra.mxu0 0.0
        %816 = vmatprep.subr.mxu0 0.0
        %817 = vmatpush1.msra.mxu0 0.0
        %818 = vmatprep.subr.mxu0 0.0
        %819 = vmatpush1.msra.mxu0 0.0
        %820 = vmatprep.subr.mxu0 0.0
        %821 = vmatpush1.msra.mxu0 0.0
        %822 = vmatprep.subr.mxu0 0.0
        %823 = vmatpush1.msra.mxu0 0.0
        %824 = vmatprep.subr.mxu0 0.0
        %825 = vmatpush1.msra.mxu0 0.0
        %826 = vmatprep.subr.mxu0 0.0
        %827 = vmatpush1.msra.mxu0 0.0
        %828 = vmatprep.subr.mxu0 0.0
        %829 = vmatpush1.msra.mxu0 0.0
        %830 = vmatprep.subr.mxu0 0.0
        %831 = vmatpush1.msra.mxu0 %v798
        %832 = vmatprep.subr.mxu0 0.0
        %833 = vmatpush1.msra.mxu0 %v797
        %834 = vmatprep.subr.mxu0 0.0
        %835 = vmatpush1.msra.mxu0 %v796
        %836 = vmatprep.subr.mxu0 0.0
        %837 = vmatpush1.msra.mxu0 %v795
        %838 = vmatprep.subr.mxu0 0.0
        %839 = vmatpush2.msra.mxu0 0.0
        %840 = vmatprep.subr.mxu0 0.0
        %841 = vmatpush2.msra.mxu0 0.0
        %842 = vmatprep.subr.mxu0 0.0
        %843 = vmatpush2.msra.mxu0 0.0
        %844 = vmatprep.subr.mxu0 0.0
        %845 = vmatpush2.msra.mxu0 0.0
        %846 = vmatprep.subr.mxu0 0.0
        %847 = vmatpush2.msra.mxu0 0.0
        %848 = vmatprep.subr.mxu0 0.0
        %849 = vmatpush2.msra.mxu0 0.0
        %850 = vmatprep.subr.mxu0 0.0
        %851 = vmatpush2.msra.mxu0 0.0
        %852 = vmatprep.subr.mxu0 0.0
        %853 = vmatpush2.msra.mxu0 0.0
        %854 = vmatprep.subr.mxu0 0.0
        %855 = vmatpush2.msra.mxu0 0.0
        %856 = vmatprep.subr.mxu0 0.0
        %857 = vmatpush2.msra.mxu0 0.0
        %858 = vmatprep.subr.mxu0 0.0
        %859 = vmatpush2.msra.mxu0 0.0
        %860 = vmatprep.subr.mxu0 0.0
        %861 = vmatpush2.msra.mxu0 0.0
        %862 = vmatprep.subr.mxu0 0.0
        %863 = vmatpush2.msra.mxu0 0.0
        %864 = vmatprep.subr.mxu0 0.0
        %865 = vmatpush2.msra.mxu0 0.0
        %866 = vmatprep.subr.mxu0 0.0
        %867 = vmatpush2.msra.mxu0 0.0
        %868 = vmatprep.subr.mxu0 0.0
        %869 = vmatpush2.msra.mxu0 0.0
        %870 = vmatprep.mubr.f32.mxu0 0.0
        %871 = vmatmul.mubr.f32.gmra.mxu0 %v804
        %v872 = vpop.f32.mrf.mxu0
        %v873 = vadd.f32 %v802, %v872
        %v874 = vpop.f32.mrf.mxu0
        %875 = vdwg.mxu0
        %v876 = vmax.f32 %v873, 0.0
        %v877 = vld [vmem:[%s5 + $0x3] sm:$0x1]
        %s878 = scalar_lea.vmem [#allocation2], 96
        %v879 = vld [vmem:[%s878] sm:$0xff]
        %v880 = vld [vmem:[%s878 + $0x8] sm:$0xff]
        %v881 = vld [vmem:[%s878 + $0x10] sm:$0xff]
        %v882 = vld [vmem:[%s878 + $0x18] sm:$0xff]
        %v883 = vlaneseq
        %v884 = vshrl.u32 %v883, 7
        %v885 = vsub.s32 0, %v884
        %v886 = vrot.slane %v877, %v885
        %v888 = vsel %vm467, %v876, 0
        %890 = vmatprep.subr.mxu0 0.0
        %891 = vmatpush1.msra.mxu0 0.0
        %892 = vmatprep.subr.mxu0 0.0
        %893 = vmatpush1.msra.mxu0 0.0
        %894 = vmatprep.subr.mxu0 0.0
        %895 = vmatpush1.msra.mxu0 0.0
        %896 = vmatprep.subr.mxu0 0.0
        %897 = vmatpush1.msra.mxu0 0.0
        %898 = vmatprep.subr.mxu0 0.0
        %899 = vmatpush1.msra.mxu0 0.0
        %900 = vmatprep.subr.mxu0 0.0
        %901 = vmatpush1.msra.mxu0 0.0
        %902 = vmatprep.subr.mxu0 0.0
        %903 = vmatpush1.msra.mxu0 0.0
        %904 = vmatprep.subr.mxu0 0.0
        %905 = vmatpush1.msra.mxu0 0.0
        %906 = vmatprep.subr.mxu0 0.0
        %907 = vmatpush1.msra.mxu0 0.0
        %908 = vmatprep.subr.mxu0 0.0
        %909 = vmatpush1.msra.mxu0 0.0
        %910 = vmatprep.subr.mxu0 0.0
        %911 = vmatpush1.msra.mxu0 0.0
        %912 = vmatprep.subr.mxu0 0.0
        %913 = vmatpush1.msra.mxu0 0.0
        %914 = vmatprep.subr.mxu0 0.0
        %915 = vmatpush1.msra.mxu0 %v882
        %916 = vmatprep.subr.mxu0 0.0
        %917 = vmatpush1.msra.mxu0 %v881
        %918 = vmatprep.subr.mxu0 0.0
        %919 = vmatpush1.msra.mxu0 %v880
        %920 = vmatprep.subr.mxu0 0.0
        %921 = vmatpush1.msra.mxu0 %v879
        %922 = vmatprep.subr.mxu0 0.0
        %923 = vmatpush2.msra.mxu0 0.0
        %924 = vmatprep.subr.mxu0 0.0
        %925 = vmatpush2.msra.mxu0 0.0
        %926 = vmatprep.subr.mxu0 0.0
        %927 = vmatpush2.msra.mxu0 0.0
        %928 = vmatprep.subr.mxu0 0.0
        %929 = vmatpush2.msra.mxu0 0.0
        %930 = vmatprep.subr.mxu0 0.0
        %931 = vmatpush2.msra.mxu0 0.0
        %932 = vmatprep.subr.mxu0 0.0
        %933 = vmatpush2.msra.mxu0 0.0
        %934 = vmatprep.subr.mxu0 0.0
        %935 = vmatpush2.msra.mxu0 0.0
        %936 = vmatprep.subr.mxu0 0.0
        %937 = vmatpush2.msra.mxu0 0.0
        %938 = vmatprep.subr.mxu0 0.0
        %939 = vmatpush2.msra.mxu0 0.0
        %940 = vmatprep.subr.mxu0 0.0
        %941 = vmatpush2.msra.mxu0 0.0
        %942 = vmatprep.subr.mxu0 0.0
        %943 = vmatpush2.msra.mxu0 0.0
        %944 = vmatprep.subr.mxu0 0.0
        %945 = vmatpush2.msra.mxu0 0.0
        %946 = vmatprep.subr.mxu0 0.0
        %947 = vmatpush2.msra.mxu0 0.0
        %948 = vmatprep.subr.mxu0 0.0
        %949 = vmatpush2.msra.mxu0 0.0
        %950 = vmatprep.subr.mxu0 0.0
        %951 = vmatpush2.msra.mxu0 0.0
        %952 = vmatprep.subr.mxu0 0.0
        %953 = vmatpush2.msra.mxu0 0.0
        %954 = vmatprep.mubr.f32.mxu0 0.0
        %955 = vmatmul.mubr.f32.gmra.mxu0 %v888
        %v956 = vpop.f32.mrf.mxu0
        %v957 = vadd.f32 %v886, %v956
        %v958 = vpop.f32.mrf.mxu0
        %959 = vdwg.mxu0
        %v960 = vmax.f32 %v957, 0.0
        %v961 = vld [vmem:[%s7 + $0x1] sm:$0x1]
        %s962 = scalar_lea.vmem %s6, 32
        %v963 = vld [vmem:[%s962] sm:$0xff]
        %v964 = vld [vmem:[%s962 + $0x8] sm:$0xff]
        %v965 = vld [vmem:[%s962 + $0x10] sm:$0xff]
        %v966 = vld [vmem:[%s962 + $0x18] sm:$0xff]
        %v967 = vlaneseq
        %v968 = vshrl.u32 %v967, 7
        %v969 = vsub.s32 0, %v968
        %v970 = vrot.slane %v961, %v969
        %v972 = vsel %vm467, %v960, 0
        %974 = vmatprep.subr.mxu0 0.0
        %975 = vmatpush1.msra.mxu0 0.0
        %976 = vmatprep.subr.mxu0 0.0
        %977 = vmatpush1.msra.mxu0 0.0
        %978 = vmatprep.subr.mxu0 0.0
        %979 = vmatpush1.msra.mxu0 0.0
        %980 = vmatprep.subr.mxu0 0.0
        %981 = vmatpush1.msra.mxu0 0.0
        %982 = vmatprep.subr.mxu0 0.0
        %983 = vmatpush1.msra.mxu0 0.0
        %984 = vmatprep.subr.mxu0 0.0
        %985 = vmatpush1.msra.mxu0 0.0
        %986 = vmatprep.subr.mxu0 0.0
        %987 = vmatpush1.msra.mxu0 0.0
        %988 = vmatprep.subr.mxu0 0.0
        %989 = vmatpush1.msra.mxu0 0.0
        %990 = vmatprep.subr.mxu0 0.0
        %991 = vmatpush1.msra.mxu0 0.0
        %992 = vmatprep.subr.mxu0 0.0
        %993 = vmatpush1.msra.mxu0 0.0
        %994 = vmatprep.subr.mxu0 0.0
        %995 = vmatpush1.msra.mxu0 0.0
        %996 = vmatprep.subr.mxu0 0.0
        %997 = vmatpush1.msra.mxu0 0.0
        %998 = vmatprep.subr.mxu0 0.0
        %999 = vmatpush1.msra.mxu0 %v966
        %1000 = vmatprep.subr.mxu0 0.0
        %1001 = vmatpush1.msra.mxu0 %v965
        %1002 = vmatprep.subr.mxu0 0.0
        %1003 = vmatpush1.msra.mxu0 %v964
        %1004 = vmatprep.subr.mxu0 0.0
        %1005 = vmatpush1.msra.mxu0 %v963
        %1006 = vmatprep.subr.mxu0 0.0
        %1007 = vmatpush2.msra.mxu0 0.0
        %1008 = vmatprep.subr.mxu0 0.0
        %1009 = vmatpush2.msra.mxu0 0.0
        %1010 = vmatprep.subr.mxu0 0.0
        %1011 = vmatpush2.msra.mxu0 0.0
        %1012 = vmatprep.subr.mxu0 0.0
        %1013 = vmatpush2.msra.mxu0 0.0
        %1014 = vmatprep.subr.mxu0 0.0
        %1015 = vmatpush2.msra.mxu0 0.0
        %1016 = vmatprep.subr.mxu0 0.0
        %1017 = vmatpush2.msra.mxu0 0.0
        %1018 = vmatprep.subr.mxu0 0.0
        %1019 = vmatpush2.msra.mxu0 0.0
        %1020 = vmatprep.subr.mxu0 0.0
        %1021 = vmatpush2.msra.mxu0 0.0
        %1022 = vmatprep.subr.mxu0 0.0
        %1023 = vmatpush2.msra.mxu0 0.0
        %1024 = vmatprep.subr.mxu0 0.0
        %1025 = vmatpush2.msra.mxu0 0.0
        %1026 = vmatprep.subr.mxu0 0.0
        %1027 = vmatpush2.msra.mxu0 0.0
        %1028 = vmatprep.subr.mxu0 0.0
        %1029 = vmatpush2.msra.mxu0 0.0
        %1030 = vmatprep.subr.mxu0 0.0
        %1031 = vmatpush2.msra.mxu0 0.0
        %1032 = vmatprep.subr.mxu0 0.0
        %1033 = vmatpush2.msra.mxu0 0.0
        %1034 = vmatprep.subr.mxu0 0.0
        %1035 = vmatpush2.msra.mxu0 0.0
        %1036 = vmatprep.subr.mxu0 0.0
        %1037 = vmatpush2.msra.mxu0 0.0
        %1038 = vmatprep.mubr.f32.mxu0 0.0
        %1039 = vmatmul.mubr.f32.gmra.mxu0 %v972
        %v1040 = vpop.f32.mrf.mxu0
        %v1041 = vadd.f32 %v970, %v1040
        %v1042 = vpop.f32.mrf.mxu0
        %1043 = vdwg.mxu0
        %v1044 = vadd.f32 %v371, %v1041
        %v1045 = vld [vmem:[%s3 + $0x2] sm:$0x1]
        %s1046 = scalar_lea.vmem %s2, 8
        %v1047 = vld [vmem:[%s1046] sm:$0xf]
        %v1048 = vlaneseq
        %v1049 = vshrl.u32 %v1048, 7
        %v1050 = vsub.s32 0, %v1049
        %v1051 = vrot.slane %v1045, %v1050
        %v1053 = vsel %vm379, %v1044, 0
        %v1056 = vsel %vm383, %v1047, 0
        %1058 = vmatprep.subr.mxu0 0.0
        %1059 = vmatpush1.msra.mxu0 0.0
        %1060 = vmatprep.subr.mxu0 0.0
        %1061 = vmatpush1.msra.mxu0 0.0
        %1062 = vmatprep.subr.mxu0 0.0
        %1063 = vmatpush1.msra.mxu0 0.0
        %1064 = vmatprep.subr.mxu0 0.0
        %1065 = vmatpush1.msra.mxu0 0.0
        %1066 = vmatprep.subr.mxu0 0.0
        %1067 = vmatpush1.msra.mxu0 0.0
        %1068 = vmatprep.subr.mxu0 0.0
        %1069 = vmatpush1.msra.mxu0 0.0
        %1070 = vmatprep.subr.mxu0 0.0
        %1071 = vmatpush1.msra.mxu0 0.0
        %1072 = vmatprep.subr.mxu0 0.0
        %1073 = vmatpush1.msra.mxu0 0.0
        %1074 = vmatprep.subr.mxu0 0.0
        %1075 = vmatpush1.msra.mxu0 0.0
        %1076 = vmatprep.subr.mxu0 0.0
        %1077 = vmatpush1.msra.mxu0 0.0
        %1078 = vmatprep.subr.mxu0 0.0
        %1079 = vmatpush1.msra.mxu0 0.0
        %1080 = vmatprep.subr.mxu0 0.0
        %1081 = vmatpush1.msra.mxu0 0.0
        %1082 = vmatprep.subr.mxu0 0.0
        %1083 = vmatpush1.msra.mxu0 0.0
        %1084 = vmatprep.subr.mxu0 0.0
        %1085 = vmatpush1.msra.mxu0 0.0
        %1086 = vmatprep.subr.mxu0 0.0
        %1087 = vmatpush1.msra.mxu0 0.0
        %1088 = vmatprep.subr.mxu0 0.0
        %1089 = vmatpush1.msra.mxu0 %v1056
        %1090 = vmatprep.subr.mxu0 0.0
        %1091 = vmatpush2.msra.mxu0 0.0
        %1092 = vmatprep.subr.mxu0 0.0
        %1093 = vmatpush2.msra.mxu0 0.0
        %1094 = vmatprep.subr.mxu0 0.0
        %1095 = vmatpush2.msra.mxu0 0.0
        %1096 = vmatprep.subr.mxu0 0.0
        %1097 = vmatpush2.msra.mxu0 0.0
        %1098 = vmatprep.subr.mxu0 0.0
        %1099 = vmatpush2.msra.mxu0 0.0
        %1100 = vmatprep.subr.mxu0 0.0
        %1101 = vmatpush2.msra.mxu0 0.0
        %1102 = vmatprep.subr.mxu0 0.0
        %1103 = vmatpush2.msra.mxu0 0.0
        %1104 = vmatprep.subr.mxu0 0.0
        %1105 = vmatpush2.msra.mxu0 0.0
        %1106 = vmatprep.subr.mxu0 0.0
        %1107 = vmatpush2.msra.mxu0 0.0
        %1108 = vmatprep.subr.mxu0 0.0
        %1109 = vmatpush2.msra.mxu0 0.0
        %1110 = vmatprep.subr.mxu0 0.0
        %1111 = vmatpush2.msra.mxu0 0.0
        %1112 = vmatprep.subr.mxu0 0.0
        %1113 = vmatpush2.msra.mxu0 0.0
        %1114 = vmatprep.subr.mxu0 0.0
        %1115 = vmatpush2.msra.mxu0 0.0
        %1116 = vmatprep.subr.mxu0 0.0
        %1117 = vmatpush2.msra.mxu0 0.0
        %1118 = vmatprep.subr.mxu0 0.0
        %1119 = vmatpush2.msra.mxu0 0.0
        %1120 = vmatprep.subr.mxu0 0.0
        %1121 = vmatpush2.msra.mxu0 0.0
        %1122 = vmatprep.mubr.f32.mxu0 0.0
        %1123 = vmatmul.mubr.f32.gmra.mxu0 %v1053
        %v1124 = vpop.f32.mrf.mxu0
        %v1125 = vadd.f32 %v1051, %v1124
        %v1126 = vpop.f32.mrf.mxu0
        %1127 = vdwg.mxu0
        %v1128 = vmax.f32 %v1125, 0.0
        %v1129 = vld [vmem:[%s5 + $0x4] sm:$0x1]
        %s1130 = scalar_lea.vmem [#allocation2], 128
        %v1131 = vld [vmem:[%s1130] sm:$0xff]
        %v1132 = vld [vmem:[%s1130 + $0x8] sm:$0xff]
        %v1133 = vld [vmem:[%s1130 + $0x10] sm:$0xff]
        %v1134 = vld [vmem:[%s1130 + $0x18] sm:$0xff]
        %v1135 = vlaneseq
        %v1136 = vshrl.u32 %v1135, 7
        %v1137 = vsub.s32 0, %v1136
        %v1138 = vrot.slane %v1129, %v1137
        %v1140 = vsel %vm467, %v1128, 0
        %1142 = vmatprep.subr.mxu0 0.0
        %1143 = vmatpush1.msra.mxu0 0.0
        %1144 = vmatprep.subr.mxu0 0.0
        %1145 = vmatpush1.msra.mxu0 0.0
        %1146 = vmatprep.subr.mxu0 0.0
        %1147 = vmatpush1.msra.mxu0 0.0
        %1148 = vmatprep.subr.mxu0 0.0
        %1149 = vmatpush1.msra.mxu0 0.0
        %1150 = vmatprep.subr.mxu0 0.0
        %1151 = vmatpush1.msra.mxu0 0.0
        %1152 = vmatprep.subr.mxu0 0.0
        %1153 = vmatpush1.msra.mxu0 0.0
        %1154 = vmatprep.subr.mxu0 0.0
        %1155 = vmatpush1.msra.mxu0 0.0
        %1156 = vmatprep.subr.mxu0 0.0
        %1157 = vmatpush1.msra.mxu0 0.0
        %1158 = vmatprep.subr.mxu0 0.0
        %1159 = vmatpush1.msra.mxu0 0.0
        %1160 = vmatprep.subr.mxu0 0.0
        %1161 = vmatpush1.msra.mxu0 0.0
        %1162 = vmatprep.subr.mxu0 0.0
        %1163 = vmatpush1.msra.mxu0 0.0
        %1164 = vmatprep.subr.mxu0 0.0
        %1165 = vmatpush1.msra.mxu0 0.0
        %1166 = vmatprep.subr.mxu0 0.0
        %1167 = vmatpush1.msra.mxu0 %v1134
        %1168 = vmatprep.subr.mxu0 0.0
        %1169 = vmatpush1.msra.mxu0 %v1133
        %1170 = vmatprep.subr.mxu0 0.0
        %1171 = vmatpush1.msra.mxu0 %v1132
        %1172 = vmatprep.subr.mxu0 0.0
        %1173 = vmatpush1.msra.mxu0 %v1131
        %1174 = vmatprep.subr.mxu0 0.0
        %1175 = vmatpush2.msra.mxu0 0.0
        %1176 = vmatprep.subr.mxu0 0.0
        %1177 = vmatpush2.msra.mxu0 0.0
        %1178 = vmatprep.subr.mxu0 0.0
        %1179 = vmatpush2.msra.mxu0 0.0
        %1180 = vmatprep.subr.mxu0 0.0
        %1181 = vmatpush2.msra.mxu0 0.0
        %1182 = vmatprep.subr.mxu0 0.0
        %1183 = vmatpush2.msra.mxu0 0.0
        %1184 = vmatprep.subr.mxu0 0.0
        %1185 = vmatpush2.msra.mxu0 0.0
        %1186 = vmatprep.subr.mxu0 0.0
        %1187 = vmatpush2.msra.mxu0 0.0
        %1188 = vmatprep.subr.mxu0 0.0
        %1189 = vmatpush2.msra.mxu0 0.0
        %1190 = vmatprep.subr.mxu0 0.0
        %1191 = vmatpush2.msra.mxu0 0.0
        %1192 = vmatprep.subr.mxu0 0.0
        %1193 = vmatpush2.msra.mxu0 0.0
        %1194 = vmatprep.subr.mxu0 0.0
        %1195 = vmatpush2.msra.mxu0 0.0
        %1196 = vmatprep.subr.mxu0 0.0
        %1197 = vmatpush2.msra.mxu0 0.0
        %1198 = vmatprep.subr.mxu0 0.0
        %1199 = vmatpush2.msra.mxu0 0.0
        %1200 = vmatprep.subr.mxu0 0.0
        %1201 = vmatpush2.msra.mxu0 0.0
        %1202 = vmatprep.subr.mxu0 0.0
        %1203 = vmatpush2.msra.mxu0 0.0
        %1204 = vmatprep.subr.mxu0 0.0
        %1205 = vmatpush2.msra.mxu0 0.0
        %1206 = vmatprep.mubr.f32.mxu0 0.0
        %1207 = vmatmul.mubr.f32.gmra.mxu0 %v1140
        %v1208 = vpop.f32.mrf.mxu0
        %v1209 = vadd.f32 %v1138, %v1208
        %v1210 = vpop.f32.mrf.mxu0
        %1211 = vdwg.mxu0
        %v1212 = vmax.f32 %v1209, 0.0
        %v1213 = vld [vmem:[%s5 + $0x5] sm:$0x1]
        %s1214 = scalar_lea.vmem [#allocation2], 160
        %v1215 = vld [vmem:[%s1214] sm:$0xff]
        %v1216 = vld [vmem:[%s1214 + $0x8] sm:$0xff]
        %v1217 = vld [vmem:[%s1214 + $0x10] sm:$0xff]
        %v1218 = vld [vmem:[%s1214 + $0x18] sm:$0xff]
        %v1219 = vlaneseq
        %v1220 = vshrl.u32 %v1219, 7
        %v1221 = vsub.s32 0, %v1220
        %v1222 = vrot.slane %v1213, %v1221
        %v1224 = vsel %vm467, %v1212, 0
        %1226 = vmatprep.subr.mxu0 0.0
        %1227 = vmatpush1.msra.mxu0 0.0
        %1228 = vmatprep.subr.mxu0 0.0
        %1229 = vmatpush1.msra.mxu0 0.0
        %1230 = vmatprep.subr.mxu0 0.0
        %1231 = vmatpush1.msra.mxu0 0.0
        %1232 = vmatprep.subr.mxu0 0.0
        %1233 = vmatpush1.msra.mxu0 0.0
        %1234 = vmatprep.subr.mxu0 0.0
        %1235 = vmatpush1.msra.mxu0 0.0
        %1236 = vmatprep.subr.mxu0 0.0
        %1237 = vmatpush1.msra.mxu0 0.0
        %1238 = vmatprep.subr.mxu0 0.0
        %1239 = vmatpush1.msra.mxu0 0.0
        %1240 = vmatprep.subr.mxu0 0.0
        %1241 = vmatpush1.msra.mxu0 0.0
        %1242 = vmatprep.subr.mxu0 0.0
        %1243 = vmatpush1.msra.mxu0 0.0
        %1244 = vmatprep.subr.mxu0 0.0
        %1245 = vmatpush1.msra.mxu0 0.0
        %1246 = vmatprep.subr.mxu0 0.0
        %1247 = vmatpush1.msra.mxu0 0.0
        %1248 = vmatprep.subr.mxu0 0.0
        %1249 = vmatpush1.msra.mxu0 0.0
        %1250 = vmatprep.subr.mxu0 0.0
        %1251 = vmatpush1.msra.mxu0 %v1218
        %1252 = vmatprep.subr.mxu0 0.0
        %1253 = vmatpush1.msra.mxu0 %v1217
        %1254 = vmatprep.subr.mxu0 0.0
        %1255 = vmatpush1.msra.mxu0 %v1216
        %1256 = vmatprep.subr.mxu0 0.0
        %1257 = vmatpush1.msra.mxu0 %v1215
        %1258 = vmatprep.subr.mxu0 0.0
        %1259 = vmatpush2.msra.mxu0 0.0
        %1260 = vmatprep.subr.mxu0 0.0
        %1261 = vmatpush2.msra.mxu0 0.0
        %1262 = vmatprep.subr.mxu0 0.0
        %1263 = vmatpush2.msra.mxu0 0.0
        %1264 = vmatprep.subr.mxu0 0.0
        %1265 = vmatpush2.msra.mxu0 0.0
        %1266 = vmatprep.subr.mxu0 0.0
        %1267 = vmatpush2.msra.mxu0 0.0
        %1268 = vmatprep.subr.mxu0 0.0
        %1269 = vmatpush2.msra.mxu0 0.0
        %1270 = vmatprep.subr.mxu0 0.0
        %1271 = vmatpush2.msra.mxu0 0.0
        %1272 = vmatprep.subr.mxu0 0.0
        %1273 = vmatpush2.msra.mxu0 0.0
        %1274 = vmatprep.subr.mxu0 0.0
        %1275 = vmatpush2.msra.mxu0 0.0
        %1276 = vmatprep.subr.mxu0 0.0
        %1277 = vmatpush2.msra.mxu0 0.0
        %1278 = vmatprep.subr.mxu0 0.0
        %1279 = vmatpush2.msra.mxu0 0.0
        %1280 = vmatprep.subr.mxu0 0.0
        %1281 = vmatpush2.msra.mxu0 0.0
        %1282 = vmatprep.subr.mxu0 0.0
        %1283 = vmatpush2.msra.mxu0 0.0
        %1284 = vmatprep.subr.mxu0 0.0
        %1285 = vmatpush2.msra.mxu0 0.0
        %1286 = vmatprep.subr.mxu0 0.0
        %1287 = vmatpush2.msra.mxu0 0.0
        %1288 = vmatprep.subr.mxu0 0.0
        %1289 = vmatpush2.msra.mxu0 0.0
        %1290 = vmatprep.mubr.f32.mxu0 0.0
        %1291 = vmatmul.mubr.f32.gmra.mxu0 %v1224
        %v1292 = vpop.f32.mrf.mxu0
        %v1293 = vadd.f32 %v1222, %v1292
        %v1294 = vpop.f32.mrf.mxu0
        %1295 = vdwg.mxu0
        %v1296 = vmax.f32 %v1293, 0.0
        %v1297 = vld [vmem:[%s7 + $0x2] sm:$0x1]
        %s1298 = scalar_lea.vmem %s6, 64
        %v1299 = vld [vmem:[%s1298] sm:$0xff]
        %v1300 = vld [vmem:[%s1298 + $0x8] sm:$0xff]
        %v1301 = vld [vmem:[%s1298 + $0x10] sm:$0xff]
        %v1302 = vld [vmem:[%s1298 + $0x18] sm:$0xff]
        %v1303 = vlaneseq
        %v1304 = vshrl.u32 %v1303, 7
        %v1305 = vsub.s32 0, %v1304
        %v1306 = vrot.slane %v1297, %v1305
        %v1308 = vsel %vm467, %v1296, 0
        %1310 = vmatprep.subr.mxu0 0.0
        %1311 = vmatpush1.msra.mxu0 0.0
        %1312 = vmatprep.subr.mxu0 0.0
        %1313 = vmatpush1.msra.mxu0 0.0
        %1314 = vmatprep.subr.mxu0 0.0
        %1315 = vmatpush1.msra.mxu0 0.0
        %1316 = vmatprep.subr.mxu0 0.0
        %1317 = vmatpush1.msra.mxu0 0.0
        %1318 = vmatprep.subr.mxu0 0.0
        %1319 = vmatpush1.msra.mxu0 0.0
        %1320 = vmatprep.subr.mxu0 0.0
        %1321 = vmatpush1.msra.mxu0 0.0
        %1322 = vmatprep.subr.mxu0 0.0
        %1323 = vmatpush1.msra.mxu0 0.0
        %1324 = vmatprep.subr.mxu0 0.0
        %1325 = vmatpush1.msra.mxu0 0.0
        %1326 = vmatprep.subr.mxu0 0.0
        %1327 = vmatpush1.msra.mxu0 0.0
        %1328 = vmatprep.subr.mxu0 0.0
        %1329 = vmatpush1.msra.mxu0 0.0
        %1330 = vmatprep.subr.mxu0 0.0
        %1331 = vmatpush1.msra.mxu0 0.0
        %1332 = vmatprep.subr.mxu0 0.0
        %1333 = vmatpush1.msra.mxu0 0.0
        %1334 = vmatprep.subr.mxu0 0.0
        %1335 = vmatpush1.msra.mxu0 %v1302
        %1336 = vmatprep.subr.mxu0 0.0
        %1337 = vmatpush1.msra.mxu0 %v1301
        %1338 = vmatprep.subr.mxu0 0.0
        %1339 = vmatpush1.msra.mxu0 %v1300
        %1340 = vmatprep.subr.mxu0 0.0
        %1341 = vmatpush1.msra.mxu0 %v1299
        %1342 = vmatprep.subr.mxu0 0.0
        %1343 = vmatpush2.msra.mxu0 0.0
        %1344 = vmatprep.subr.mxu0 0.0
        %1345 = vmatpush2.msra.mxu0 0.0
        %1346 = vmatprep.subr.mxu0 0.0
        %1347 = vmatpush2.msra.mxu0 0.0
        %1348 = vmatprep.subr.mxu0 0.0
        %1349 = vmatpush2.msra.mxu0 0.0
        %1350 = vmatprep.subr.mxu0 0.0
        %1351 = vmatpush2.msra.mxu0 0.0
        %1352 = vmatprep.subr.mxu0 0.0
        %1353 = vmatpush2.msra.mxu0 0.0
        %1354 = vmatprep.subr.mxu0 0.0
        %1355 = vmatpush2.msra.mxu0 0.0
        %1356 = vmatprep.subr.mxu0 0.0
        %1357 = vmatpush2.msra.mxu0 0.0
        %1358 = vmatprep.subr.mxu0 0.0
        %1359 = vmatpush2.msra.mxu0 0.0
        %1360 = vmatprep.subr.mxu0 0.0
        %1361 = vmatpush2.msra.mxu0 0.0
        %1362 = vmatprep.subr.mxu0 0.0
        %1363 = vmatpush2.msra.mxu0 0.0
        %1364 = vmatprep.subr.mxu0 0.0
        %1365 = vmatpush2.msra.mxu0 0.0
        %1366 = vmatprep.subr.mxu0 0.0
        %1367 = vmatpush2.msra.mxu0 0.0
        %1368 = vmatprep.subr.mxu0 0.0
        %1369 = vmatpush2.msra.mxu0 0.0
        %1370 = vmatprep.subr.mxu0 0.0
        %1371 = vmatpush2.msra.mxu0 0.0
        %1372 = vmatprep.subr.mxu0 0.0
        %1373 = vmatpush2.msra.mxu0 0.0
        %1374 = vmatprep.mubr.f32.mxu0 0.0
        %1375 = vmatmul.mubr.f32.gmra.mxu0 %v1308
        %v1376 = vpop.f32.mrf.mxu0
        %v1377 = vadd.f32 %v1306, %v1376
        %v1378 = vpop.f32.mrf.mxu0
        %1379 = vdwg.mxu0
        %v1380 = vadd.f32 %v708, %v1377
        %v1381 = vld [vmem:[%s3 + $0x3] sm:$0x1]
        %s1382 = scalar_lea.vmem %s2, 12
        %v1383 = vld [vmem:[%s1382] sm:$0xf]
        %v1384 = vlaneseq
        %v1385 = vshrl.u32 %v1384, 7
        %v1386 = vsub.s32 0, %v1385
        %v1387 = vrot.slane %v1381, %v1386
        %v1389 = vsel %vm379, %v1380, 0
        %v1392 = vsel %vm383, %v1383, 0
        %1394 = vmatprep.subr.mxu0 0.0
        %1395 = vmatpush1.msra.mxu0 0.0
        %1396 = vmatprep.subr.mxu0 0.0
        %1397 = vmatpush1.msra.mxu0 0.0
        %1398 = vmatprep.subr.mxu0 0.0
        %1399 = vmatpush1.msra.mxu0 0.0
        %1400 = vmatprep.subr.mxu0 0.0
        %1401 = vmatpush1.msra.mxu0 0.0
        %1402 = vmatprep.subr.mxu0 0.0
        %1403 = vmatpush1.msra.mxu0 0.0
        %1404 = vmatprep.subr.mxu0 0.0
        %1405 = vmatpush1.msra.mxu0 0.0
        %1406 = vmatprep.subr.mxu0 0.0
        %1407 = vmatpush1.msra.mxu0 0.0
        %1408 = vmatprep.subr.mxu0 0.0
        %1409 = vmatpush1.msra.mxu0 0.0
        %1410 = vmatprep.subr.mxu0 0.0
        %1411 = vmatpush1.msra.mxu0 0.0
        %1412 = vmatprep.subr.mxu0 0.0
        %1413 = vmatpush1.msra.mxu0 0.0
        %1414 = vmatprep.subr.mxu0 0.0
        %1415 = vmatpush1.msra.mxu0 0.0
        %1416 = vmatprep.subr.mxu0 0.0
        %1417 = vmatpush1.msra.mxu0 0.0
        %1418 = vmatprep.subr.mxu0 0.0
        %1419 = vmatpush1.msra.mxu0 0.0
        %1420 = vmatprep.subr.mxu0 0.0
        %1421 = vmatpush1.msra.mxu0 0.0
        %1422 = vmatprep.subr.mxu0 0.0
        %1423 = vmatpush1.msra.mxu0 0.0
        %1424 = vmatprep.subr.mxu0 0.0
        %1425 = vmatpush1.msra.mxu0 %v1392
        %1426 = vmatprep.subr.mxu0 0.0
        %1427 = vmatpush2.msra.mxu0 0.0
        %1428 = vmatprep.subr.mxu0 0.0
        %1429 = vmatpush2.msra.mxu0 0.0
        %1430 = vmatprep.subr.mxu0 0.0
        %1431 = vmatpush2.msra.mxu0 0.0
        %1432 = vmatprep.subr.mxu0 0.0
        %1433 = vmatpush2.msra.mxu0 0.0
        %1434 = vmatprep.subr.mxu0 0.0
        %1435 = vmatpush2.msra.mxu0 0.0
        %1436 = vmatprep.subr.mxu0 0.0
        %1437 = vmatpush2.msra.mxu0 0.0
        %1438 = vmatprep.subr.mxu0 0.0
        %1439 = vmatpush2.msra.mxu0 0.0
        %1440 = vmatprep.subr.mxu0 0.0
        %1441 = vmatpush2.msra.mxu0 0.0
        %1442 = vmatprep.subr.mxu0 0.0
        %1443 = vmatpush2.msra.mxu0 0.0
        %1444 = vmatprep.subr.mxu0 0.0
        %1445 = vmatpush2.msra.mxu0 0.0
        %1446 = vmatprep.subr.mxu0 0.0
        %1447 = vmatpush2.msra.mxu0 0.0
        %1448 = vmatprep.subr.mxu0 0.0
        %1449 = vmatpush2.msra.mxu0 0.0
        %1450 = vmatprep.subr.mxu0 0.0
        %1451 = vmatpush2.msra.mxu0 0.0
        %1452 = vmatprep.subr.mxu0 0.0
        %1453 = vmatpush2.msra.mxu0 0.0
        %1454 = vmatprep.subr.mxu0 0.0
        %1455 = vmatpush2.msra.mxu0 0.0
        %1456 = vmatprep.subr.mxu0 0.0
        %1457 = vmatpush2.msra.mxu0 0.0
        %1458 = vmatprep.mubr.f32.mxu0 0.0
        %1459 = vmatmul.mubr.f32.gmra.mxu0 %v1389
        %v1460 = vpop.f32.mrf.mxu0
        %v1461 = vadd.f32 %v1387, %v1460
        %v1462 = vpop.f32.mrf.mxu0
        %1463 = vdwg.mxu0
        %v1464 = vmax.f32 %v1461, 0.0
        %v1465 = vld [vmem:[%s5 + $0x6] sm:$0x1]
        %s1466 = scalar_lea.vmem [#allocation2], 192
        %v1467 = vld [vmem:[%s1466] sm:$0xff]
        %v1468 = vld [vmem:[%s1466 + $0x8] sm:$0xff]
        %v1469 = vld [vmem:[%s1466 + $0x10] sm:$0xff]
        %v1470 = vld [vmem:[%s1466 + $0x18] sm:$0xff]
        %v1471 = vlaneseq
        %v1472 = vshrl.u32 %v1471, 7
        %v1473 = vsub.s32 0, %v1472
        %v1474 = vrot.slane %v1465, %v1473
        %v1476 = vsel %vm467, %v1464, 0
        %1478 = vmatprep.subr.mxu0 0.0
        %1479 = vmatpush1.msra.mxu0 0.0
        %1480 = vmatprep.subr.mxu0 0.0
        %1481 = vmatpush1.msra.mxu0 0.0
        %1482 = vmatprep.subr.mxu0 0.0
        %1483 = vmatpush1.msra.mxu0 0.0
        %1484 = vmatprep.subr.mxu0 0.0
        %1485 = vmatpush1.msra.mxu0 0.0
        %1486 = vmatprep.subr.mxu0 0.0
        %1487 = vmatpush1.msra.mxu0 0.0
        %1488 = vmatprep.subr.mxu0 0.0
        %1489 = vmatpush1.msra.mxu0 0.0
        %1490 = vmatprep.subr.mxu0 0.0
        %1491 = vmatpush1.msra.mxu0 0.0
        %1492 = vmatprep.subr.mxu0 0.0
        %1493 = vmatpush1.msra.mxu0 0.0
        %1494 = vmatprep.subr.mxu0 0.0
        %1495 = vmatpush1.msra.mxu0 0.0
        %1496 = vmatprep.subr.mxu0 0.0
        %1497 = vmatpush1.msra.mxu0 0.0
        %1498 = vmatprep.subr.mxu0 0.0
        %1499 = vmatpush1.msra.mxu0 0.0
        %1500 = vmatprep.subr.mxu0 0.0
        %1501 = vmatpush1.msra.mxu0 0.0
        %1502 = vmatprep.subr.mxu0 0.0
        %1503 = vmatpush1.msra.mxu0 %v1470
        %1504 = vmatprep.subr.mxu0 0.0
        %1505 = vmatpush1.msra.mxu0 %v1469
        %1506 = vmatprep.subr.mxu0 0.0
        %1507 = vmatpush1.msra.mxu0 %v1468
        %1508 = vmatprep.subr.mxu0 0.0
        %1509 = vmatpush1.msra.mxu0 %v1467
        %1510 = vmatprep.subr.mxu0 0.0
        %1511 = vmatpush2.msra.mxu0 0.0
        %1512 = vmatprep.subr.mxu0 0.0
        %1513 = vmatpush2.msra.mxu0 0.0
        %1514 = vmatprep.subr.mxu0 0.0
        %1515 = vmatpush2.msra.mxu0 0.0
        %1516 = vmatprep.subr.mxu0 0.0
        %1517 = vmatpush2.msra.mxu0 0.0
        %1518 = vmatprep.subr.mxu0 0.0
        %1519 = vmatpush2.msra.mxu0 0.0
        %1520 = vmatprep.subr.mxu0 0.0
        %1521 = vmatpush2.msra.mxu0 0.0
        %1522 = vmatprep.subr.mxu0 0.0
        %1523 = vmatpush2.msra.mxu0 0.0
        %1524 = vmatprep.subr.mxu0 0.0
        %1525 = vmatpush2.msra.mxu0 0.0
        %1526 = vmatprep.subr.mxu0 0.0
        %1527 = vmatpush2.msra.mxu0 0.0
        %1528 = vmatprep.subr.mxu0 0.0
        %1529 = vmatpush2.msra.mxu0 0.0
        %1530 = vmatprep.subr.mxu0 0.0
        %1531 = vmatpush2.msra.mxu0 0.0
        %1532 = vmatprep.subr.mxu0 0.0
        %1533 = vmatpush2.msra.mxu0 0.0
        %1534 = vmatprep.subr.mxu0 0.0
        %1535 = vmatpush2.msra.mxu0 0.0
        %1536 = vmatprep.subr.mxu0 0.0
        %1537 = vmatpush2.msra.mxu0 0.0
        %1538 = vmatprep.subr.mxu0 0.0
        %1539 = vmatpush2.msra.mxu0 0.0
        %1540 = vmatprep.subr.mxu0 0.0
        %1541 = vmatpush2.msra.mxu0 0.0
        %1542 = vmatprep.mubr.f32.mxu0 0.0
        %1543 = vmatmul.mubr.f32.gmra.mxu0 %v1476
        %v1544 = vpop.f32.mrf.mxu0
        %v1545 = vadd.f32 %v1474, %v1544
        %v1546 = vpop.f32.mrf.mxu0
        %1547 = vdwg.mxu0
        %v1548 = vmax.f32 %v1545, 0.0
        %v1549 = vld [vmem:[%s5 + $0x7] sm:$0x1]
        %s1550 = scalar_lea.vmem [#allocation2], 224
        %v1551 = vld [vmem:[%s1550] sm:$0xff]
        %v1552 = vld [vmem:[%s1550 + $0x8] sm:$0xff]
        %v1553 = vld [vmem:[%s1550 + $0x10] sm:$0xff]
        %v1554 = vld [vmem:[%s1550 + $0x18] sm:$0xff]
        %v1555 = vlaneseq
        %v1556 = vshrl.u32 %v1555, 7
        %v1557 = vsub.s32 0, %v1556
        %v1558 = vrot.slane %v1549, %v1557
        %v1560 = vsel %vm467, %v1548, 0
        %1562 = vmatprep.subr.mxu0 0.0
        %1563 = vmatpush1.msra.mxu0 0.0
        %1564 = vmatprep.subr.mxu0 0.0
        %1565 = vmatpush1.msra.mxu0 0.0
        %1566 = vmatprep.subr.mxu0 0.0
        %1567 = vmatpush1.msra.mxu0 0.0
        %1568 = vmatprep.subr.mxu0 0.0
        %1569 = vmatpush1.msra.mxu0 0.0
        %1570 = vmatprep.subr.mxu0 0.0
        %1571 = vmatpush1.msra.mxu0 0.0
        %1572 = vmatprep.subr.mxu0 0.0
        %1573 = vmatpush1.msra.mxu0 0.0
        %1574 = vmatprep.subr.mxu0 0.0
        %1575 = vmatpush1.msra.mxu0 0.0
        %1576 = vmatprep.subr.mxu0 0.0
        %1577 = vmatpush1.msra.mxu0 0.0
        %1578 = vmatprep.subr.mxu0 0.0
        %1579 = vmatpush1.msra.mxu0 0.0
        %1580 = vmatprep.subr.mxu0 0.0
        %1581 = vmatpush1.msra.mxu0 0.0
        %1582 = vmatprep.subr.mxu0 0.0
        %1583 = vmatpush1.msra.mxu0 0.0
        %1584 = vmatprep.subr.mxu0 0.0
        %1585 = vmatpush1.msra.mxu0 0.0
        %1586 = vmatprep.subr.mxu0 0.0
        %1587 = vmatpush1.msra.mxu0 %v1554
        %1588 = vmatprep.subr.mxu0 0.0
        %1589 = vmatpush1.msra.mxu0 %v1553
        %1590 = vmatprep.subr.mxu0 0.0
        %1591 = vmatpush1.msra.mxu0 %v1552
        %1592 = vmatprep.subr.mxu0 0.0
        %1593 = vmatpush1.msra.mxu0 %v1551
        %1594 = vmatprep.subr.mxu0 0.0
        %1595 = vmatpush2.msra.mxu0 0.0
        %1596 = vmatprep.subr.mxu0 0.0
        %1597 = vmatpush2.msra.mxu0 0.0
        %1598 = vmatprep.subr.mxu0 0.0
        %1599 = vmatpush2.msra.mxu0 0.0
        %1600 = vmatprep.subr.mxu0 0.0
        %1601 = vmatpush2.msra.mxu0 0.0
        %1602 = vmatprep.subr.mxu0 0.0
        %1603 = vmatpush2.msra.mxu0 0.0
        %1604 = vmatprep.subr.mxu0 0.0
        %1605 = vmatpush2.msra.mxu0 0.0
        %1606 = vmatprep.subr.mxu0 0.0
        %1607 = vmatpush2.msra.mxu0 0.0
        %1608 = vmatprep.subr.mxu0 0.0
        %1609 = vmatpush2.msra.mxu0 0.0
        %1610 = vmatprep.subr.mxu0 0.0
        %1611 = vmatpush2.msra.mxu0 0.0
        %1612 = vmatprep.subr.mxu0 0.0
        %1613 = vmatpush2.msra.mxu0 0.0
        %1614 = vmatprep.subr.mxu0 0.0
        %1615 = vmatpush2.msra.mxu0 0.0
        %1616 = vmatprep.subr.mxu0 0.0
        %1617 = vmatpush2.msra.mxu0 0.0
        %1618 = vmatprep.subr.mxu0 0.0
        %1619 = vmatpush2.msra.mxu0 0.0
        %1620 = vmatprep.subr.mxu0 0.0
        %1621 = vmatpush2.msra.mxu0 0.0
        %1622 = vmatprep.subr.mxu0 0.0
        %1623 = vmatpush2.msra.mxu0 0.0
        %1624 = vmatprep.subr.mxu0 0.0
        %1625 = vmatpush2.msra.mxu0 0.0
        %1626 = vmatprep.mubr.f32.mxu0 0.0
        %1627 = vmatmul.mubr.f32.gmra.mxu0 %v1560
        %v1628 = vpop.f32.mrf.mxu0
        %v1629 = vadd.f32 %v1558, %v1628
        %v1630 = vpop.f32.mrf.mxu0
        %1631 = vdwg.mxu0
        %v1632 = vmax.f32 %v1629, 0.0
        %v1633 = vld [vmem:[%s7 + $0x3] sm:$0x1]
        %s1634 = scalar_lea.vmem %s6, 96
        %v1635 = vld [vmem:[%s1634] sm:$0xff]
        %v1636 = vld [vmem:[%s1634 + $0x8] sm:$0xff]
        %v1637 = vld [vmem:[%s1634 + $0x10] sm:$0xff]
        %v1638 = vld [vmem:[%s1634 + $0x18] sm:$0xff]
        %v1639 = vlaneseq
        %v1640 = vshrl.u32 %v1639, 7
        %v1641 = vsub.s32 0, %v1640
        %v1642 = vrot.slane %v1633, %v1641
        %v1644 = vsel %vm467, %v1632, 0
        %1646 = vmatprep.subr.mxu0 0.0
        %1647 = vmatpush1.msra.mxu0 0.0
        %1648 = vmatprep.subr.mxu0 0.0
        %1649 = vmatpush1.msra.mxu0 0.0
        %1650 = vmatprep.subr.mxu0 0.0
        %1651 = vmatpush1.msra.mxu0 0.0
        %1652 = vmatprep.subr.mxu0 0.0
        %1653 = vmatpush1.msra.mxu0 0.0
        %1654 = vmatprep.subr.mxu0 0.0
        %1655 = vmatpush1.msra.mxu0 0.0
        %1656 = vmatprep.subr.mxu0 0.0
        %1657 = vmatpush1.msra.mxu0 0.0
        %1658 = vmatprep.subr.mxu0 0.0
        %1659 = vmatpush1.msra.mxu0 0.0
        %1660 = vmatprep.subr.mxu0 0.0
        %1661 = vmatpush1.msra.mxu0 0.0
        %1662 = vmatprep.subr.mxu0 0.0
        %1663 = vmatpush1.msra.mxu0 0.0
        %1664 = vmatprep.subr.mxu0 0.0
        %1665 = vmatpush1.msra.mxu0 0.0
        %1666 = vmatprep.subr.mxu0 0.0
        %1667 = vmatpush1.msra.mxu0 0.0
        %1668 = vmatprep.subr.mxu0 0.0
        %1669 = vmatpush1.msra.mxu0 0.0
        %1670 = vmatprep.subr.mxu0 0.0
        %1671 = vmatpush1.msra.mxu0 %v1638
        %1672 = vmatprep.subr.mxu0 0.0
        %1673 = vmatpush1.msra.mxu0 %v1637
        %1674 = vmatprep.subr.mxu0 0.0
        %1675 = vmatpush1.msra.mxu0 %v1636
        %1676 = vmatprep.subr.mxu0 0.0
        %1677 = vmatpush1.msra.mxu0 %v1635
        %1678 = vmatprep.subr.mxu0 0.0
        %1679 = vmatpush2.msra.mxu0 0.0
        %1680 = vmatprep.subr.mxu0 0.0
        %1681 = vmatpush2.msra.mxu0 0.0
        %1682 = vmatprep.subr.mxu0 0.0
        %1683 = vmatpush2.msra.mxu0 0.0
        %1684 = vmatprep.subr.mxu0 0.0
        %1685 = vmatpush2.msra.mxu0 0.0
        %1686 = vmatprep.subr.mxu0 0.0
        %1687 = vmatpush2.msra.mxu0 0.0
        %1688 = vmatprep.subr.mxu0 0.0
        %1689 = vmatpush2.msra.mxu0 0.0
        %1690 = vmatprep.subr.mxu0 0.0
        %1691 = vmatpush2.msra.mxu0 0.0
        %1692 = vmatprep.subr.mxu0 0.0
        %1693 = vmatpush2.msra.mxu0 0.0
        %1694 = vmatprep.subr.mxu0 0.0
        %1695 = vmatpush2.msra.mxu0 0.0
        %1696 = vmatprep.subr.mxu0 0.0
        %1697 = vmatpush2.msra.mxu0 0.0
        %1698 = vmatprep.subr.mxu0 0.0
        %1699 = vmatpush2.msra.mxu0 0.0
        %1700 = vmatprep.subr.mxu0 0.0
        %1701 = vmatpush2.msra.mxu0 0.0
        %1702 = vmatprep.subr.mxu0 0.0
        %1703 = vmatpush2.msra.mxu0 0.0
        %1704 = vmatprep.subr.mxu0 0.0
        %1705 = vmatpush2.msra.mxu0 0.0
        %1706 = vmatprep.subr.mxu0 0.0
        %1707 = vmatpush2.msra.mxu0 0.0
        %1708 = vmatprep.subr.mxu0 0.0
        %1709 = vmatpush2.msra.mxu0 0.0
        %1710 = vmatprep.mubr.f32.mxu0 0.0
        %1711 = vmatmul.mubr.f32.gmra.mxu0 %v1644
        %v1712 = vpop.f32.mrf.mxu0
        %v1713 = vadd.f32 %v1642, %v1712
        %v1714 = vpop.f32.mrf.mxu0
        %1715 = vdwg.mxu0
        %v1716 = vadd.f32 %v1044, %v1713
        %1717 = vst.msk [vmem:[%s366] sm:$0xff] %vm379, %v1716
        %1718 = vst.msk [vmem:[%s370] sm:$0xff] %vm379, %v1380
        %p1719 = scmp.lt.s32.totalorder %s22, 1
        %s1720 = scalar_select %p1719, %s22, 1
        %s1721 = smul.addr %s1720, 8
        %s1722 = scalar_lea.vmem %s8, %s1721
        %p1723 = scmp.lt.s32.totalorder %s22, 1
        %s1724 = scalar_select %p1723, %s22, 1
        %s1725 = smul.addr %s1724, 8
        %s1726 = scalar_lea.vmem %s9, %s1725
        // Predicated region
        $region57: #{tpu_custom_call.1} parent=51 // pred_check
          %p1727 = pneg %p218
        $region58: #{tpu_custom_call.1} parent=51 // pred_check_branch
          %1729 = sbr.rel (%p1727) target = $region60
        $region59: #{tpu_custom_call.1} parent=51 // pred_region
          _
        $region60: #{tpu_custom_call.1} parent=51 // pred_fallthru
          _
        // Predicated region
        $region61: #{tpu_custom_call.1} parent=51 // pred_check
          %p1730 = pneg %p244
        $region62: #{tpu_custom_call.1} parent=51 // pred_check_branch
          %1732 = sbr.rel (%p1730) target = $region64
        $region63: #{tpu_custom_call.1} parent=51 // pred_region
          _
        $region64: #{tpu_custom_call.1} parent=51 // pred_fallthru
          _
      $region52: #{tpu_custom_call.1} parent=5 // pred_fallthru
        _
      %p1733 = scmp.le.s32.totalorder 2, %s17
      // Predicated region
      $region65: #{tpu_custom_call.1} parent=5 // pred_check
        %p1734 = pneg %p1733
      $region66: #{tpu_custom_call.1} parent=5 // pred_check_branch
        %1736 = sbr.rel (%p1734) target = $region68
      $region67: #{tpu_custom_call.1} parent=5 // pred_region
        %s1737 = ssub.s32 %s17, 2
        // Predicated region
        $region69: #{tpu_custom_call.1} parent=67 // pred_check
          %p1738 = pneg %p224
        $region70: #{tpu_custom_call.1} parent=67 // pred_check_branch
          %1740 = sbr.rel (%p1738) target = $region72
        $region71: #{tpu_custom_call.1} parent=67 // pred_region
          %p1741 = scmp.lt.s32.totalorder %s23, 1
          %s1742 = scalar_select %p1741, %s23, 1
          %s1743 = smul.addr %s1742, 8
          %s1744 = scalar_lea.vmem %s8, %s1743
        $region72: #{tpu_custom_call.1} parent=67 // pred_fallthru
          _
        // Predicated region
        $region73: #{tpu_custom_call.1} parent=67 // pred_check
          %p1745 = pneg %p250
        $region74: #{tpu_custom_call.1} parent=67 // pred_check_branch
          %1747 = sbr.rel (%p1745) target = $region76
        $region75: #{tpu_custom_call.1} parent=67 // pred_region
          %p1748 = scmp.lt.s32.totalorder %s23, 1
          %s1749 = scalar_select %p1748, %s23, 1
          %s1750 = smul.addr %s1749, 8
          %s1751 = scalar_lea.vmem %s9, %s1750
        $region76: #{tpu_custom_call.1} parent=67 // pred_fallthru
          _
      $region68: #{tpu_custom_call.1} parent=5 // pred_fallthru
        _
    $region6: #{tpu_custom_call.1} parent=1 // loop_footer
      %s21 = sadd.s32 1, %s17
    $region7: #{tpu_custom_call.1} parent=1 // loop_footer_branch
      %16 = sbr.rel target = $region3
    $region8: #{tpu_custom_call.1} parent=1 // loop_exit
      _
    %1752 = vsyncpa [#allocation3], 1
    %s1753 = scalar_lea.sflag [#allocation3], 1
    %1754 = vsyncpa %s1753, 1

// kernel: tpu_custom_call.1
$region0: #{tpu_custom_call.1}
  #allocation0 [shape = 'u32[]', space=smem, size = 0x4, offset = 0x4, fixed_abs, tag = 'smem constant byte address 0x4 - core index']
  #allocation1 [shape = 'u32[144,128]{1,0:T(1,128)}', space=vmem, size = 0x12000, scoped, tag = 'internal scratch']
  %s0 = inlined_call_operand.vmem [shape: f32[16,4], index: 0, kind: input, shape index: {}]
  %s1 = inlined_call_operand.vmem [shape: f32[16,4], index: 1, kind: input, shape index: {}]
  %s2 = inlined_call_operand.vmem [shape: f32[4,4,32], index: 2, kind: input, shape index: {}]
  %s3 = inlined_call_operand.vmem [shape: f32[4,32], index: 3, kind: input, shape index: {}]
  %s4 = inlined_call_operand.hbm [shape: f32[8,32,32], index: 4, kind: input, shape index: {}]
  %s5 = inlined_call_operand.vmem [shape: f32[8,32], index: 5, kind: input, shape index: {}]
  %s6 = inlined_call_operand.vmem [shape: f32[4,32,4], index: 6, kind: input, shape index: {}]
  %s7 = inlined_call_operand.vmem [shape: f32[4,4], index: 7, kind: input, shape index: {}]
  %s8 = inlined_call_operand.vmem [shape: f32[16,4], index: 8, kind: output, shape index: {0}]
  %s9 = inlined_call_operand.vmem [shape: f32[16,4], index: 9, kind: output, shape index: {1}]
  %10 = xla_tuple %s8, %s9
  %s11 = sld [smem:[#allocation0]]
  $region77: #{tpu_custom_call.1} parent=0
    _
  %s13 = ssub.s32 1, %s11
  %s14 = scalar_select 0, %s13, %s11
  $region1: #{tpu_custom_call.1} parent=0
    #allocation2 [shape = 'u8[131072]{0}', space=vmem, size = 0x20000, scoped, tag = 'input window, operand 4, single buffered']
    #allocation3 [shape = 's32[2]{0}', space=sflag, size = 0x8, scoped, tag = 'scoped memory for tpu_custom_call.1']
    %15 = vsyncpa [#allocation3], 0
    loop: start=0, step=1, limit=4
    $region2: #{tpu_custom_call.1} parent=1 // loop_pre_header
      _
    $region3: #{tpu_custom_call.1} parent=1 // loop_header
      %s17 = sphi 0, %s21
      %p18 = scmp.ge.s32.totalorder %s17, 4
      %s27 = sphi 0, %s29
      %s30 = sphi 0, %s27
      %s31 = sphi 0, %s30
      %s47 = sphi 0, %s31
      %s53 = sphi 0, %s55
      %s56 = sphi 0, %s53
      %s57 = sphi 0, %s56
      %s73 = sphi 0, %s57
      %s77 = sphi 0, %s77
      %s79 = sphi 0, %s77
      %s80 = sphi 0, %s79
      %s94 = sphi 0, %s80
      %s98 = sphi 0, %s98
      %s100 = sphi 0, %s98
      %s101 = sphi 0, %s100
      %s115 = sphi 0, %s101
      %s119 = sphi 0, %s119
      %s121 = sphi 0, %s119
      %s122 = sphi 0, %s121
      %s136 = sphi 0, %s122
      %s140 = sphi 0, %s140
      %s142 = sphi 0, %s140
      %s143 = sphi 0, %s142
      %s157 = sphi 0, %s143
      %s161 = sphi 0, %s161
      %s163 = sphi 0, %s161
      %s164 = sphi 0, %s163
      %s178 = sphi 0, %s164
      %s182 = sphi 0, %s182
      %s184 = sphi 0, %s182
      %s185 = sphi 0, %s184
      %s199 = sphi 0, %s185
      %s205 = sphi 0, %s207
      %s208 = sphi 0, %s205
      %s209 = sphi 0, %s208
      %s225 = sphi 0, %s209
      %s231 = sphi 0, %s233
      %s234 = sphi 0, %s231
      %s235 = sphi 0, %s234
      %s251 = sphi 0, %s235
    $region4: #{tpu_custom_call.1} parent=1 // loop_header_branch
      %20 = sbr.rel (%p18) target = $region8
    $region5: #{tpu_custom_call.1} parent=1 // loop_body
      %s22 = ssub.s32 %s17, 1
      %s23 = ssub.s32 %s17, 2
      %s24 = sadd.s32 %s17, 1
      %s25 = ssub.s32 %s17, %s24
      %p26 = scmp.eq.s32.totalorder %s25, 0
      %s28 = sadd.s32 %s27, 1
      %s29 = scalar_select %p26, %s27, %s28
      %p32 = pneg %p26
      %p33 = scmp.eq.s32.totalorder %s17, 1
      %p34 = por %p32, %p33
      %p35 = scmp.ne.s32.totalorder %s27, %s30
      %p36 = scmp.eq.s32.totalorder %s17, 0
      %p37 = por %p35, %p36
      %p38 = scmp.ne.s32.totalorder %s27, %s30
      %p39 = scmp.eq.s32.totalorder %s22, 1
      %p40 = por %p38, %p39
      %p41 = scmp.ne.s32.totalorder %s30, %s31
      %p42 = scmp.eq.s32.totalorder %s22, 0
      %p43 = por %p41, %p42
      %p44 = scmp.ne.s32.totalorder %s30, %s31
      %p45 = scmp.eq.s32.totalorder %s23, 1
      %p46 = por %p44, %p45
      %p48 = scmp.ne.s32.totalorder %s31, %s47
      %p49 = scmp.eq.s32.totalorder %s23, 0
      %p50 = por %p48, %p49
      %s51 = ssub.s32 %s17, %s24
      %p52 = scmp.eq.s32.totalorder %s51, 0
      %s54 = sadd.s32 %s53, 1
      %s55 = scalar_select %p52, %s53, %s54
      %p58 = pneg %p52
      %p59 = scmp.eq.s32.totalorder %s17, 1
      %p60 = por %p58, %p59
      %p61 = scmp.ne.s32.totalorder %s53, %s56
      %p62 = scmp.eq.s32.totalorder %s17, 0
      %p63 = por %p61, %p62
      %p64 = scmp.ne.s32.totalorder %s53, %s56
      %p65 = scmp.eq.s32.totalorder %s22, 1
      %p66 = por %p64, %p65
      %p67 = scmp.ne.s32.totalorder %s56, %s57
      %p68 = scmp.eq.s32.totalorder %s22, 0
      %p69 = por %p67, %p68
      %p70 = scmp.ne.s32.totalorder %s56, %s57
      %p71 = scmp.eq.s32.totalorder %s23, 1
      %p72 = por %p70, %p71
      %p74 = scmp.ne.s32.totalorder %s57, %s73
      %p75 = scmp.eq.s32.totalorder %s23, 0
      %p76 = por %p74, %p75
      %s78 = sadd.s32 %s77, 1
      %p81 = scmp.eq.s32.totalorder %s17, 1
      %p82 = scmp.ne.s32.totalorder %s77, %s79
      %p83 = scmp.eq.s32.totalorder %s17, 0
      %p84 = por %p82, %p83
      %p85 = scmp.ne.s32.totalorder %s77, %s79
      %p86 = scmp.eq.s32.totalorder %s22, 1
      %p87 = por %p85, %p86
      %p88 = scmp.ne.s32.totalorder %s79, %s80
      %p89 = scmp.eq.s32.totalorder %s22, 0
      %p90 = por %p88, %p89
      %p91 = scmp.ne.s32.totalorder %s79, %s80
      %p92 = scmp.eq.s32.totalorder %s23, 1
      %p93 = por %p91, %p92
      %p95 = scmp.ne.s32.totalorder %s80, %s94
      %p96 = scmp.eq.s32.totalorder %s23, 0
      %p97 = por %p95, %p96
      %s99 = sadd.s32 %s98, 1
      %p102 = scmp.eq.s32.totalorder %s17, 1
      %p103 = scmp.ne.s32.totalorder %s98, %s100
      %p104 = scmp.eq.s32.totalorder %s17, 0
      %p105 = por %p103, %p104
      %p106 = scmp.ne.s32.totalorder %s98, %s100
      %p107 = scmp.eq.s32.totalorder %s22, 1
      %p108 = por %p106, %p107
      %p109 = scmp.ne.s32.totalorder %s100, %s101
      %p110 = scmp.eq.s32.totalorder %s22, 0
      %p111 = por %p109, %p110
      %p112 = scmp.ne.s32.totalorder %s100, %s101
      %p113 = scmp.eq.s32.totalorder %s23, 1
      %p114 = por %p112, %p113
      %p116 = scmp.ne.s32.totalorder %s101, %s115
      %p117 = scmp.eq.s32.totalorder %s23, 0
      %p118 = por %p116, %p117
      %s120 = sadd.s32 %s119, 1
      %p123 = scmp.eq.s32.totalorder %s17, 1
      %p124 = scmp.ne.s32.totalorder %s119, %s121
      %p125 = scmp.eq.s32.totalorder %s17, 0
      %p126 = por %p124, %p125
      %p127 = scmp.ne.s32.totalorder %s119, %s121
      %p128 = scmp.eq.s32.totalorder %s22, 1
      %p129 = por %p127, %p128
      %p130 = scmp.ne.s32.totalorder %s121, %s122
      %p131 = scmp.eq.s32.totalorder %s22, 0
      %p132 = por %p130, %p131
      %p133 = scmp.ne.s32.totalorder %s121, %s122
      %p134 = scmp.eq.s32.totalorder %s23, 1
      %p135 = por %p133, %p134
      %p137 = scmp.ne.s32.totalorder %s122, %s136
      %p138 = scmp.eq.s32.totalorder %s23, 0
      %p139 = por %p137, %p138
      %s141 = sadd.s32 %s140, 1
      %p144 = scmp.eq.s32.totalorder %s17, 1
      %p145 = scmp.ne.s32.totalorder %s140, %s142
      %p146 = scmp.eq.s32.totalorder %s17, 0
      %p147 = por %p145, %p146
      %p148 = scmp.ne.s32.totalorder %s140, %s142
      %p149 = scmp.eq.s32.totalorder %s22, 1
      %p150 = por %p148, %p149
      %p151 = scmp.ne.s32.totalorder %s142, %s143
      %p152 = scmp.eq.s32.totalorder %s22, 0
      %p153 = por %p151, %p152
      %p154 = scmp.ne.s32.totalorder %s142, %s143
      %p155 = scmp.eq.s32.totalorder %s23, 1
      %p156 = por %p154, %p155
      %p158 = scmp.ne.s32.totalorder %s143, %s157
      %p159 = scmp.eq.s32.totalorder %s23, 0
      %p160 = por %p158, %p159
      %s162 = sadd.s32 %s161, 1
      %p165 = scmp.eq.s32.totalorder %s17, 1
      %p166 = scmp.ne.s32.totalorder %s161, %s163
      %p167 = scmp.eq.s32.totalorder %s17, 0
      %p168 = por %p166, %p167
      %p169 = scmp.ne.s32.totalorder %s161, %s163
      %p170 = scmp.eq.s32.totalorder %s22, 1
      %p171 = por %p169, %p170
      %p172 = scmp.ne.s32.totalorder %s163, %s164
      %p173 = scmp.eq.s32.totalorder %s22, 0
      %p174 = por %p172, %p173
      %p175 = scmp.ne.s32.totalorder %s163, %s164
      %p176 = scmp.eq.s32.totalorder %s23, 1
      %p177 = por %p175, %p176
      %p179 = scmp.ne.s32.totalorder %s164, %s178
      %p180 = scmp.eq.s32.totalorder %s23, 0
      %p181 = por %p179, %p180
      %s183 = sadd.s32 %s182, 1
      %p186 = scmp.eq.s32.totalorder %s17, 1
      %p187 = scmp.ne.s32.totalorder %s182, %s184
      %p188 = scmp.eq.s32.totalorder %s17, 0
      %p189 = por %p187, %p188
      %p190 = scmp.ne.s32.totalorder %s182, %s184
      %p191 = scmp.eq.s32.totalorder %s22, 1
      %p192 = por %p190, %p191
      %p193 = scmp.ne.s32.totalorder %s184, %s185
      %p194 = scmp.eq.s32.totalorder %s22, 0
      %p195 = por %p193, %p194
      %p196 = scmp.ne.s32.totalorder %s184, %s185
      %p197 = scmp.eq.s32.totalorder %s23, 1
      %p198 = por %p196, %p197
      %p200 = scmp.ne.s32.totalorder %s185, %s199
      %p201 = scmp.eq.s32.totalorder %s23, 0
      %p202 = por %p200, %p201
      %s203 = ssub.s32 %s17, %s24
      %p204 = scmp.eq.s32.totalorder %s203, 0
      %s206 = sadd.s32 %s205, 1
      %s207 = scalar_select %p204, %s205, %s206
      %p210 = pneg %p204
      %p211 = scmp.eq.s32.totalorder %s17, 1
      %p212 = por %p210, %p211
      %p213 = scmp.ne.s32.totalorder %s205, %s208
      %p214 = scmp.eq.s32.totalorder %s17, 0
      %p215 = por %p213, %p214
      %p216 = scmp.ne.s32.totalorder %s205, %s208
      %p217 = scmp.eq.s32.totalorder %s22, 1
      %p218 = por %p216, %p217
      %p219 = scmp.ne.s32.totalorder %s208, %s209
      %p220 = scmp.eq.s32.totalorder %s22, 0
      %p221 = por %p219, %p220
      %p222 = scmp.ne.s32.totalorder %s208, %s209
      %p223 = scmp.eq.s32.totalorder %s23, 1
      %p224 = por %p222, %p223
      %p226 = scmp.ne.s32.totalorder %s209, %s225
      %p227 = scmp.eq.s32.totalorder %s23, 0
      %p228 = por %p226, %p227
      %s229 = ssub.s32 %s17, %s24
      %p230 = scmp.eq.s32.totalorder %s229, 0
      %s232 = sadd.s32 %s231, 1
      %s233 = scalar_select %p230, %s231, %s232
      %p236 = pneg %p230
      %p237 = scmp.eq.s32.totalorder %s17, 1
      %p238 = por %p236, %p237
      %p239 = scmp.ne.s32.totalorder %s231, %s234
      %p240 = scmp.eq.s32.totalorder %s17, 0
      %p241 = por %p239, %p240
      %p242 = scmp.ne.s32.totalorder %s231, %s234
      %p243 = scmp.eq.s32.totalorder %s22, 1
      %p244 = por %p242, %p243
      %p245 = scmp.ne.s32.totalorder %s234, %s235
      %p246 = scmp.eq.s32.totalorder %s22, 0
      %p247 = por %p245, %p246
      %p248 = scmp.ne.s32.totalorder %s234, %s235
      %p249 = scmp.eq.s32.totalorder %s23, 1
      %p250 = por %p248, %p249
      %p252 = scmp.ne.s32.totalorder %s235, %s251
      %p253 = scmp.eq.s32.totalorder %s23, 0
      %p254 = por %p252, %p253
      %p255 = scmp.le.s32.totalorder 1, %s17
      %p256 = scmp.lt.s32.totalorder %s17, 3
      %p257 = pnand %p255, %p256
      %p258 = pneg %p257
      // Predicated region
      $region9: #{tpu_custom_call.1} parent=5 // pred_check
        _
      $region10: #{tpu_custom_call.1} parent=5 // pred_check_branch
        %260 = sbr.rel (%p257) target = $region12
      $region11: #{tpu_custom_call.1} parent=5 // pred_region
        %s261 = ssub.s32 %s17, 1
        // Predicated region
        $region13: #{tpu_custom_call.1} parent=11 // pred_check
          %p262 = pneg %p90
        $region14: #{tpu_custom_call.1} parent=11 // pred_check_branch
          %264 = sbr.rel (%p262) target = $region16
        $region15: #{tpu_custom_call.1} parent=11 // pred_region
          _
        $region16: #{tpu_custom_call.1} parent=11 // pred_fallthru
          _
        // Predicated region
        $region17: #{tpu_custom_call.1} parent=11 // pred_check
          %p265 = pneg %p111
        $region18: #{tpu_custom_call.1} parent=11 // pred_check_branch
          %267 = sbr.rel (%p265) target = $region20
        $region19: #{tpu_custom_call.1} parent=11 // pred_region
          _
        $region20: #{tpu_custom_call.1} parent=11 // pred_fallthru
          _
        // Predicated region
        $region21: #{tpu_custom_call.1} parent=11 // pred_check
          %p268 = pneg %p132
        $region22: #{tpu_custom_call.1} parent=11 // pred_check_branch
          %270 = sbr.rel (%p268) target = $region24
        $region23: #{tpu_custom_call.1} parent=11 // pred_region
          %s272 = ssub.s32 4096, 4096
          %273 = vsyncadd [#allocation3], %s272
          %s274 = sshll.u32 [#allocation2], 4
          %s275 = int_to_ptr.vmem [resolvable:$true] %s274
          %280 = dma.hbm_to_vmem [thread:$0]  %s4, 4096, %s275, [#allocation3], 128, 128, 8
        $region24: #{tpu_custom_call.1} parent=11 // pred_fallthru
          _
        // Predicated region
        $region25: #{tpu_custom_call.1} parent=11 // pred_check
          %p281 = pneg %p153
        $region26: #{tpu_custom_call.1} parent=11 // pred_check_branch
          %283 = sbr.rel (%p281) target = $region28
        $region27: #{tpu_custom_call.1} parent=11 // pred_region
          _
        $region28: #{tpu_custom_call.1} parent=11 // pred_fallthru
          _
        // Predicated region
        $region29: #{tpu_custom_call.1} parent=11 // pred_check
          %p284 = pneg %p174
        $region30: #{tpu_custom_call.1} parent=11 // pred_check_branch
          %286 = sbr.rel (%p284) target = $region32
        $region31: #{tpu_custom_call.1} parent=11 // pred_region
          _
        $region32: #{tpu_custom_call.1} parent=11 // pred_fallthru
          _
        // Predicated region
        $region33: #{tpu_custom_call.1} parent=11 // pred_check
          %p287 = pneg %p195
        $region34: #{tpu_custom_call.1} parent=11 // pred_check_branch
          %289 = sbr.rel (%p287) target = $region36
        $region35: #{tpu_custom_call.1} parent=11 // pred_region
          _
        $region36: #{tpu_custom_call.1} parent=11 // pred_fallthru
          _
      $region12: #{tpu_custom_call.1} parent=5 // pred_fallthru
        _
      %p290 = scmp.lt.s32.totalorder %s17, 2
      // Predicated region
      $region37: #{tpu_custom_call.1} parent=5 // pred_check
        %p291 = pneg %p290
      $region38: #{tpu_custom_call.1} parent=5 // pred_check_branch
        %293 = sbr.rel (%p291) target = $region40
      $region39: #{tpu_custom_call.1} parent=5 // pred_region
        // Predicated region
        $region41: #{tpu_custom_call.1} parent=39 // pred_check
          %p294 = pneg %p37
        $region42: #{tpu_custom_call.1} parent=39 // pred_check_branch
          %296 = sbr.rel (%p294) target = $region44
        $region43: #{tpu_custom_call.1} parent=39 // pred_region
          %p297 = scmp.lt.s32.totalorder %s17, 1
          %s298 = scalar_select %p297, %s17, 1
          %s299 = smul.addr %s298, 8
          %s300 = scalar_lea.vmem %s0, %s299
        $region44: #{tpu_custom_call.1} parent=39 // pred_fallthru
          _
        // Predicated region
        $region45: #{tpu_custom_call.1} parent=39 // pred_check
          %p301 = pneg %p63
        $region46: #{tpu_custom_call.1} parent=39 // pred_check_branch
          %303 = sbr.rel (%p301) target = $region48
        $region47: #{tpu_custom_call.1} parent=39 // pred_region
          %p304 = scmp.lt.s32.totalorder %s17, 1
          %s305 = scalar_select %p304, %s17, 1
          %s306 = smul.addr %s305, 8
          %s307 = scalar_lea.vmem %s1, %s306
        $region48: #{tpu_custom_call.1} parent=39 // pred_fallthru
          _
      $region40: #{tpu_custom_call.1} parent=5 // pred_fallthru
        _
      %p308 = scmp.le.s32.totalorder 1, %s17
      %p309 = scmp.lt.s32.totalorder %s17, 3
      %p310 = pnand %p308, %p309
      %p311 = pneg %p310
      // Predicated region
      $region49: #{tpu_custom_call.1} parent=5 // pred_check
        _
      $region50: #{tpu_custom_call.1} parent=5 // pred_check_branch
        %313 = sbr.rel (%p310) target = $region52
      $region51: #{tpu_custom_call.1} parent=5 // pred_region
        %s314 = ssub.s32 %s17, 1
        // Predicated region
        $region53: #{tpu_custom_call.1} parent=51 // pred_check
          %p315 = pneg %p132
        $region54: #{tpu_custom_call.1} parent=51 // pred_check_branch
          %317 = sbr.rel (%p315) target = $region56
        $region55: #{tpu_custom_call.1} parent=51 // pred_region
          %318 = dma.done [#allocation3], 4096
        $region56: #{tpu_custom_call.1} parent=51 // pred_fallthru
          _
        %p319 = scmp.lt.s32.totalorder %s22, 1
        %s320 = scalar_select %p319, %s22, 1
        %s321 = smul.addr %s320, 8
        %s322 = scalar_lea.vmem %s0, %s321
        %p323 = pneg %p43
        %p324 = pneg %p40
        %p325 = scmp.lt.s32.totalorder %s22, 1
        %s326 = scalar_select %p325, %s22, 1
        %s327 = smul.addr %s326, 8
        %s328 = scalar_lea.vmem %s1, %s327
        %p329 = pneg %p69
        %p330 = pneg %p66
        %p331 = pneg %p90
        %p332 = pneg %p87
        %p333 = pneg %p111
        %p334 = pneg %p108
        %p335 = pneg %p132
        %p336 = pneg %p129
        %p337 = pneg %p153
        %p338 = pneg %p150
        %p339 = pneg %p174
        %p340 = pneg %p171
        %p341 = pneg %p195
        %p342 = pneg %p192
        %p343 = pneg %p221
        %p344 = pneg %p218
        %p345 = scmp.lt.s32.totalorder %s22, 1
        %s346 = scalar_select %p345, %s22, 1
        %s347 = smul.addr %s346, 8
        %s348 = scalar_lea.vmem %s8, %s347
        %p349 = pneg %p247
        %p350 = pneg %p244
        %p351 = scmp.lt.s32.totalorder %s22, 1
        %s352 = scalar_select %p351, %s22, 1
        %s353 = smul.addr %s352, 8
        %s354 = scalar_lea.vmem %s9, %s353
        %p355 = scmp.lt.s32.totalorder %s22, 1
        %s356 = scalar_select %p355, %s22, 1
        %s357 = smul.addr %s356, 8
        %s358 = scalar_lea.vmem %s0, %s357
        %p359 = scmp.lt.s32.totalorder %s22, 1
        %s360 = scalar_select %p359, %s22, 1
        %s361 = smul.addr %s360, 8
        %s362 = scalar_lea.vmem %s1, %s361
        %p363 = scmp.lt.s32.totalorder %s22, 1
        %s364 = scalar_select %p363, %s22, 1
        %s365 = smul.addr %s364, 8
        %s366 = scalar_lea.vmem %s8, %s365
        %p367 = scmp.lt.s32.totalorder %s22, 1
        %s368 = scalar_select %p367, %s22, 1
        %s369 = smul.addr %s368, 8
        %s370 = scalar_lea.vmem %s9, %s369
        %v371 = vld [vmem:[%s358] sm:$0xff]
        %v372 = vld [vmem:[%s362] sm:$0xff]
        %v373 = vld [vmem:[%s3] sm:$0x1]
        %v374 = vld [vmem:[%s2] sm:$0xf]
        %v375 = vlaneseq
        %v376 = vshrl.u32 %v375, 7
        %v377 = vsub.s32 0, %v376
        %v378 = vrot.slane %v373, %v377
        %vm379 = vcmask 31744
        %v381 = vsel %vm379, %v371, 0
        %vm383 = vcmask 1043456
        %v385 = vsel %vm383, %v374, 0
        %387 = vmatprep.subr.mxu0 0.0
        %388 = vmatpush1.msra.mxu0 0.0
        %389 = vmatprep.subr.mxu0 0.0
        %390 = vmatpush1.msra.mxu0 0.0
        %391 = vmatprep.subr.mxu0 0.0
        %392 = vmatpush1.msra.mxu0 0.0
        %393 = vmatprep.subr.mxu0 0.0
        %394 = vmatpush1.msra.mxu0 0.0
        %395 = vmatprep.subr.mxu0 0.0
        %396 = vmatpush1.msra.mxu0 0.0
        %397 = vmatprep.subr.mxu0 0.0
        %398 = vmatpush1.msra.mxu0 0.0
        %399 = vmatprep.subr.mxu0 0.0
        %400 = vmatpush1.msra.mxu0 0.0
        %401 = vmatprep.subr.mxu0 0.0
        %402 = vmatpush1.msra.mxu0 0.0
        %403 = vmatprep.subr.mxu0 0.0
        %404 = vmatpush1.msra.mxu0 0.0
        %405 = vmatprep.subr.mxu0 0.0
        %406 = vmatpush1.msra.mxu0 0.0
        %407 = vmatprep.subr.mxu0 0.0
        %408 = vmatpush1.msra.mxu0 0.0
        %409 = vmatprep.subr.mxu0 0.0
        %410 = vmatpush1.msra.mxu0 0.0
        %411 = vmatprep.subr.mxu0 0.0
        %412 = vmatpush1.msra.mxu0 0.0
        %413 = vmatprep.subr.mxu0 0.0
        %414 = vmatpush1.msra.mxu0 0.0
        %415 = vmatprep.subr.mxu0 0.0
        %416 = vmatpush1.msra.mxu0 0.0
        %417 = vmatprep.subr.mxu0 0.0
        %418 = vmatpush1.msra.mxu0 %v385
        %419 = vmatprep.subr.mxu0 0.0
        %420 = vmatpush2.msra.mxu0 0.0
        %421 = vmatprep.subr.mxu0 0.0
        %422 = vmatpush2.msra.mxu0 0.0
        %423 = vmatprep.subr.mxu0 0.0
        %424 = vmatpush2.msra.mxu0 0.0
        %425 = vmatprep.subr.mxu0 0.0
        %426 = vmatpush2.msra.mxu0 0.0
        %427 = vmatprep.subr.mxu0 0.0
        %428 = vmatpush2.msra.mxu0 0.0
        %429 = vmatprep.subr.mxu0 0.0
        %430 = vmatpush2.msra.mxu0 0.0
        %431 = vmatprep.subr.mxu0 0.0
        %432 = vmatpush2.msra.mxu0 0.0
        %433 = vmatprep.subr.mxu0 0.0
        %434 = vmatpush2.msra.mxu0 0.0
        %435 = vmatprep.subr.mxu0 0.0
        %436 = vmatpush2.msra.mxu0 0.0
        %437 = vmatprep.subr.mxu0 0.0
        %438 = vmatpush2.msra.mxu0 0.0
        %439 = vmatprep.subr.mxu0 0.0
        %440 = vmatpush2.msra.mxu0 0.0
        %441 = vmatprep.subr.mxu0 0.0
        %442 = vmatpush2.msra.mxu0 0.0
        %443 = vmatprep.subr.mxu0 0.0
        %444 = vmatpush2.msra.mxu0 0.0
        %445 = vmatprep.subr.mxu0 0.0
        %446 = vmatpush2.msra.mxu0 0.0
        %447 = vmatprep.subr.mxu0 0.0
        %448 = vmatpush2.msra.mxu0 0.0
        %449 = vmatprep.subr.mxu0 0.0
        %450 = vmatpush2.msra.mxu0 0.0
        %451 = vmatprep.mubr.f32.mxu0 0.0
        %452 = vmatmul.mubr.f32.gmra.mxu0 %v381
        %v453 = vpop.f32.mrf.mxu0
        %v454 = vadd.f32 %v378, %v453
        %v455 = vpop.f32.mrf.mxu0
        %456 = vdwg.mxu0
        %v457 = vmax.f32 %v454, 0.0
        %v458 = vld [vmem:[%s5] sm:$0x1]
        %v459 = vld [vmem:[#allocation2] sm:$0xff]
        %v460 = vld [vmem:[#allocation2 + $0x8] sm:$0xff]
        %v461 = vld [vmem:[#allocation2 + $0x10] sm:$0xff]
        %v462 = vld [vmem:[#allocation2 + $0x18] sm:$0xff]
        %v463 = vlaneseq
        %v464 = vshrl.u32 %v463, 7
        %v465 = vsub.s32 0, %v464
        %v466 = vrot.slane %v458, %v465
        %vm467 = vcmask 261120
        %v469 = vsel %vm467, %v457, 0
        %471 = vmatprep.subr.mxu0 0.0
        %472 = vmatpush1.msra.mxu0 0.0
        %473 = vmatprep.subr.mxu0 0.0
        %474 = vmatpush1.msra.mxu0 0.0
        %475 = vmatprep.subr.mxu0 0.0
        %476 = vmatpush1.msra.mxu0 0.0
        %477 = vmatprep.subr.mxu0 0.0
        %478 = vmatpush1.msra.mxu0 0.0
        %479 = vmatprep.subr.mxu0 0.0
        %480 = vmatpush1.msra.mxu0 0.0
        %481 = vmatprep.subr.mxu0 0.0
        %482 = vmatpush1.msra.mxu0 0.0
        %483 = vmatprep.subr.mxu0 0.0
        %484 = vmatpush1.msra.mxu0 0.0
        %485 = vmatprep.subr.mxu0 0.0
        %486 = vmatpush1.msra.mxu0 0.0
        %487 = vmatprep.subr.mxu0 0.0
        %488 = vmatpush1.msra.mxu0 0.0
        %489 = vmatprep.subr.mxu0 0.0
        %490 = vmatpush1.msra.mxu0 0.0
        %491 = vmatprep.subr.mxu0 0.0
        %492 = vmatpush1.msra.mxu0 0.0
        %493 = vmatprep.subr.mxu0 0.0
        %494 = vmatpush1.msra.mxu0 0.0
        %495 = vmatprep.subr.mxu0 0.0
        %496 = vmatpush1.msra.mxu0 %v462
        %497 = vmatprep.subr.mxu0 0.0
        %498 = vmatpush1.msra.mxu0 %v461
        %499 = vmatprep.subr.mxu0 0.0
        %500 = vmatpush1.msra.mxu0 %v460
        %501 = vmatprep.subr.mxu0 0.0
        %502 = vmatpush1.msra.mxu0 %v459
        %503 = vmatprep.subr.mxu0 0.0
        %504 = vmatpush2.msra.mxu0 0.0
        %505 = vmatprep.subr.mxu0 0.0
        %506 = vmatpush2.msra.mxu0 0.0
        %507 = vmatprep.subr.mxu0 0.0
        %508 = vmatpush2.msra.mxu0 0.0
        %509 = vmatprep.subr.mxu0 0.0
        %510 = vmatpush2.msra.mxu0 0.0
        %511 = vmatprep.subr.mxu0 0.0
        %512 = vmatpush2.msra.mxu0 0.0
        %513 = vmatprep.subr.mxu0 0.0
        %514 = vmatpush2.msra.mxu0 0.0
        %515 = vmatprep.subr.mxu0 0.0
        %516 = vmatpush2.msra.mxu0 0.0
        %517 = vmatprep.subr.mxu0 0.0
        %518 = vmatpush2.msra.mxu0 0.0
        %519 = vmatprep.subr.mxu0 0.0
        %520 = vmatpush2.msra.mxu0 0.0
        %521 = vmatprep.subr.mxu0 0.0
        %522 = vmatpush2.msra.mxu0 0.0
        %523 = vmatprep.subr.mxu0 0.0
        %524 = vmatpush2.msra.mxu0 0.0
        %525 = vmatprep.subr.mxu0 0.0
        %526 = vmatpush2.msra.mxu0 0.0
        %527 = vmatprep.subr.mxu0 0.0
        %528 = vmatpush2.msra.mxu0 0.0
        %529 = vmatprep.subr.mxu0 0.0
        %530 = vmatpush2.msra.mxu0 0.0
        %531 = vmatprep.subr.mxu0 0.0
        %532 = vmatpush2.msra.mxu0 0.0
        %533 = vmatprep.subr.mxu0 0.0
        %534 = vmatpush2.msra.mxu0 0.0
        %535 = vmatprep.mubr.f32.mxu0 0.0
        %536 = vmatmul.mubr.f32.gmra.mxu0 %v469
        %v537 = vpop.f32.mrf.mxu0
        %v538 = vadd.f32 %v466, %v537
        %v539 = vpop.f32.mrf.mxu0
        %540 = vdwg.mxu0
        %v541 = vmax.f32 %v538, 0.0
        %v542 = vld [vmem:[%s5 + $0x1] sm:$0x1]
        %s543 = scalar_lea.vmem [#allocation2], 32
        %v544 = vld [vmem:[%s543] sm:$0xff]
        %v545 = vld [vmem:[%s543 + $0x8] sm:$0xff]
        %v546 = vld [vmem:[%s543 + $0x10] sm:$0xff]
        %v547 = vld [vmem:[%s543 + $0x18] sm:$0xff]
        %v548 = vlaneseq
        %v549 = vshrl.u32 %v548, 7
        %v550 = vsub.s32 0, %v549
        %v551 = vrot.slane %v542, %v550
        %v553 = vsel %vm467, %v541, 0
        %555 = vmatprep.subr.mxu0 0.0
        %556 = vmatpush1.msra.mxu0 0.0
        %557 = vmatprep.subr.mxu0 0.0
        %558 = vmatpush1.msra.mxu0 0.0
        %559 = vmatprep.subr.mxu0 0.0
        %560 = vmatpush1.msra.mxu0 0.0
        %561 = vmatprep.subr.mxu0 0.0
        %562 = vmatpush1.msra.mxu0 0.0
        %563 = vmatprep.subr.mxu0 0.0
        %564 = vmatpush1.msra.mxu0 0.0
        %565 = vmatprep.subr.mxu0 0.0
        %566 = vmatpush1.msra.mxu0 0.0
        %567 = vmatprep.subr.mxu0 0.0
        %568 = vmatpush1.msra.mxu0 0.0
        %569 = vmatprep.subr.mxu0 0.0
        %570 = vmatpush1.msra.mxu0 0.0
        %571 = vmatprep.subr.mxu0 0.0
        %572 = vmatpush1.msra.mxu0 0.0
        %573 = vmatprep.subr.mxu0 0.0
        %574 = vmatpush1.msra.mxu0 0.0
        %575 = vmatprep.subr.mxu0 0.0
        %576 = vmatpush1.msra.mxu0 0.0
        %577 = vmatprep.subr.mxu0 0.0
        %578 = vmatpush1.msra.mxu0 0.0
        %579 = vmatprep.subr.mxu0 0.0
        %580 = vmatpush1.msra.mxu0 %v547
        %581 = vmatprep.subr.mxu0 0.0
        %582 = vmatpush1.msra.mxu0 %v546
        %583 = vmatprep.subr.mxu0 0.0
        %584 = vmatpush1.msra.mxu0 %v545
        %585 = vmatprep.subr.mxu0 0.0
        %586 = vmatpush1.msra.mxu0 %v544
        %587 = vmatprep.subr.mxu0 0.0
        %588 = vmatpush2.msra.mxu0 0.0
        %589 = vmatprep.subr.mxu0 0.0
        %590 = vmatpush2.msra.mxu0 0.0
        %591 = vmatprep.subr.mxu0 0.0
        %592 = vmatpush2.msra.mxu0 0.0
        %593 = vmatprep.subr.mxu0 0.0
        %594 = vmatpush2.msra.mxu0 0.0
        %595 = vmatprep.subr.mxu0 0.0
        %596 = vmatpush2.msra.mxu0 0.0
        %597 = vmatprep.subr.mxu0 0.0
        %598 = vmatpush2.msra.mxu0 0.0
        %599 = vmatprep.subr.mxu0 0.0
        %600 = vmatpush2.msra.mxu0 0.0
        %601 = vmatprep.subr.mxu0 0.0
        %602 = vmatpush2.msra.mxu0 0.0
        %603 = vmatprep.subr.mxu0 0.0
        %604 = vmatpush2.msra.mxu0 0.0
        %605 = vmatprep.subr.mxu0 0.0
        %606 = vmatpush2.msra.mxu0 0.0
        %607 = vmatprep.subr.mxu0 0.0
        %608 = vmatpush2.msra.mxu0 0.0
        %609 = vmatprep.subr.mxu0 0.0
        %610 = vmatpush2.msra.mxu0 0.0
        %611 = vmatprep.subr.mxu0 0.0
        %612 = vmatpush2.msra.mxu0 0.0
        %613 = vmatprep.subr.mxu0 0.0
        %614 = vmatpush2.msra.mxu0 0.0
        %615 = vmatprep.subr.mxu0 0.0
        %616 = vmatpush2.msra.mxu0 0.0
        %617 = vmatprep.subr.mxu0 0.0
        %618 = vmatpush2.msra.mxu0 0.0
        %619 = vmatprep.mubr.f32.mxu0 0.0
        %620 = vmatmul.mubr.f32.gmra.mxu0 %v553
        %v621 = vpop.f32.mrf.mxu0
        %v622 = vadd.f32 %v551, %v621
        %v623 = vpop.f32.mrf.mxu0
        %624 = vdwg.mxu0
        %v625 = vmax.f32 %v622, 0.0
        %v626 = vld [vmem:[%s7] sm:$0x1]
        %v627 = vld [vmem:[%s6] sm:$0xff]
        %v628 = vld [vmem:[%s6 + $0x8] sm:$0xff]
        %v629 = vld [vmem:[%s6 + $0x10] sm:$0xff]
        %v630 = vld [vmem:[%s6 + $0x18] sm:$0xff]
        %v631 = vlaneseq
        %v632 = vshrl.u32 %v631, 7
        %v633 = vsub.s32 0, %v632
        %v634 = vrot.slane %v626, %v633
        %v636 = vsel %vm467, %v625, 0
        %638 = vmatprep.subr.mxu0 0.0
        %639 = vmatpush1.msra.mxu0 0.0
        %640 = vmatprep.subr.mxu0 0.0
        %641 = vmatpush1.msra.mxu0 0.0
        %642 = vmatprep.subr.mxu0 0.0
        %643 = vmatpush1.msra.mxu0 0.0
        %644 = vmatprep.subr.mxu0 0.0
        %645 = vmatpush1.msra.mxu0 0.0
        %646 = vmatprep.subr.mxu0 0.0
        %647 = vmatpush1.msra.mxu0 0.0
        %648 = vmatprep.subr.mxu0 0.0
        %649 = vmatpush1.msra.mxu0 0.0
        %650 = vmatprep.subr.mxu0 0.0
        %651 = vmatpush1.msra.mxu0 0.0
        %652 = vmatprep.subr.mxu0 0.0
        %653 = vmatpush1.msra.mxu0 0.0
        %654 = vmatprep.subr.mxu0 0.0
        %655 = vmatpush1.msra.mxu0 0.0
        %656 = vmatprep.subr.mxu0 0.0
        %657 = vmatpush1.msra.mxu0 0.0
        %658 = vmatprep.subr.mxu0 0.0
        %659 = vmatpush1.msra.mxu0 0.0
        %660 = vmatprep.subr.mxu0 0.0
        %661 = vmatpush1.msra.mxu0 0.0
        %662 = vmatprep.subr.mxu0 0.0
        %663 = vmatpush1.msra.mxu0 %v630
        %664 = vmatprep.subr.mxu0 0.0
        %665 = vmatpush1.msra.mxu0 %v629
        %666 = vmatprep.subr.mxu0 0.0
        %667 = vmatpush1.msra.mxu0 %v628
        %668 = vmatprep.subr.mxu0 0.0
        %669 = vmatpush1.msra.mxu0 %v627
        %670 = vmatprep.subr.mxu0 0.0
        %671 = vmatpush2.msra.mxu0 0.0
        %672 = vmatprep.subr.mxu0 0.0
        %673 = vmatpush2.msra.mxu0 0.0
        %674 = vmatprep.subr.mxu0 0.0
        %675 = vmatpush2.msra.mxu0 0.0
        %676 = vmatprep.subr.mxu0 0.0
        %677 = vmatpush2.msra.mxu0 0.0
        %678 = vmatprep.subr.mxu0 0.0
        %679 = vmatpush2.msra.mxu0 0.0
        %680 = vmatprep.subr.mxu0 0.0
        %681 = vmatpush2.msra.mxu0 0.0
        %682 = vmatprep.subr.mxu0 0.0
        %683 = vmatpush2.msra.mxu0 0.0
        %684 = vmatprep.subr.mxu0 0.0
        %685 = vmatpush2.msra.mxu0 0.0
        %686 = vmatprep.subr.mxu0 0.0
        %687 = vmatpush2.msra.mxu0 0.0
        %688 = vmatprep.subr.mxu0 0.0
        %689 = vmatpush2.msra.mxu0 0.0
        %690 = vmatprep.subr.mxu0 0.0
        %691 = vmatpush2.msra.mxu0 0.0
        %692 = vmatprep.subr.mxu0 0.0
        %693 = vmatpush2.msra.mxu0 0.0
        %694 = vmatprep.subr.mxu0 0.0
        %695 = vmatpush2.msra.mxu0 0.0
        %696 = vmatprep.subr.mxu0 0.0
        %697 = vmatpush2.msra.mxu0 0.0
        %698 = vmatprep.subr.mxu0 0.0
        %699 = vmatpush2.msra.mxu0 0.0
        %700 = vmatprep.subr.mxu0 0.0
        %701 = vmatpush2.msra.mxu0 0.0
        %702 = vmatprep.mubr.f32.mxu0 0.0
        %703 = vmatmul.mubr.f32.gmra.mxu0 %v636
        %v704 = vpop.f32.mrf.mxu0
        %v705 = vadd.f32 %v634, %v704
        %v706 = vpop.f32.mrf.mxu0
        %707 = vdwg.mxu0
        %v708 = vadd.f32 %v372, %v705
        %v709 = vld [vmem:[%s3 + $0x1] sm:$0x1]
        %s710 = scalar_lea.vmem %s2, 4
        %v711 = vld [vmem:[%s710] sm:$0xf]
        %v712 = vlaneseq
        %v713 = vshrl.u32 %v712, 7
        %v714 = vsub.s32 0, %v713
        %v715 = vrot.slane %v709, %v714
        %v717 = vsel %vm379, %v708, 0
        %v720 = vsel %vm383, %v711, 0
        %722 = vmatprep.subr.mxu0 0.0
        %723 = vmatpush1.msra.mxu0 0.0
        %724 = vmatprep.subr.mxu0 0.0
        %725 = vmatpush1.msra.mxu0 0.0
        %726 = vmatprep.subr.mxu0 0.0
        %727 = vmatpush1.msra.mxu0 0.0
        %728 = vmatprep.subr.mxu0 0.0
        %729 = vmatpush1.msra.mxu0 0.0
        %730 = vmatprep.subr.mxu0 0.0
        %731 = vmatpush1.msra.mxu0 0.0
        %732 = vmatprep.subr.mxu0 0.0
        %733 = vmatpush1.msra.mxu0 0.0
        %734 = vmatprep.subr.mxu0 0.0
        %735 = vmatpush1.msra.mxu0 0.0
        %736 = vmatprep.subr.mxu0 0.0
        %737 = vmatpush1.msra.mxu0 0.0
        %738 = vmatprep.subr.mxu0 0.0
        %739 = vmatpush1.msra.mxu0 0.0
        %740 = vmatprep.subr.mxu0 0.0
        %741 = vmatpush1.msra.mxu0 0.0
        %742 = vmatprep.subr.mxu0 0.0
        %743 = vmatpush1.msra.mxu0 0.0
        %744 = vmatprep.subr.mxu0 0.0
        %745 = vmatpush1.msra.mxu0 0.0
        %746 = vmatprep.subr.mxu0 0.0
        %747 = vmatpush1.msra.mxu0 0.0
        %748 = vmatprep.subr.mxu0 0.0
        %749 = vmatpush1.msra.mxu0 0.0
        %750 = vmatprep.subr.mxu0 0.0
        %751 = vmatpush1.msra.mxu0 0.0
        %752 = vmatprep.subr.mxu0 0.0
        %753 = vmatpush1.msra.mxu0 %v720
        %754 = vmatprep.subr.mxu0 0.0
        %755 = vmatpush2.msra.mxu0 0.0
        %756 = vmatprep.subr.mxu0 0.0
        %757 = vmatpush2.msra.mxu0 0.0
        %758 = vmatprep.subr.mxu0 0.0
        %759 = vmatpush2.msra.mxu0 0.0
        %760 = vmatprep.subr.mxu0 0.0
        %761 = vmatpush2.msra.mxu0 0.0
        %762 = vmatprep.subr.mxu0 0.0
        %763 = vmatpush2.msra.mxu0 0.0
        %764 = vmatprep.subr.mxu0 0.0
        %765 = vmatpush2.msra.mxu0 0.0
        %766 = vmatprep.subr.mxu0 0.0
        %767 = vmatpush2.msra.mxu0 0.0
        %768 = vmatprep.subr.mxu0 0.0
        %769 = vmatpush2.msra.mxu0 0.0
        %770 = vmatprep.subr.mxu0 0.0
        %771 = vmatpush2.msra.mxu0 0.0
        %772 = vmatprep.subr.mxu0 0.0
        %773 = vmatpush2.msra.mxu0 0.0
        %774 = vmatprep.subr.mxu0 0.0
        %775 = vmatpush2.msra.mxu0 0.0
        %776 = vmatprep.subr.mxu0 0.0
        %777 = vmatpush2.msra.mxu0 0.0
        %778 = vmatprep.subr.mxu0 0.0
        %779 = vmatpush2.msra.mxu0 0.0
        %780 = vmatprep.subr.mxu0 0.0
        %781 = vmatpush2.msra.mxu0 0.0
        %782 = vmatprep.subr.mxu0 0.0
        %783 = vmatpush2.msra.mxu0 0.0
        %784 = vmatprep.subr.mxu0 0.0
        %785 = vmatpush2.msra.mxu0 0.0
        %786 = vmatprep.mubr.f32.mxu0 0.0
        %787 = vmatmul.mubr.f32.gmra.mxu0 %v717
        %v788 = vpop.f32.mrf.mxu0
        %v789 = vadd.f32 %v715, %v788
        %v790 = vpop.f32.mrf.mxu0
        %791 = vdwg.mxu0
        %v792 = vmax.f32 %v789, 0.0
        %v793 = vld [vmem:[%s5 + $0x2] sm:$0x1]
        %s794 = scalar_lea.vmem [#allocation2], 64
        %v795 = vld [vmem:[%s794] sm:$0xff]
        %v796 = vld [vmem:[%s794 + $0x8] sm:$0xff]
        %v797 = vld [vmem:[%s794 + $0x10] sm:$0xff]
        %v798 = vld [vmem:[%s794 + $0x18] sm:$0xff]
        %v799 = vlaneseq
        %v800 = vshrl.u32 %v799, 7
        %v801 = vsub.s32 0, %v800
        %v802 = vrot.slane %v793, %v801
        %v804 = vsel %vm467, %v792, 0
        %806 = vmatprep.subr.mxu0 0.0
        %807 = vmatpush1.msra.mxu0 0.0
        %808 = vmatprep.subr.mxu0 0.0
        %809 = vmatpush1.msra.mxu0 0.0
        %810 = vmatprep.subr.mxu0 0.0
        %811 = vmatpush1.msra.mxu0 0.0
        %812 = vmatprep.subr.mxu0 0.0
        %813 = vmatpush1.msra.mxu0 0.0
        %814 = vmatprep.subr.mxu0 0.0
        %815 = vmatpush1.msra.mxu0 0.0
        %816 = vmatprep.subr.mxu0 0.0
        %817 = vmatpush1.msra.mxu0 0.0
        %818 = vmatprep.subr.mxu0 0.0
        %819 = vmatpush1.msra.mxu0 0.0
        %820 = vmatprep.subr.mxu0 0.0
        %821 = vmatpush1.msra.mxu0 0.0
        %822 = vmatprep.subr.mxu0 0.0
        %823 = vmatpush1.msra.mxu0 0.0
        %824 = vmatprep.subr.mxu0 0.0
        %825 = vmatpush1.msra.mxu0 0.0
        %826 = vmatprep.subr.mxu0 0.0
        %827 = vmatpush1.msra.mxu0 0.0
        %828 = vmatprep.subr.mxu0 0.0
        %829 = vmatpush1.msra.mxu0 0.0
        %830 = vmatprep.subr.mxu0 0.0
        %831 = vmatpush1.msra.mxu0 %v798
        %832 = vmatprep.subr.mxu0 0.0
        %833 = vmatpush1.msra.mxu0 %v797
        %834 = vmatprep.subr.mxu0 0.0
        %835 = vmatpush1.msra.mxu0 %v796
        %836 = vmatprep.subr.mxu0 0.0
        %837 = vmatpush1.msra.mxu0 %v795
        %838 = vmatprep.subr.mxu0 0.0
        %839 = vmatpush2.msra.mxu0 0.0
        %840 = vmatprep.subr.mxu0 0.0
        %841 = vmatpush2.msra.mxu0 0.0
        %842 = vmatprep.subr.mxu0 0.0
        %843 = vmatpush2.msra.mxu0 0.0
        %844 = vmatprep.subr.mxu0 0.0
        %845 = vmatpush2.msra.mxu0 0.0
        %846 = vmatprep.subr.mxu0 0.0
        %847 = vmatpush2.msra.mxu0 0.0
        %848 = vmatprep.subr.mxu0 0.0
        %849 = vmatpush2.msra.mxu0 0.0
        %850 = vmatprep.subr.mxu0 0.0
        %851 = vmatpush2.msra.mxu0 0.0
        %852 = vmatprep.subr.mxu0 0.0
        %853 = vmatpush2.msra.mxu0 0.0
        %854 = vmatprep.subr.mxu0 0.0
        %855 = vmatpush2.msra.mxu0 0.0
        %856 = vmatprep.subr.mxu0 0.0
        %857 = vmatpush2.msra.mxu0 0.0
        %858 = vmatprep.subr.mxu0 0.0
        %859 = vmatpush2.msra.mxu0 0.0
        %860 = vmatprep.subr.mxu0 0.0
        %861 = vmatpush2.msra.mxu0 0.0
        %862 = vmatprep.subr.mxu0 0.0
        %863 = vmatpush2.msra.mxu0 0.0
        %864 = vmatprep.subr.mxu0 0.0
        %865 = vmatpush2.msra.mxu0 0.0
        %866 = vmatprep.subr.mxu0 0.0
        %867 = vmatpush2.msra.mxu0 0.0
        %868 = vmatprep.subr.mxu0 0.0
        %869 = vmatpush2.msra.mxu0 0.0
        %870 = vmatprep.mubr.f32.mxu0 0.0
        %871 = vmatmul.mubr.f32.gmra.mxu0 %v804
        %v872 = vpop.f32.mrf.mxu0
        %v873 = vadd.f32 %v802, %v872
        %v874 = vpop.f32.mrf.mxu0
        %875 = vdwg.mxu0
        %v876 = vmax.f32 %v873, 0.0
        %v877 = vld [vmem:[%s5 + $0x3] sm:$0x1]
        %s878 = scalar_lea.vmem [#allocation2], 96
        %v879 = vld [vmem:[%s878] sm:$0xff]
        %v880 = vld [vmem:[%s878 + $0x8] sm:$0xff]
        %v881 = vld [vmem:[%s878 + $0x10] sm:$0xff]
        %v882 = vld [vmem:[%s878 + $0x18] sm:$0xff]
        %v883 = vlaneseq
        %v884 = vshrl.u32 %v883, 7
        %v885 = vsub.s32 0, %v884
        %v886 = vrot.slane %v877, %v885
        %v888 = vsel %vm467, %v876, 0
        %890 = vmatprep.subr.mxu0 0.0
        %891 = vmatpush1.msra.mxu0 0.0
        %892 = vmatprep.subr.mxu0 0.0
        %893 = vmatpush1.msra.mxu0 0.0
        %894 = vmatprep.subr.mxu0 0.0
        %895 = vmatpush1.msra.mxu0 0.0
        %896 = vmatprep.subr.mxu0 0.0
        %897 = vmatpush1.msra.mxu0 0.0
        %898 = vmatprep.subr.mxu0 0.0
        %899 = vmatpush1.msra.mxu0 0.0
        %900 = vmatprep.subr.mxu0 0.0
        %901 = vmatpush1.msra.mxu0 0.0
        %902 = vmatprep.subr.mxu0 0.0
        %903 = vmatpush1.msra.mxu0 0.0
        %904 = vmatprep.subr.mxu0 0.0
        %905 = vmatpush1.msra.mxu0 0.0
        %906 = vmatprep.subr.mxu0 0.0
        %907 = vmatpush1.msra.mxu0 0.0
        %908 = vmatprep.subr.mxu0 0.0
        %909 = vmatpush1.msra.mxu0 0.0
        %910 = vmatprep.subr.mxu0 0.0
        %911 = vmatpush1.msra.mxu0 0.0
        %912 = vmatprep.subr.mxu0 0.0
        %913 = vmatpush1.msra.mxu0 0.0
        %914 = vmatprep.subr.mxu0 0.0
        %915 = vmatpush1.msra.mxu0 %v882
        %916 = vmatprep.subr.mxu0 0.0
        %917 = vmatpush1.msra.mxu0 %v881
        %918 = vmatprep.subr.mxu0 0.0
        %919 = vmatpush1.msra.mxu0 %v880
        %920 = vmatprep.subr.mxu0 0.0
        %921 = vmatpush1.msra.mxu0 %v879
        %922 = vmatprep.subr.mxu0 0.0
        %923 = vmatpush2.msra.mxu0 0.0
        %924 = vmatprep.subr.mxu0 0.0
        %925 = vmatpush2.msra.mxu0 0.0
        %926 = vmatprep.subr.mxu0 0.0
        %927 = vmatpush2.msra.mxu0 0.0
        %928 = vmatprep.subr.mxu0 0.0
        %929 = vmatpush2.msra.mxu0 0.0
        %930 = vmatprep.subr.mxu0 0.0
        %931 = vmatpush2.msra.mxu0 0.0
        %932 = vmatprep.subr.mxu0 0.0
        %933 = vmatpush2.msra.mxu0 0.0
        %934 = vmatprep.subr.mxu0 0.0
        %935 = vmatpush2.msra.mxu0 0.0
        %936 = vmatprep.subr.mxu0 0.0
        %937 = vmatpush2.msra.mxu0 0.0
        %938 = vmatprep.subr.mxu0 0.0
        %939 = vmatpush2.msra.mxu0 0.0
        %940 = vmatprep.subr.mxu0 0.0
        %941 = vmatpush2.msra.mxu0 0.0
        %942 = vmatprep.subr.mxu0 0.0
        %943 = vmatpush2.msra.mxu0 0.0
        %944 = vmatprep.subr.mxu0 0.0
        %945 = vmatpush2.msra.mxu0 0.0
        %946 = vmatprep.subr.mxu0 0.0
        %947 = vmatpush2.msra.mxu0 0.0
        %948 = vmatprep.subr.mxu0 0.0
        %949 = vmatpush2.msra.mxu0 0.0
        %950 = vmatprep.subr.mxu0 0.0
        %951 = vmatpush2.msra.mxu0 0.0
        %952 = vmatprep.subr.mxu0 0.0
        %953 = vmatpush2.msra.mxu0 0.0
        %954 = vmatprep.mubr.f32.mxu0 0.0
        %955 = vmatmul.mubr.f32.gmra.mxu0 %v888
        %v956 = vpop.f32.mrf.mxu0
        %v957 = vadd.f32 %v886, %v956
        %v958 = vpop.f32.mrf.mxu0
        %959 = vdwg.mxu0
        %v960 = vmax.f32 %v957, 0.0
        %v961 = vld [vmem:[%s7 + $0x1] sm:$0x1]
        %s962 = scalar_lea.vmem %s6, 32
        %v963 = vld [vmem:[%s962] sm:$0xff]
        %v964 = vld [vmem:[%s962 + $0x8] sm:$0xff]
        %v965 = vld [vmem:[%s962 + $0x10] sm:$0xff]
        %v966 = vld [vmem:[%s962 + $0x18] sm:$0xff]
        %v967 = vlaneseq
        %v968 = vshrl.u32 %v967, 7
        %v969 = vsub.s32 0, %v968
        %v970 = vrot.slane %v961, %v969
        %v972 = vsel %vm467, %v960, 0
        %974 = vmatprep.subr.mxu0 0.0
        %975 = vmatpush1.msra.mxu0 0.0
        %976 = vmatprep.subr.mxu0 0.0
        %977 = vmatpush1.msra.mxu0 0.0
        %978 = vmatprep.subr.mxu0 0.0
        %979 = vmatpush1.msra.mxu0 0.0
        %980 = vmatprep.subr.mxu0 0.0
        %981 = vmatpush1.msra.mxu0 0.0
        %982 = vmatprep.subr.mxu0 0.0
        %983 = vmatpush1.msra.mxu0 0.0
        %984 = vmatprep.subr.mxu0 0.0
        %985 = vmatpush1.msra.mxu0 0.0
        %986 = vmatprep.subr.mxu0 0.0
        %987 = vmatpush1.msra.mxu0 0.0
        %988 = vmatprep.subr.mxu0 0.0
        %989 = vmatpush1.msra.mxu0 0.0
        %990 = vmatprep.subr.mxu0 0.0
        %991 = vmatpush1.msra.mxu0 0.0
        %992 = vmatprep.subr.mxu0 0.0
        %993 = vmatpush1.msra.mxu0 0.0
        %994 = vmatprep.subr.mxu0 0.0
        %995 = vmatpush1.msra.mxu0 0.0
        %996 = vmatprep.subr.mxu0 0.0
        %997 = vmatpush1.msra.mxu0 0.0
        %998 = vmatprep.subr.mxu0 0.0
        %999 = vmatpush1.msra.mxu0 %v966
        %1000 = vmatprep.subr.mxu0 0.0
        %1001 = vmatpush1.msra.mxu0 %v965
        %1002 = vmatprep.subr.mxu0 0.0
        %1003 = vmatpush1.msra.mxu0 %v964
        %1004 = vmatprep.subr.mxu0 0.0
        %1005 = vmatpush1.msra.mxu0 %v963
        %1006 = vmatprep.subr.mxu0 0.0
        %1007 = vmatpush2.msra.mxu0 0.0
        %1008 = vmatprep.subr.mxu0 0.0
        %1009 = vmatpush2.msra.mxu0 0.0
        %1010 = vmatprep.subr.mxu0 0.0
        %1011 = vmatpush2.msra.mxu0 0.0
        %1012 = vmatprep.subr.mxu0 0.0
        %1013 = vmatpush2.msra.mxu0 0.0
        %1014 = vmatprep.subr.mxu0 0.0
        %1015 = vmatpush2.msra.mxu0 0.0
        %1016 = vmatprep.subr.mxu0 0.0
        %1017 = vmatpush2.msra.mxu0 0.0
        %1018 = vmatprep.subr.mxu0 0.0
        %1019 = vmatpush2.msra.mxu0 0.0
        %1020 = vmatprep.subr.mxu0 0.0
        %1021 = vmatpush2.msra.mxu0 0.0
        %1022 = vmatprep.subr.mxu0 0.0
        %1023 = vmatpush2.msra.mxu0 0.0
        %1024 = vmatprep.subr.mxu0 0.0
        %1025 = vmatpush2.msra.mxu0 0.0
        %1026 = vmatprep.subr.mxu0 0.0
        %1027 = vmatpush2.msra.mxu0 0.0
        %1028 = vmatprep.subr.mxu0 0.0
        %1029 = vmatpush2.msra.mxu0 0.0
        %1030 = vmatprep.subr.mxu0 0.0
        %1031 = vmatpush2.msra.mxu0 0.0
        %1032 = vmatprep.subr.mxu0 0.0
        %1033 = vmatpush2.msra.mxu0 0.0
        %1034 = vmatprep.subr.mxu0 0.0
        %1035 = vmatpush2.msra.mxu0 0.0
        %1036 = vmatprep.subr.mxu0 0.0
        %1037 = vmatpush2.msra.mxu0 0.0
        %1038 = vmatprep.mubr.f32.mxu0 0.0
        %1039 = vmatmul.mubr.f32.gmra.mxu0 %v972
        %v1040 = vpop.f32.mrf.mxu0
        %v1041 = vadd.f32 %v970, %v1040
        %v1042 = vpop.f32.mrf.mxu0
        %1043 = vdwg.mxu0
        %v1044 = vadd.f32 %v371, %v1041
        %v1045 = vld [vmem:[%s3 + $0x2] sm:$0x1]
        %s1046 = scalar_lea.vmem %s2, 8
        %v1047 = vld [vmem:[%s1046] sm:$0xf]
        %v1048 = vlaneseq
        %v1049 = vshrl.u32 %v1048, 7
        %v1050 = vsub.s32 0, %v1049
        %v1051 = vrot.slane %v1045, %v1050
        %v1053 = vsel %vm379, %v1044, 0
        %v1056 = vsel %vm383, %v1047, 0
        %1058 = vmatprep.subr.mxu0 0.0
        %1059 = vmatpush1.msra.mxu0 0.0
        %1060 = vmatprep.subr.mxu0 0.0
        %1061 = vmatpush1.msra.mxu0 0.0
        %1062 = vmatprep.subr.mxu0 0.0
        %1063 = vmatpush1.msra.mxu0 0.0
        %1064 = vmatprep.subr.mxu0 0.0
        %1065 = vmatpush1.msra.mxu0 0.0
        %1066 = vmatprep.subr.mxu0 0.0
        %1067 = vmatpush1.msra.mxu0 0.0
        %1068 = vmatprep.subr.mxu0 0.0
        %1069 = vmatpush1.msra.mxu0 0.0
        %1070 = vmatprep.subr.mxu0 0.0
        %1071 = vmatpush1.msra.mxu0 0.0
        %1072 = vmatprep.subr.mxu0 0.0
        %1073 = vmatpush1.msra.mxu0 0.0
        %1074 = vmatprep.subr.mxu0 0.0
        %1075 = vmatpush1.msra.mxu0 0.0
        %1076 = vmatprep.subr.mxu0 0.0
        %1077 = vmatpush1.msra.mxu0 0.0
        %1078 = vmatprep.subr.mxu0 0.0
        %1079 = vmatpush1.msra.mxu0 0.0
        %1080 = vmatprep.subr.mxu0 0.0
        %1081 = vmatpush1.msra.mxu0 0.0
        %1082 = vmatprep.subr.mxu0 0.0
        %1083 = vmatpush1.msra.mxu0 0.0
        %1084 = vmatprep.subr.mxu0 0.0
        %1085 = vmatpush1.msra.mxu0 0.0
        %1086 = vmatprep.subr.mxu0 0.0
        %1087 = vmatpush1.msra.mxu0 0.0
        %1088 = vmatprep.subr.mxu0 0.0
        %1089 = vmatpush1.msra.mxu0 %v1056
        %1090 = vmatprep.subr.mxu0 0.0
        %1091 = vmatpush2.msra.mxu0 0.0
        %1092 = vmatprep.subr.mxu0 0.0
        %1093 = vmatpush2.msra.mxu0 0.0
        %1094 = vmatprep.subr.mxu0 0.0
        %1095 = vmatpush2.msra.mxu0 0.0
        %1096 = vmatprep.subr.mxu0 0.0
        %1097 = vmatpush2.msra.mxu0 0.0
        %1098 = vmatprep.subr.mxu0 0.0
        %1099 = vmatpush2.msra.mxu0 0.0
        %1100 = vmatprep.subr.mxu0 0.0
        %1101 = vmatpush2.msra.mxu0 0.0
        %1102 = vmatprep.subr.mxu0 0.0
        %1103 = vmatpush2.msra.mxu0 0.0
        %1104 = vmatprep.subr.mxu0 0.0
        %1105 = vmatpush2.msra.mxu0 0.0
        %1106 = vmatprep.subr.mxu0 0.0
        %1107 = vmatpush2.msra.mxu0 0.0
        %1108 = vmatprep.subr.mxu0 0.0
        %1109 = vmatpush2.msra.mxu0 0.0
        %1110 = vmatprep.subr.mxu0 0.0
        %1111 = vmatpush2.msra.mxu0 0.0
        %1112 = vmatprep.subr.mxu0 0.0
        %1113 = vmatpush2.msra.mxu0 0.0
        %1114 = vmatprep.subr.mxu0 0.0
        %1115 = vmatpush2.msra.mxu0 0.0
        %1116 = vmatprep.subr.mxu0 0.0
        %1117 = vmatpush2.msra.mxu0 0.0
        %1118 = vmatprep.subr.mxu0 0.0
        %1119 = vmatpush2.msra.mxu0 0.0
        %1120 = vmatprep.subr.mxu0 0.0
        %1121 = vmatpush2.msra.mxu0 0.0
        %1122 = vmatprep.mubr.f32.mxu0 0.0
        %1123 = vmatmul.mubr.f32.gmra.mxu0 %v1053
        %v1124 = vpop.f32.mrf.mxu0
        %v1125 = vadd.f32 %v1051, %v1124
        %v1126 = vpop.f32.mrf.mxu0
        %1127 = vdwg.mxu0
        %v1128 = vmax.f32 %v1125, 0.0
        %v1129 = vld [vmem:[%s5 + $0x4] sm:$0x1]
        %s1130 = scalar_lea.vmem [#allocation2], 128
        %v1131 = vld [vmem:[%s1130] sm:$0xff]
        %v1132 = vld [vmem:[%s1130 + $0x8] sm:$0xff]
        %v1133 = vld [vmem:[%s1130 + $0x10] sm:$0xff]
        %v1134 = vld [vmem:[%s1130 + $0x18] sm:$0xff]
        %v1135 = vlaneseq
        %v1136 = vshrl.u32 %v1135, 7
        %v1137 = vsub.s32 0, %v1136
        %v1138 = vrot.slane %v1129, %v1137
        %v1140 = vsel %vm467, %v1128, 0
        %1142 = vmatprep.subr.mxu0 0.0
        %1143 = vmatpush1.msra.mxu0 0.0
        %1144 = vmatprep.subr.mxu0 0.0
        %1145 = vmatpush1.msra.mxu0 0.0
        %1146 = vmatprep.subr.mxu0 0.0
        %1147 = vmatpush1.msra.mxu0 0.0
        %1148 = vmatprep.subr.mxu0 0.0
        %1149 = vmatpush1.msra.mxu0 0.0
        %1150 = vmatprep.subr.mxu0 0.0
        %1151 = vmatpush1.msra.mxu0 0.0
        %1152 = vmatprep.subr.mxu0 0.0
        %1153 = vmatpush1.msra.mxu0 0.0
        %1154 = vmatprep.subr.mxu0 0.0
        %1155 = vmatpush1.msra.mxu0 0.0
        %1156 = vmatprep.subr.mxu0 0.0
        %1157 = vmatpush1.msra.mxu0 0.0
        %1158 = vmatprep.subr.mxu0 0.0
        %1159 = vmatpush1.msra.mxu0 0.0
        %1160 = vmatprep.subr.mxu0 0.0
        %1161 = vmatpush1.msra.mxu0 0.0
        %1162 = vmatprep.subr.mxu0 0.0
        %1163 = vmatpush1.msra.mxu0 0.0
        %1164 = vmatprep.subr.mxu0 0.0
        %1165 = vmatpush1.msra.mxu0 0.0
        %1166 = vmatprep.subr.mxu0 0.0
        %1167 = vmatpush1.msra.mxu0 %v1134
        %1168 = vmatprep.subr.mxu0 0.0
        %1169 = vmatpush1.msra.mxu0 %v1133
        %1170 = vmatprep.subr.mxu0 0.0
        %1171 = vmatpush1.msra.mxu0 %v1132
        %1172 = vmatprep.subr.mxu0 0.0
        %1173 = vmatpush1.msra.mxu0 %v1131
        %1174 = vmatprep.subr.mxu0 0.0
        %1175 = vmatpush2.msra.mxu0 0.0
        %1176 = vmatprep.subr.mxu0 0.0
        %1177 = vmatpush2.msra.mxu0 0.0
        %1178 = vmatprep.subr.mxu0 0.0
        %1179 = vmatpush2.msra.mxu0 0.0
        %1180 = vmatprep.subr.mxu0 0.0
        %1181 = vmatpush2.msra.mxu0 0.0
        %1182 = vmatprep.subr.mxu0 0.0
        %1183 = vmatpush2.msra.mxu0 0.0
        %1184 = vmatprep.subr.mxu0 0.0
        %1185 = vmatpush2.msra.mxu0 0.0
        %1186 = vmatprep.subr.mxu0 0.0
        %1187 = vmatpush2.msra.mxu0 0.0
        %1188 = vmatprep.subr.mxu0 0.0
        %1189 = vmatpush2.msra.mxu0 0.0
        %1190 = vmatprep.subr.mxu0 0.0
        %1191 = vmatpush2.msra.mxu0 0.0
        %1192 = vmatprep.subr.mxu0 0.0
        %1193 = vmatpush2.msra.mxu0 0.0
        %1194 = vmatprep.subr.mxu0 0.0
        %1195 = vmatpush2.msra.mxu0 0.0
        %1196 = vmatprep.subr.mxu0 0.0
        %1197 = vmatpush2.msra.mxu0 0.0
        %1198 = vmatprep.subr.mxu0 0.0
        %1199 = vmatpush2.msra.mxu0 0.0
        %1200 = vmatprep.subr.mxu0 0.0
        %1201 = vmatpush2.msra.mxu0 0.0
        %1202 = vmatprep.subr.mxu0 0.0
        %1203 = vmatpush2.msra.mxu0 0.0
        %1204 = vmatprep.subr.mxu0 0.0
        %1205 = vmatpush2.msra.mxu0 0.0
        %1206 = vmatprep.mubr.f32.mxu0 0.0
        %1207 = vmatmul.mubr.f32.gmra.mxu0 %v1140
        %v1208 = vpop.f32.mrf.mxu0
        %v1209 = vadd.f32 %v1138, %v1208
        %v1210 = vpop.f32.mrf.mxu0
        %1211 = vdwg.mxu0
        %v1212 = vmax.f32 %v1209, 0.0
        %v1213 = vld [vmem:[%s5 + $0x5] sm:$0x1]
        %s1214 = scalar_lea.vmem [#allocation2], 160
        %v1215 = vld [vmem:[%s1214] sm:$0xff]
        %v1216 = vld [vmem:[%s1214 + $0x8] sm:$0xff]
        %v1217 = vld [vmem:[%s1214 + $0x10] sm:$0xff]
        %v1218 = vld [vmem:[%s1214 + $0x18] sm:$0xff]
        %v1219 = vlaneseq
        %v1220 = vshrl.u32 %v1219, 7
        %v1221 = vsub.s32 0, %v1220
        %v1222 = vrot.slane %v1213, %v1221
        %v1224 = vsel %vm467, %v1212, 0
        %1226 = vmatprep.subr.mxu0 0.0
        %1227 = vmatpush1.msra.mxu0 0.0
        %1228 = vmatprep.subr.mxu0 0.0
        %1229 = vmatpush1.msra.mxu0 0.0
        %1230 = vmatprep.subr.mxu0 0.0
        %1231 = vmatpush1.msra.mxu0 0.0
        %1232 = vmatprep.subr.mxu0 0.0
        %1233 = vmatpush1.msra.mxu0 0.0
        %1234 = vmatprep.subr.mxu0 0.0
        %1235 = vmatpush1.msra.mxu0 0.0
        %1236 = vmatprep.subr.mxu0 0.0
        %1237 = vmatpush1.msra.mxu0 0.0
        %1238 = vmatprep.subr.mxu0 0.0
        %1239 = vmatpush1.msra.mxu0 0.0
        %1240 = vmatprep.subr.mxu0 0.0
        %1241 = vmatpush1.msra.mxu0 0.0
        %1242 = vmatprep.subr.mxu0 0.0
        %1243 = vmatpush1.msra.mxu0 0.0
        %1244 = vmatprep.subr.mxu0 0.0
        %1245 = vmatpush1.msra.mxu0 0.0
        %1246 = vmatprep.subr.mxu0 0.0
        %1247 = vmatpush1.msra.mxu0 0.0
        %1248 = vmatprep.subr.mxu0 0.0
        %1249 = vmatpush1.msra.mxu0 0.0
        %1250 = vmatprep.subr.mxu0 0.0
        %1251 = vmatpush1.msra.mxu0 %v1218
        %1252 = vmatprep.subr.mxu0 0.0
        %1253 = vmatpush1.msra.mxu0 %v1217
        %1254 = vmatprep.subr.mxu0 0.0
        %1255 = vmatpush1.msra.mxu0 %v1216
        %1256 = vmatprep.subr.mxu0 0.0
        %1257 = vmatpush1.msra.mxu0 %v1215
        %1258 = vmatprep.subr.mxu0 0.0
        %1259 = vmatpush2.msra.mxu0 0.0
        %1260 = vmatprep.subr.mxu0 0.0
        %1261 = vmatpush2.msra.mxu0 0.0
        %1262 = vmatprep.subr.mxu0 0.0
        %1263 = vmatpush2.msra.mxu0 0.0
        %1264 = vmatprep.subr.mxu0 0.0
        %1265 = vmatpush2.msra.mxu0 0.0
        %1266 = vmatprep.subr.mxu0 0.0
        %1267 = vmatpush2.msra.mxu0 0.0
        %1268 = vmatprep.subr.mxu0 0.0
        %1269 = vmatpush2.msra.mxu0 0.0
        %1270 = vmatprep.subr.mxu0 0.0
        %1271 = vmatpush2.msra.mxu0 0.0
        %1272 = vmatprep.subr.mxu0 0.0
        %1273 = vmatpush2.msra.mxu0 0.0
        %1274 = vmatprep.subr.mxu0 0.0
        %1275 = vmatpush2.msra.mxu0 0.0
        %1276 = vmatprep.subr.mxu0 0.0
        %1277 = vmatpush2.msra.mxu0 0.0
        %1278 = vmatprep.subr.mxu0 0.0
        %1279 = vmatpush2.msra.mxu0 0.0
        %1280 = vmatprep.subr.mxu0 0.0
        %1281 = vmatpush2.msra.mxu0 0.0
        %1282 = vmatprep.subr.mxu0 0.0
        %1283 = vmatpush2.msra.mxu0 0.0
        %1284 = vmatprep.subr.mxu0 0.0
        %1285 = vmatpush2.msra.mxu0 0.0
        %1286 = vmatprep.subr.mxu0 0.0
        %1287 = vmatpush2.msra.mxu0 0.0
        %1288 = vmatprep.subr.mxu0 0.0
        %1289 = vmatpush2.msra.mxu0 0.0
        %1290 = vmatprep.mubr.f32.mxu0 0.0
        %1291 = vmatmul.mubr.f32.gmra.mxu0 %v1224
        %v1292 = vpop.f32.mrf.mxu0
        %v1293 = vadd.f32 %v1222, %v1292
        %v1294 = vpop.f32.mrf.mxu0
        %1295 = vdwg.mxu0
        %v1296 = vmax.f32 %v1293, 0.0
        %v1297 = vld [vmem:[%s7 + $0x2] sm:$0x1]
        %s1298 = scalar_lea.vmem %s6, 64
        %v1299 = vld [vmem:[%s1298] sm:$0xff]
        %v1300 = vld [vmem:[%s1298 + $0x8] sm:$0xff]
        %v1301 = vld [vmem:[%s1298 + $0x10] sm:$0xff]
        %v1302 = vld [vmem:[%s1298 + $0x18] sm:$0xff]
        %v1303 = vlaneseq
        %v1304 = vshrl.u32 %v1303, 7
        %v1305 = vsub.s32 0, %v1304
        %v1306 = vrot.slane %v1297, %v1305
        %v1308 = vsel %vm467, %v1296, 0
        %1310 = vmatprep.subr.mxu0 0.0
        %1311 = vmatpush1.msra.mxu0 0.0
        %1312 = vmatprep.subr.mxu0 0.0
        %1313 = vmatpush1.msra.mxu0 0.0
        %1314 = vmatprep.subr.mxu0 0.0
        %1315 = vmatpush1.msra.mxu0 0.0
        %1316 = vmatprep.subr.mxu0 0.0
        %1317 = vmatpush1.msra.mxu0 0.0
        %1318 = vmatprep.subr.mxu0 0.0
        %1319 = vmatpush1.msra.mxu0 0.0
        %1320 = vmatprep.subr.mxu0 0.0
        %1321 = vmatpush1.msra.mxu0 0.0
        %1322 = vmatprep.subr.mxu0 0.0
        %1323 = vmatpush1.msra.mxu0 0.0
        %1324 = vmatprep.subr.mxu0 0.0
        %1325 = vmatpush1.msra.mxu0 0.0
        %1326 = vmatprep.subr.mxu0 0.0
        %1327 = vmatpush1.msra.mxu0 0.0
        %1328 = vmatprep.subr.mxu0 0.0
        %1329 = vmatpush1.msra.mxu0 0.0
        %1330 = vmatprep.subr.mxu0 0.0
        %1331 = vmatpush1.msra.mxu0 0.0
        %1332 = vmatprep.subr.mxu0 0.0
        %1333 = vmatpush1.msra.mxu0 0.0
        %1334 = vmatprep.subr.mxu0 0.0
        %1335 = vmatpush1.msra.mxu0 %v1302
        %1336 = vmatprep.subr.mxu0 0.0
        %1337 = vmatpush1.msra.mxu0 %v1301
        %1338 = vmatprep.subr.mxu0 0.0
        %1339 = vmatpush1.msra.mxu0 %v1300
        %1340 = vmatprep.subr.mxu0 0.0
        %1341 = vmatpush1.msra.mxu0 %v1299
        %1342 = vmatprep.subr.mxu0 0.0
        %1343 = vmatpush2.msra.mxu0 0.0
        %1344 = vmatprep.subr.mxu0 0.0
        %1345 = vmatpush2.msra.mxu0 0.0
        %1346 = vmatprep.subr.mxu0 0.0
        %1347 = vmatpush2.msra.mxu0 0.0
        %1348 = vmatprep.subr.mxu0 0.0
        %1349 = vmatpush2.msra.mxu0 0.0
        %1350 = vmatprep.subr.mxu0 0.0
        %1351 = vmatpush2.msra.mxu0 0.0
        %1352 = vmatprep.subr.mxu0 0.0
        %1353 = vmatpush2.msra.mxu0 0.0
        %1354 = vmatprep.subr.mxu0 0.0
        %1355 = vmatpush2.msra.mxu0 0.0
        %1356 = vmatprep.subr.mxu0 0.0
        %1357 = vmatpush2.msra.mxu0 0.0
        %1358 = vmatprep.subr.mxu0 0.0
        %1359 = vmatpush2.msra.mxu0 0.0
        %1360 = vmatprep.subr.mxu0 0.0
        %1361 = vmatpush2.msra.mxu0 0.0
        %1362 = vmatprep.subr.mxu0 0.0
        %1363 = vmatpush2.msra.mxu0 0.0
        %1364 = vmatprep.subr.mxu0 0.0
        %1365 = vmatpush2.msra.mxu0 0.0
        %1366 = vmatprep.subr.mxu0 0.0
        %1367 = vmatpush2.msra.mxu0 0.0
        %1368 = vmatprep.subr.mxu0 0.0
        %1369 = vmatpush2.msra.mxu0 0.0
        %1370 = vmatprep.subr.mxu0 0.0
        %1371 = vmatpush2.msra.mxu0 0.0
        %1372 = vmatprep.subr.mxu0 0.0
        %1373 = vmatpush2.msra.mxu0 0.0
        %1374 = vmatprep.mubr.f32.mxu0 0.0
        %1375 = vmatmul.mubr.f32.gmra.mxu0 %v1308
        %v1376 = vpop.f32.mrf.mxu0
        %v1377 = vadd.f32 %v1306, %v1376
        %v1378 = vpop.f32.mrf.mxu0
        %1379 = vdwg.mxu0
        %v1380 = vadd.f32 %v708, %v1377
        %v1381 = vld [vmem:[%s3 + $0x3] sm:$0x1]
        %s1382 = scalar_lea.vmem %s2, 12
        %v1383 = vld [vmem:[%s1382] sm:$0xf]
        %v1384 = vlaneseq
        %v1385 = vshrl.u32 %v1384, 7
        %v1386 = vsub.s32 0, %v1385
        %v1387 = vrot.slane %v1381, %v1386
        %v1389 = vsel %vm379, %v1380, 0
        %v1392 = vsel %vm383, %v1383, 0
        %1394 = vmatprep.subr.mxu0 0.0
        %1395 = vmatpush1.msra.mxu0 0.0
        %1396 = vmatprep.subr.mxu0 0.0
        %1397 = vmatpush1.msra.mxu0 0.0
        %1398 = vmatprep.subr.mxu0 0.0
        %1399 = vmatpush1.msra.mxu0 0.0
        %1400 = vmatprep.subr.mxu0 0.0
        %1401 = vmatpush1.msra.mxu0 0.0
        %1402 = vmatprep.subr.mxu0 0.0
        %1403 = vmatpush1.msra.mxu0 0.0
        %1404 = vmatprep.subr.mxu0 0.0
        %1405 = vmatpush1.msra.mxu0 0.0
        %1406 = vmatprep.subr.mxu0 0.0
        %1407 = vmatpush1.msra.mxu0 0.0
        %1408 = vmatprep.subr.mxu0 0.0
        %1409 = vmatpush1.msra.mxu0 0.0
        %1410 = vmatprep.subr.mxu0 0.0
        %1411 = vmatpush1.msra.mxu0 0.0
        %1412 = vmatprep.subr.mxu0 0.0
        %1413 = vmatpush1.msra.mxu0 0.0
        %1414 = vmatprep.subr.mxu0 0.0
        %1415 = vmatpush1.msra.mxu0 0.0
        %1416 = vmatprep.subr.mxu0 0.0
        %1417 = vmatpush1.msra.mxu0 0.0
        %1418 = vmatprep.subr.mxu0 0.0
        %1419 = vmatpush1.msra.mxu0 0.0
        %1420 = vmatprep.subr.mxu0 0.0
        %1421 = vmatpush1.msra.mxu0 0.0
        %1422 = vmatprep.subr.mxu0 0.0
        %1423 = vmatpush1.msra.mxu0 0.0
        %1424 = vmatprep.subr.mxu0 0.0
        %1425 = vmatpush1.msra.mxu0 %v1392
        %1426 = vmatprep.subr.mxu0 0.0
        %1427 = vmatpush2.msra.mxu0 0.0
        %1428 = vmatprep.subr.mxu0 0.0
        %1429 = vmatpush2.msra.mxu0 0.0
        %1430 = vmatprep.subr.mxu0 0.0
        %1431 = vmatpush2.msra.mxu0 0.0
        %1432 = vmatprep.subr.mxu0 0.0
        %1433 = vmatpush2.msra.mxu0 0.0
        %1434 = vmatprep.subr.mxu0 0.0
        %1435 = vmatpush2.msra.mxu0 0.0
        %1436 = vmatprep.subr.mxu0 0.0
        %1437 = vmatpush2.msra.mxu0 0.0
        %1438 = vmatprep.subr.mxu0 0.0
        %1439 = vmatpush2.msra.mxu0 0.0
        %1440 = vmatprep.subr.mxu0 0.0
        %1441 = vmatpush2.msra.mxu0 0.0
        %1442 = vmatprep.subr.mxu0 0.0
        %1443 = vmatpush2.msra.mxu0 0.0
        %1444 = vmatprep.subr.mxu0 0.0
        %1445 = vmatpush2.msra.mxu0 0.0
        %1446 = vmatprep.subr.mxu0 0.0
        %1447 = vmatpush2.msra.mxu0 0.0
        %1448 = vmatprep.subr.mxu0 0.0
        %1449 = vmatpush2.msra.mxu0 0.0
        %1450 = vmatprep.subr.mxu0 0.0
        %1451 = vmatpush2.msra.mxu0 0.0
        %1452 = vmatprep.subr.mxu0 0.0
        %1453 = vmatpush2.msra.mxu0 0.0
        %1454 = vmatprep.subr.mxu0 0.0
        %1455 = vmatpush2.msra.mxu0 0.0
        %1456 = vmatprep.subr.mxu0 0.0
        %1457 = vmatpush2.msra.mxu0 0.0
        %1458 = vmatprep.mubr.f32.mxu0 0.0
        %1459 = vmatmul.mubr.f32.gmra.mxu0 %v1389
        %v1460 = vpop.f32.mrf.mxu0
        %v1461 = vadd.f32 %v1387, %v1460
        %v1462 = vpop.f32.mrf.mxu0
        %1463 = vdwg.mxu0
        %v1464 = vmax.f32 %v1461, 0.0
        %v1465 = vld [vmem:[%s5 + $0x6] sm:$0x1]
        %s1466 = scalar_lea.vmem [#allocation2], 192
        %v1467 = vld [vmem:[%s1466] sm:$0xff]
        %v1468 = vld [vmem:[%s1466 + $0x8] sm:$0xff]
        %v1469 = vld [vmem:[%s1466 + $0x10] sm:$0xff]
        %v1470 = vld [vmem:[%s1466 + $0x18] sm:$0xff]
        %v1471 = vlaneseq
        %v1472 = vshrl.u32 %v1471, 7
        %v1473 = vsub.s32 0, %v1472
        %v1474 = vrot.slane %v1465, %v1473
        %v1476 = vsel %vm467, %v1464, 0
        %1478 = vmatprep.subr.mxu0 0.0
        %1479 = vmatpush1.msra.mxu0 0.0
        %1480 = vmatprep.subr.mxu0 0.0
        %1481 = vmatpush1.msra.mxu0 0.0
        %1482 = vmatprep.subr.mxu0 0.0
        %1483 = vmatpush1.msra.mxu0 0.0
        %1484 = vmatprep.subr.mxu0 0.0
        %1485 = vmatpush1.msra.mxu0 0.0
        %1486 = vmatprep.subr.mxu0 0.0
        %1487 = vmatpush1.msra.mxu0 0.0
        %1488 = vmatprep.subr.mxu0 0.0
        %1489 = vmatpush1.msra.mxu0 0.0
        %1490 = vmatprep.subr.mxu0 0.0
        %1491 = vmatpush1.msra.mxu0 0.0
        %1492 = vmatprep.subr.mxu0 0.0
        %1493 = vmatpush1.msra.mxu0 0.0
        %1494 = vmatprep.subr.mxu0 0.0
        %1495 = vmatpush1.msra.mxu0 0.0
        %1496 = vmatprep.subr.mxu0 0.0
        %1497 = vmatpush1.msra.mxu0 0.0
        %1498 = vmatprep.subr.mxu0 0.0
        %1499 = vmatpush1.msra.mxu0 0.0
        %1500 = vmatprep.subr.mxu0 0.0
        %1501 = vmatpush1.msra.mxu0 0.0
        %1502 = vmatprep.subr.mxu0 0.0
        %1503 = vmatpush1.msra.mxu0 %v1470
        %1504 = vmatprep.subr.mxu0 0.0
        %1505 = vmatpush1.msra.mxu0 %v1469
        %1506 = vmatprep.subr.mxu0 0.0
        %1507 = vmatpush1.msra.mxu0 %v1468
        %1508 = vmatprep.subr.mxu0 0.0
        %1509 = vmatpush1.msra.mxu0 %v1467
        %1510 = vmatprep.subr.mxu0 0.0
        %1511 = vmatpush2.msra.mxu0 0.0
        %1512 = vmatprep.subr.mxu0 0.0
        %1513 = vmatpush2.msra.mxu0 0.0
        %1514 = vmatprep.subr.mxu0 0.0
        %1515 = vmatpush2.msra.mxu0 0.0
        %1516 = vmatprep.subr.mxu0 0.0
        %1517 = vmatpush2.msra.mxu0 0.0
        %1518 = vmatprep.subr.mxu0 0.0
        %1519 = vmatpush2.msra.mxu0 0.0
        %1520 = vmatprep.subr.mxu0 0.0
        %1521 = vmatpush2.msra.mxu0 0.0
        %1522 = vmatprep.subr.mxu0 0.0
        %1523 = vmatpush2.msra.mxu0 0.0
        %1524 = vmatprep.subr.mxu0 0.0
        %1525 = vmatpush2.msra.mxu0 0.0
        %1526 = vmatprep.subr.mxu0 0.0
        %1527 = vmatpush2.msra.mxu0 0.0
        %1528 = vmatprep.subr.mxu0 0.0
        %1529 = vmatpush2.msra.mxu0 0.0
        %1530 = vmatprep.subr.mxu0 0.0
        %1531 = vmatpush2.msra.mxu0 0.0
        %1532 = vmatprep.subr.mxu0 0.0
        %1533 = vmatpush2.msra.mxu0 0.0
        %1534 = vmatprep.subr.mxu0 0.0
        %1535 = vmatpush2.msra.mxu0 0.0
        %1536 = vmatprep.subr.mxu0 0.0
        %1537 = vmatpush2.msra.mxu0 0.0
        %1538 = vmatprep.subr.mxu0 0.0
        %1539 = vmatpush2.msra.mxu0 0.0
        %1540 = vmatprep.subr.mxu0 0.0
        %1541 = vmatpush2.msra.mxu0 0.0
        %1542 = vmatprep.mubr.f32.mxu0 0.0
        %1543 = vmatmul.mubr.f32.gmra.mxu0 %v1476
        %v1544 = vpop.f32.mrf.mxu0
        %v1545 = vadd.f32 %v1474, %v1544
        %v1546 = vpop.f32.mrf.mxu0
        %1547 = vdwg.mxu0
        %v1548 = vmax.f32 %v1545, 0.0
        %v1549 = vld [vmem:[%s5 + $0x7] sm:$0x1]
        %s1550 = scalar_lea.vmem [#allocation2], 224
        %v1551 = vld [vmem:[%s1550] sm:$0xff]
        %v1552 = vld [vmem:[%s1550 + $0x8] sm:$0xff]
        %v1553 = vld [vmem:[%s1550 + $0x10] sm:$0xff]
        %v1554 = vld [vmem:[%s1550 + $0x18] sm:$0xff]
        %v1555 = vlaneseq
        %v1556 = vshrl.u32 %v1555, 7
        %v1557 = vsub.s32 0, %v1556
        %v1558 = vrot.slane %v1549, %v1557
        %v1560 = vsel %vm467, %v1548, 0
        %1562 = vmatprep.subr.mxu0 0.0
        %1563 = vmatpush1.msra.mxu0 0.0
        %1564 = vmatprep.subr.mxu0 0.0
        %1565 = vmatpush1.msra.mxu0 0.0
        %1566 = vmatprep.subr.mxu0 0.0
        %1567 = vmatpush1.msra.mxu0 0.0
        %1568 = vmatprep.subr.mxu0 0.0
        %1569 = vmatpush1.msra.mxu0 0.0
        %1570 = vmatprep.subr.mxu0 0.0
        %1571 = vmatpush1.msra.mxu0 0.0
        %1572 = vmatprep.subr.mxu0 0.0
        %1573 = vmatpush1.msra.mxu0 0.0
        %1574 = vmatprep.subr.mxu0 0.0
        %1575 = vmatpush1.msra.mxu0 0.0
        %1576 = vmatprep.subr.mxu0 0.0
        %1577 = vmatpush1.msra.mxu0 0.0
        %1578 = vmatprep.subr.mxu0 0.0
        %1579 = vmatpush1.msra.mxu0 0.0
        %1580 = vmatprep.subr.mxu0 0.0
        %1581 = vmatpush1.msra.mxu0 0.0
        %1582 = vmatprep.subr.mxu0 0.0
        %1583 = vmatpush1.msra.mxu0 0.0
        %1584 = vmatprep.subr.mxu0 0.0
        %1585 = vmatpush1.msra.mxu0 0.0
        %1586 = vmatprep.subr.mxu0 0.0
        %1587 = vmatpush1.msra.mxu0 %v1554
        %1588 = vmatprep.subr.mxu0 0.0
        %1589 = vmatpush1.msra.mxu0 %v1553
        %1590 = vmatprep.subr.mxu0 0.0
        %1591 = vmatpush1.msra.mxu0 %v1552
        %1592 = vmatprep.subr.mxu0 0.0
        %1593 = vmatpush1.msra.mxu0 %v1551
        %1594 = vmatprep.subr.mxu0 0.0
        %1595 = vmatpush2.msra.mxu0 0.0
        %1596 = vmatprep.subr.mxu0 0.0
        %1597 = vmatpush2.msra.mxu0 0.0
        %1598 = vmatprep.subr.mxu0 0.0
        %1599 = vmatpush2.msra.mxu0 0.0
        %1600 = vmatprep.subr.mxu0 0.0
        %1601 = vmatpush2.msra.mxu0 0.0
        %1602 = vmatprep.subr.mxu0 0.0
        %1603 = vmatpush2.msra.mxu0 0.0
        %1604 = vmatprep.subr.mxu0 0.0
        %1605 = vmatpush2.msra.mxu0 0.0
        %1606 = vmatprep.subr.mxu0 0.0
        %1607 = vmatpush2.msra.mxu0 0.0
        %1608 = vmatprep.subr.mxu0 0.0
        %1609 = vmatpush2.msra.mxu0 0.0
        %1610 = vmatprep.subr.mxu0 0.0
        %1611 = vmatpush2.msra.mxu0 0.0
        %1612 = vmatprep.subr.mxu0 0.0
        %1613 = vmatpush2.msra.mxu0 0.0
        %1614 = vmatprep.subr.mxu0 0.0
        %1615 = vmatpush2.msra.mxu0 0.0
        %1616 = vmatprep.subr.mxu0 0.0
        %1617 = vmatpush2.msra.mxu0 0.0
        %1618 = vmatprep.subr.mxu0 0.0
        %1619 = vmatpush2.msra.mxu0 0.0
        %1620 = vmatprep.subr.mxu0 0.0
        %1621 = vmatpush2.msra.mxu0 0.0
        %1622 = vmatprep.subr.mxu0 0.0
        %1623 = vmatpush2.msra.mxu0 0.0
        %1624 = vmatprep.subr.mxu0 0.0
        %1625 = vmatpush2.msra.mxu0 0.0
        %1626 = vmatprep.mubr.f32.mxu0 0.0
        %1627 = vmatmul.mubr.f32.gmra.mxu0 %v1560
        %v1628 = vpop.f32.mrf.mxu0
        %v1629 = vadd.f32 %v1558, %v1628
        %v1630 = vpop.f32.mrf.mxu0
        %1631 = vdwg.mxu0
        %v1632 = vmax.f32 %v1629, 0.0
        %v1633 = vld [vmem:[%s7 + $0x3] sm:$0x1]
        %s1634 = scalar_lea.vmem %s6, 96
        %v1635 = vld [vmem:[%s1634] sm:$0xff]
        %v1636 = vld [vmem:[%s1634 + $0x8] sm:$0xff]
        %v1637 = vld [vmem:[%s1634 + $0x10] sm:$0xff]
        %v1638 = vld [vmem:[%s1634 + $0x18] sm:$0xff]
        %v1639 = vlaneseq
        %v1640 = vshrl.u32 %v1639, 7
        %v1641 = vsub.s32 0, %v1640
        %v1642 = vrot.slane %v1633, %v1641
        %v1644 = vsel %vm467, %v1632, 0
        %1646 = vmatprep.subr.mxu0 0.0
        %1647 = vmatpush1.msra.mxu0 0.0
        %1648 = vmatprep.subr.mxu0 0.0
        %1649 = vmatpush1.msra.mxu0 0.0
        %1650 = vmatprep.subr.mxu0 0.0
        %1651 = vmatpush1.msra.mxu0 0.0
        %1652 = vmatprep.subr.mxu0 0.0
        %1653 = vmatpush1.msra.mxu0 0.0
        %1654 = vmatprep.subr.mxu0 0.0
        %1655 = vmatpush1.msra.mxu0 0.0
        %1656 = vmatprep.subr.mxu0 0.0
        %1657 = vmatpush1.msra.mxu0 0.0
        %1658 = vmatprep.subr.mxu0 0.0
        %1659 = vmatpush1.msra.mxu0 0.0
        %1660 = vmatprep.subr.mxu0 0.0
        %1661 = vmatpush1.msra.mxu0 0.0
        %1662 = vmatprep.subr.mxu0 0.0
        %1663 = vmatpush1.msra.mxu0 0.0
        %1664 = vmatprep.subr.mxu0 0.0
        %1665 = vmatpush1.msra.mxu0 0.0
        %1666 = vmatprep.subr.mxu0 0.0
        %1667 = vmatpush1.msra.mxu0 0.0
        %1668 = vmatprep.subr.mxu0 0.0
        %1669 = vmatpush1.msra.mxu0 0.0
        %1670 = vmatprep.subr.mxu0 0.0
        %1671 = vmatpush1.msra.mxu0 %v1638
        %1672 = vmatprep.subr.mxu0 0.0
        %1673 = vmatpush1.msra.mxu0 %v1637
        %1674 = vmatprep.subr.mxu0 0.0
        %1675 = vmatpush1.msra.mxu0 %v1636
        %1676 = vmatprep.subr.mxu0 0.0
        %1677 = vmatpush1.msra.mxu0 %v1635
        %1678 = vmatprep.subr.mxu0 0.0
        %1679 = vmatpush2.msra.mxu0 0.0
        %1680 = vmatprep.subr.mxu0 0.0
        %1681 = vmatpush2.msra.mxu0 0.0
        %1682 = vmatprep.subr.mxu0 0.0
        %1683 = vmatpush2.msra.mxu0 0.0
        %1684 = vmatprep.subr.mxu0 0.0
        %1685 = vmatpush2.msra.mxu0 0.0
        %1686 = vmatprep.subr.mxu0 0.0
        %1687 = vmatpush2.msra.mxu0 0.0
        %1688 = vmatprep.subr.mxu0 0.0
        %1689 = vmatpush2.msra.mxu0 0.0
        %1690 = vmatprep.subr.mxu0 0.0
        %1691 = vmatpush2.msra.mxu0 0.0
        %1692 = vmatprep.subr.mxu0 0.0
        %1693 = vmatpush2.msra.mxu0 0.0
        %1694 = vmatprep.subr.mxu0 0.0
        %1695 = vmatpush2.msra.mxu0 0.0
        %1696 = vmatprep.subr.mxu0 0.0
        %1697 = vmatpush2.msra.mxu0 0.0
        %1698 = vmatprep.subr.mxu0 0.0
        %1699 = vmatpush2.msra.mxu0 0.0
        %1700 = vmatprep.subr.mxu0 0.0
        %1701 = vmatpush2.msra.mxu0 0.0
        %1702 = vmatprep.subr.mxu0 0.0
        %1703 = vmatpush2.msra.mxu0 0.0
        %1704 = vmatprep.subr.mxu0 0.0
        %1705 = vmatpush2.msra.mxu0 0.0
        %1706 = vmatprep.subr.mxu0 0.0
        %1707 = vmatpush2.msra.mxu0 0.0
        %1708 = vmatprep.subr.mxu0 0.0
        %1709 = vmatpush2.msra.mxu0 0.0
        %1710 = vmatprep.mubr.f32.mxu0 0.0
        %1711 = vmatmul.mubr.f32.gmra.mxu0 %v1644
        %v1712 = vpop.f32.mrf.mxu0
        %v1713 = vadd.f32 %v1642, %v1712
        %v1714 = vpop.f32.mrf.mxu0
        %1715 = vdwg.mxu0
        %v1716 = vadd.f32 %v1044, %v1713
        %1717 = vst.msk [vmem:[%s366] sm:$0xff] %vm379, %v1716
        %1718 = vst.msk [vmem:[%s370] sm:$0xff] %vm379, %v1380
        %p1719 = scmp.lt.s32.totalorder %s22, 1
        %s1720 = scalar_select %p1719, %s22, 1
        %s1721 = smul.addr %s1720, 8
        %s1722 = scalar_lea.vmem %s8, %s1721
        %p1723 = scmp.lt.s32.totalorder %s22, 1
        %s1724 = scalar_select %p1723, %s22, 1
        %s1725 = smul.addr %s1724, 8
        %s1726 = scalar_lea.vmem %s9, %s1725
        // Predicated region
        $region57: #{tpu_custom_call.1} parent=51 // pred_check
          %p1727 = pneg %p218
        $region58: #{tpu_custom_call.1} parent=51 // pred_check_branch
          %1729 = sbr.rel (%p1727) target = $region60
        $region59: #{tpu_custom_call.1} parent=51 // pred_region
          _
        $region60: #{tpu_custom_call.1} parent=51 // pred_fallthru
          _
        // Predicated region
        $region61: #{tpu_custom_call.1} parent=51 // pred_check
          %p1730 = pneg %p244
        $region62: #{tpu_custom_call.1} parent=51 // pred_check_branch
          %1732 = sbr.rel (%p1730) target = $region64
        $region63: #{tpu_custom_call.1} parent=51 // pred_region
          _
        $region64: #{tpu_custom_call.1} parent=51 // pred_fallthru
          _
      $region52: #{tpu_custom_call.1} parent=5 // pred_fallthru
        _
      %p1733 = scmp.le.s32.totalorder 2, %s17
      // Predicated region
      $region65: #{tpu_custom_call.1} parent=5 // pred_check
        %p1734 = pneg %p1733
      $region66: #{tpu_custom_call.1} parent=5 // pred_check_branch
        %1736 = sbr.rel (%p1734) target = $region68
      $region67: #{tpu_custom_call.1} parent=5 // pred_region
        %s1737 = ssub.s32 %s17, 2
        // Predicated region
        $region69: #{tpu_custom_call.1} parent=67 // pred_check
          %p1738 = pneg %p224
        $region70: #{tpu_custom_call.1} parent=67 // pred_check_branch
          %1740 = sbr.rel (%p1738) target = $region72
        $region71: #{tpu_custom_call.1} parent=67 // pred_region
          %p1741 = scmp.lt.s32.totalorder %s23, 1
          %s1742 = scalar_select %p1741, %s23, 1
          %s1743 = smul.addr %s1742, 8
          %s1744 = scalar_lea.vmem %s8, %s1743
        $region72: #{tpu_custom_call.1} parent=67 // pred_fallthru
          _
        // Predicated region
        $region73: #{tpu_custom_call.1} parent=67 // pred_check
          %p1745 = pneg %p250
        $region74: #{tpu_custom_call.1} parent=67 // pred_check_branch
          %1747 = sbr.rel (%p1745) target = $region76
        $region75: #{tpu_custom_call.1} parent=67 // pred_region
          %p1748 = scmp.lt.s32.totalorder %s23, 1
          %s1749 = scalar_select %p1748, %s23, 1
          %s1750 = smul.addr %s1749, 8
          %s1751 = scalar_lea.vmem %s9, %s1750
        $region76: #{tpu_custom_call.1} parent=67 // pred_fallthru
          _
      $region68: #{tpu_custom_call.1} parent=5 // pred_fallthru
        _
    $region6: #{tpu_custom_call.1} parent=1 // loop_footer
      %s21 = sadd.s32 1, %s17
    $region7: #{tpu_custom_call.1} parent=1 // loop_footer_branch
      %16 = sbr.rel target = $region3
    $region8: #{tpu_custom_call.1} parent=1 // loop_exit
      _
    %1752 = vsyncpa [#allocation3], 1
    %s1753 = scalar_lea.sflag [#allocation3], 1
    %1754 = vsyncpa %s1753, 1

</llo_original>
